<compile_context>
chip_gen: v7x
topology: tpu7x:2x2x1
jax: 0.10.0
libtpu: 0.0.40
codegen_flags: <defaults>
</compile_context>

<pallas_src>
import jax
import jax.numpy as jnp
from jax.experimental import pallas as pl
from jax.experimental.pallas import tpu as pltpu

IN_DIM = 81 + 9 + 24      # 114
IN_PAD = 128              # lane-aligned input feature dim (in-kernel pad)
HIDDEN = 512
OUT_DIM = 9
OUT_PAD = 128             # lane-dense output slab
SCALE = 0.397

_MAX_TB = 1024            # per-tile working set stays ~O(10 MiB) incl. temporaries


def _cdiv(a, b):
    return (a + b - 1) // b


def _round_up(x, m):
    return ((x + m - 1) // m) * m


def _choose_tiles(B):
    """Pick (n_tiles, TB): TB tracks B (minimal padding), capped at _MAX_TB,
    multiple of 32 (so TB/2 halves stay bf16-sublane aligned), and >=2 tiles
    once the batch is big enough so both v7x TensorCores get work."""
    n_tiles = max(1, _cdiv(B, _MAX_TB))
    if B > 32:
        n_tiles = max(n_tiles, 2)
    TB = _round_up(_cdiv(B, n_tiles), 32)
    return n_tiles, TB


def _mlp_kernel(x_ref,
                w1_ref, b1_ref,
                w2_ref, b2_ref,
                w3_ref, b3_ref,
                w4_ref, b4_ref,
                o_ref, xpad_ref):
    # x_ref: f32 [TB, 114]; weights bf16; biases f32; o_ref bf16 [TB, 128];
    # xpad_ref: bf16 [TB, 128] VMEM scratch (fused input pad + cast).
    xpad_ref[...] = jnp.zeros_like(xpad_ref)
    xpad_ref[:, :IN_DIM] = x_ref[...].astype(jnp.bfloat16)

    def mlp(x):
        h = jnp.dot(x, w1_ref[...], preferred_element_type=jnp.float32) + b1_ref[...]
        h = jnp.maximum(h, 0.0).astype(jnp.bfloat16)
        h = jnp.dot(h, w2_ref[...], preferred_element_type=jnp.float32) + b2_ref[...]
        h = jnp.maximum(h, 0.0).astype(jnp.bfloat16)
        h = jnp.dot(h, w3_ref[...], preferred_element_type=jnp.float32) + b3_ref[...]
        h = jnp.maximum(h, 0.0).astype(jnp.bfloat16)
        a = jnp.dot(h, w4_ref[...], preferred_element_type=jnp.float32) + b4_ref[...]
        return (jnp.tanh(a) * SCALE).astype(o_ref.dtype)

    # Two independent sub-tile chains: the scheduler overlaps one half's
    # layer-k matmul with the other half's bias/ReLU/cast epilogue.
    half = xpad_ref.shape[0] // 2
    o_ref[:half, :] = mlp(xpad_ref[:half, :])
    o_ref[half:, :] = mlp(xpad_ref[half:, :])


def init_params(key):
    """PyTorch nn.Linear-style init: U(-1/sqrt(fan_in), 1/sqrt(fan_in)).

    Weights stored as [in_features, out_features] (transposed vs. PyTorch)."""
    dims = [(IN_DIM, HIDDEN), (HIDDEN, HIDDEN), (HIDDEN, HIDDEN), (HIDDEN, OUT_DIM)]
    params = {}
    for i, (fan_in, fan_out) in enumerate(dims, start=1):
        key, kw, kb = jax.random.split(key, 3)
        bound = 1.0 / jnp.sqrt(float(fan_in))
        params[f"w{i}"] = jax.random.uniform(
            kw, (fan_in, fan_out), jnp.float32, minval=-bound, maxval=bound)
        params[f"b{i}"] = jax.random.uniform(
            kb, (1, fan_out), jnp.float32, minval=-bound, maxval=bound)
    return params


def pack_params(params):
    """Kernel layout: bf16 weights (w1 zero-padded 114->128 rows, w4 zero-padded
    9->128 cols), f32 biases (b4 padded 9->128)."""
    w1 = jnp.zeros((IN_PAD, HIDDEN), jnp.bfloat16)
    w1 = w1.at[:IN_DIM, :].set(params["w1"].astype(jnp.bfloat16))
    w4 = jnp.zeros((HIDDEN, OUT_PAD), jnp.bfloat16)
    w4 = w4.at[:, :OUT_DIM].set(params["w4"].astype(jnp.bfloat16))
    b4 = jnp.zeros((1, OUT_PAD), jnp.float32)
    b4 = b4.at[:, :OUT_DIM].set(params["b4"].astype(jnp.float32))
    return {
        "w1": w1, "b1": params["b1"].astype(jnp.float32),
        "w2": params["w2"].astype(jnp.bfloat16), "b2": params["b2"].astype(jnp.float32),
        "w3": params["w3"].astype(jnp.bfloat16), "b3": params["b3"].astype(jnp.float32),
        "w4": w4, "b4": b4,
    }


@jax.jit
def network_forward(obs, packed):
    """obs: [B, 114] float32. packed: output of pack_params(). Returns [B, 9] f32."""
    B = obs.shape[0]
    n_tiles, TB = _choose_tiles(B)
    B_pad = n_tiles * TB

    x = obs.astype(jnp.float32)
    if B_pad != B:
        # Batch padding only (features and dtype handled inside the kernel).
        x = jnp.pad(x, ((0, B_pad - B), (0, 0)))

    # Activations stream over the batch grid axis; weights/biases use constant
    # block indices so they stay resident in VMEM across grid steps.
    x_spec = pl.BlockSpec((TB, IN_DIM), lambda i: (i, 0))
    w1_spec = pl.BlockSpec((IN_PAD, HIDDEN), lambda i: (0, 0))
    b1_spec = pl.BlockSpec((1, HIDDEN), lambda i: (0, 0))
    w2_spec = pl.BlockSpec((HIDDEN, HIDDEN), lambda i: (0, 0))
    b2_spec = pl.BlockSpec((1, HIDDEN), lambda i: (0, 0))
    w3_spec = pl.BlockSpec((HIDDEN, HIDDEN), lambda i: (0, 0))
    b3_spec = pl.BlockSpec((1, HIDDEN), lambda i: (0, 0))
    w4_spec = pl.BlockSpec((HIDDEN, OUT_PAD), lambda i: (0, 0))
    b4_spec = pl.BlockSpec((1, OUT_PAD), lambda i: (0, 0))
    out_spec = pl.BlockSpec((TB, OUT_PAD), lambda i: (i, 0))

    out = pl.pallas_call(
        _mlp_kernel,
        out_shape=jax.ShapeDtypeStruct((B_pad, OUT_PAD), jnp.bfloat16),
        grid=(n_tiles,),
        in_specs=[x_spec,
                  w1_spec, b1_spec,
                  w2_spec, b2_spec,
                  w3_spec, b3_spec,
                  w4_spec, b4_spec],
        out_specs=out_spec,
        scratch_shapes=[pltpu.VMEM((TB, IN_PAD), jnp.bfloat16)],
        compiler_params=pltpu.CompilerParams(
            dimension_semantics=("parallel",),
            vmem_limit_bytes=32 * 1024 * 1024,
        ),
    )(x,
      packed["w1"], packed["b1"],
      packed["w2"], packed["b2"],
      packed["w3"], packed["b3"],
      packed["w4"], packed["b4"])

    return out[:B, :OUT_DIM].astype(jnp.float32)


def _reference_f32(obs, params):
    h = jnp.maximum(obs @ params["w1"] + params["b1"], 0.0)
    h = jnp.maximum(h @ params["w2"] + params["b2"], 0.0)
    h = jnp.maximum(h @ params["w3"] + params["b3"], 0.0)
    return jnp.tanh(h @ params["w4"] + params["b4"]) * SCALE


def _reference_bf16(obs, params):
    """Pure-JAX model of the kernel numerics (bf16 operands, f32 accumulation)."""
    def dense(x, w, b):
        return jnp.dot(x.astype(jnp.bfloat16), w.astype(jnp.bfloat16),
                       preferred_element_type=jnp.float32) + b
    h = jnp.maximum(dense(obs, params["w1"], params["b1"]), 0.0)
    h = jnp.maximum(dense(h, params["w2"], params["b2"]), 0.0)
    h = jnp.maximum(dense(h, params["w3"], params["b3"]), 0.0)
    return jnp.tanh(dense(h, params["w4"], params["b4"])) * SCALE


if __name__ == "__main__":
    key = jax.random.PRNGKey(0)
    kp, kx = jax.random.split(key)
    params = init_params(kp)
    packed = pack_params(params)

    # Small single-tile batch (exercises batch padding path, n_tiles=1).
    B = 8
    obs = jax.random.normal(kx, (B, IN_DIM), dtype=jnp.float32)
    out = jax.block_until_ready(network_forward(obs, packed))
    assert out.shape == (B, OUT_DIM)
    assert jnp.allclose(out, _reference_bf16(obs, params), atol=3e-3, rtol=1e-2)
    assert jnp.allclose(out, _reference_f32(obs, params), atol=2.5e-2, rtol=2.5e-2)

    # Multi-tile batch (exercises grid=2 / TB-from-B / padding path).
    B2 = 300
    obs2 = jax.random.normal(jax.random.PRNGKey(1), (B2, IN_DIM), dtype=jnp.float32)
    out2 = jax.block_until_ready(network_forward(obs2, packed))
    assert out2.shape == (B2, OUT_DIM)
    assert jnp.allclose(out2, _reference_bf16(obs2, params), atol=3e-3, rtol=1e-2)

    print("KERNEL_OK")
</pallas_src>

<mosaic_0001>
module attributes {stable_mosaic.version = 11 : i64} {
  func.func @_mlp_kernel(%arg0: i32, %arg1: memref<32x114xf32, #tpu.memory_space<vmem>>, %arg2: memref<128x512xbf16, #tpu.memory_space<vmem>>, %arg3: memref<1x512xf32, #tpu.memory_space<vmem>>, %arg4: memref<512x512xbf16, #tpu.memory_space<vmem>>, %arg5: memref<1x512xf32, #tpu.memory_space<vmem>>, %arg6: memref<512x512xbf16, #tpu.memory_space<vmem>>, %arg7: memref<1x512xf32, #tpu.memory_space<vmem>>, %arg8: memref<512x128xbf16, #tpu.memory_space<vmem>>, %arg9: memref<1x128xf32, #tpu.memory_space<vmem>>, %arg10: memref<32x128xbf16, #tpu.memory_space<vmem>>, %arg11: memref<32x128xbf16, #tpu.memory_space<vmem>>) attributes {dimension_semantics = [#tpu.dimension_semantics<parallel>], iteration_bounds = array<i64: 1>, scalar_prefetch = 0 : i64, scratch_operands = 1 : i64, tpu.core_type = #tpu.core_type<tc>, window_params = [{transform_indices = @transform_0, window_bounds = array<i64: 32, 114>}, {pipeline_mode = #tpu.pipeline_mode<synchronous>, transform_indices = @transform_1, window_bounds = array<i64: 128, 512>}, {pipeline_mode = #tpu.pipeline_mode<synchronous>, transform_indices = @transform_2, window_bounds = array<i64: 1, 512>}, {pipeline_mode = #tpu.pipeline_mode<synchronous>, transform_indices = @transform_3, window_bounds = array<i64: 512, 512>}, {pipeline_mode = #tpu.pipeline_mode<synchronous>, transform_indices = @transform_4, window_bounds = array<i64: 1, 512>}, {pipeline_mode = #tpu.pipeline_mode<synchronous>, transform_indices = @transform_5, window_bounds = array<i64: 512, 512>}, {pipeline_mode = #tpu.pipeline_mode<synchronous>, transform_indices = @transform_6, window_bounds = array<i64: 1, 512>}, {pipeline_mode = #tpu.pipeline_mode<synchronous>, transform_indices = @transform_7, window_bounds = array<i64: 512, 128>}, {pipeline_mode = #tpu.pipeline_mode<synchronous>, transform_indices = @transform_8, window_bounds = array<i64: 1, 128>}, {transform_indices = @transform_9, window_bounds = array<i64: 32, 128>}]} {
    %cst = arith.constant 0.000000e+00 : bf16
    %0 = vector.broadcast %cst : bf16 to vector<32x128xbf16>
    %c0 = arith.constant 0 : index
    %c0_0 = arith.constant 0 : index
    %1 = vector.load %arg11[%c0, %c0_0] : memref<32x128xbf16, #tpu.memory_space<vmem>>, vector<32x128xbf16>
    tpu.vector_store %arg11[%c0, %c0_0], %0 {strides = array<i32>} : memref<32x128xbf16, #tpu.memory_space<vmem>>, vector<32x128xbf16>,
    %c0_1 = arith.constant 0 : index
    %c0_2 = arith.constant 0 : index
    %2 = vector.load %arg1[%c0_1, %c0_2] : memref<32x114xf32, #tpu.memory_space<vmem>>, vector<32x114xf32>
    %3 = arith.truncf %2 : vector<32x114xf32> to vector<32x114xbf16>
    %c0_3 = arith.constant 0 : index
    %c0_4 = arith.constant 0 : index
    %4 = vector.load %arg11[%c0_3, %c0_4] : memref<32x128xbf16, #tpu.memory_space<vmem>>, vector<32x114xbf16>
    tpu.vector_store %arg11[%c0_3, %c0_4], %3 {strides = array<i32>} : memref<32x128xbf16, #tpu.memory_space<vmem>>, vector<32x114xbf16>,
    %c0_5 = arith.constant 0 : index
    %c0_6 = arith.constant 0 : index
    %5 = vector.load %arg11[%c0_5, %c0_6] : memref<32x128xbf16, #tpu.memory_space<vmem>>, vector<16x128xbf16>
    %c0_7 = arith.constant 0 : index
    %c0_8 = arith.constant 0 : index
    %6 = vector.load %arg2[%c0_7, %c0_8] : memref<128x512xbf16, #tpu.memory_space<vmem>>, vector<128x512xbf16>
    %cst_9 = arith.constant dense<0.000000e+00> : vector<16x512xf32>
    %7 = tpu.matmul %5, %6, %cst_9 {dimension_numbers = #tpu.dot_dimension_numbers<[1], [0], [0], [1], [0, 0, 1, 1], [], []>} : vector<16x128xbf16>, vector<128x512xbf16>, vector<16x512xf32> -> vector<16x512xf32>
    %c0_10 = arith.constant 0 : index
    %c0_11 = arith.constant 0 : index
    %8 = vector.load %arg3[%c0_10, %c0_11] : memref<1x512xf32, #tpu.memory_space<vmem>>, vector<1x512xf32>
    %9 = vector.broadcast %8 : vector<1x512xf32> to vector<16x512xf32>
    %10 = arith.addf %7, %9 : vector<16x512xf32>
    %cst_12 = arith.constant 0.000000e+00 : f32
    %11 = vector.broadcast %cst_12 : f32 to vector<16x512xf32>
    %12 = arith.maximumf %10, %11 : vector<16x512xf32>
    %13 = arith.truncf %12 : vector<16x512xf32> to vector<16x512xbf16>
    %c0_13 = arith.constant 0 : index
    %c0_14 = arith.constant 0 : index
    %14 = vector.load %arg4[%c0_13, %c0_14] : memref<512x512xbf16, #tpu.memory_space<vmem>>, vector<512x512xbf16>
    %cst_15 = arith.constant dense<0.000000e+00> : vector<16x512xf32>
    %15 = tpu.matmul %13, %14, %cst_15 {dimension_numbers = #tpu.dot_dimension_numbers<[1], [0], [0], [1], [0, 0, 1, 1], [], []>} : vector<16x512xbf16>, vector<512x512xbf16>, vector<16x512xf32> -> vector<16x512xf32>
    %c0_16 = arith.constant 0 : index
    %c0_17 = arith.constant 0 : index
    %16 = vector.load %arg5[%c0_16, %c0_17] : memref<1x512xf32, #tpu.memory_space<vmem>>, vector<1x512xf32>
    %17 = vector.broadcast %16 : vector<1x512xf32> to vector<16x512xf32>
    %18 = arith.addf %15, %17 : vector<16x512xf32>
    %cst_18 = arith.constant 0.000000e+00 : f32
    %19 = vector.broadcast %cst_18 : f32 to vector<16x512xf32>
    %20 = arith.maximumf %18, %19 : vector<16x512xf32>
    %21 = arith.truncf %20 : vector<16x512xf32> to vector<16x512xbf16>
    %c0_19 = arith.constant 0 : index
    %c0_20 = arith.constant 0 : index
    %22 = vector.load %arg6[%c0_19, %c0_20] : memref<512x512xbf16, #tpu.memory_space<vmem>>, vector<512x512xbf16>
    %cst_21 = arith.constant dense<0.000000e+00> : vector<16x512xf32>
    %23 = tpu.matmul %21, %22, %cst_21 {dimension_numbers = #tpu.dot_dimension_numbers<[1], [0], [0], [1], [0, 0, 1, 1], [], []>} : vector<16x512xbf16>, vector<512x512xbf16>, vector<16x512xf32> -> vector<16x512xf32>
    %c0_22 = arith.constant 0 : index
    %c0_23 = arith.constant 0 : index
    %24 = vector.load %arg7[%c0_22, %c0_23] : memref<1x512xf32, #tpu.memory_space<vmem>>, vector<1x512xf32>
    %25 = vector.broadcast %24 : vector<1x512xf32> to vector<16x512xf32>
    %26 = arith.addf %23, %25 : vector<16x512xf32>
    %cst_24 = arith.constant 0.000000e+00 : f32
    %27 = vector.broadcast %cst_24 : f32 to vector<16x512xf32>
    %28 = arith.maximumf %26, %27 : vector<16x512xf32>
    %29 = arith.truncf %28 : vector<16x512xf32> to vector<16x512xbf16>
    %c0_25 = arith.constant 0 : index
    %c0_26 = arith.constant 0 : index
    %30 = vector.load %arg8[%c0_25, %c0_26] : memref<512x128xbf16, #tpu.memory_space<vmem>>, vector<512x128xbf16>
    %cst_27 = arith.constant dense<0.000000e+00> : vector<16x128xf32>
    %31 = tpu.matmul %29, %30, %cst_27 {dimension_numbers = #tpu.dot_dimension_numbers<[1], [0], [0], [1], [0, 0, 1, 1], [], []>} : vector<16x512xbf16>, vector<512x128xbf16>, vector<16x128xf32> -> vector<16x128xf32>
    %c0_28 = arith.constant 0 : index
    %c0_29 = arith.constant 0 : index
    %32 = vector.load %arg9[%c0_28, %c0_29] : memref<1x128xf32, #tpu.memory_space<vmem>>, vector<1x128xf32>
    %33 = vector.broadcast %32 : vector<1x128xf32> to vector<16x128xf32>
    %34 = arith.addf %31, %33 : vector<16x128xf32>
    %35 = math.tanh %34 : vector<16x128xf32>
    %cst_30 = arith.constant 3.970000e-01 : f32
    %36 = vector.broadcast %cst_30 : f32 to vector<16x128xf32>
    %37 = arith.mulf %35, %36 : vector<16x128xf32>
    %38 = arith.truncf %37 : vector<16x128xf32> to vector<16x128xbf16>
    %c0_31 = arith.constant 0 : index
    %c0_32 = arith.constant 0 : index
    %39 = vector.load %arg10[%c0_31, %c0_32] : memref<32x128xbf16, #tpu.memory_space<vmem>>, vector<16x128xbf16>
    tpu.vector_store %arg10[%c0_31, %c0_32], %38 {strides = array<i32>} : memref<32x128xbf16, #tpu.memory_space<vmem>>, vector<16x128xbf16>,
    %c16 = arith.constant 16 : index
    %c0_33 = arith.constant 0 : index
    %40 = vector.load %arg11[%c16, %c0_33] : memref<32x128xbf16, #tpu.memory_space<vmem>>, vector<16x128xbf16>
    %c0_34 = arith.constant 0 : index
    %c0_35 = arith.constant 0 : index
    %41 = vector.load %arg2[%c0_34, %c0_35] : memref<128x512xbf16, #tpu.memory_space<vmem>>, vector<128x512xbf16>
    %cst_36 = arith.constant dense<0.000000e+00> : vector<16x512xf32>
    %42 = tpu.matmul %40, %41, %cst_36 {dimension_numbers = #tpu.dot_dimension_numbers<[1], [0], [0], [1], [0, 0, 1, 1], [], []>} : vector<16x128xbf16>, vector<128x512xbf16>, vector<16x512xf32> -> vector<16x512xf32>
    %c0_37 = arith.constant 0 : index
    %c0_38 = arith.constant 0 : index
    %43 = vector.load %arg3[%c0_37, %c0_38] : memref<1x512xf32, #tpu.memory_space<vmem>>, vector<1x512xf32>
    %44 = vector.broadcast %43 : vector<1x512xf32> to vector<16x512xf32>
    %45 = arith.addf %42, %44 : vector<16x512xf32>
    %cst_39 = arith.constant 0.000000e+00 : f32
    %46 = vector.broadcast %cst_39 : f32 to vector<16x512xf32>
    %47 = arith.maximumf %45, %46 : vector<16x512xf32>
    %48 = arith.truncf %47 : vector<16x512xf32> to vector<16x512xbf16>
    %c0_40 = arith.constant 0 : index
    %c0_41 = arith.constant 0 : index
    %49 = vector.load %arg4[%c0_40, %c0_41] : memref<512x512xbf16, #tpu.memory_space<vmem>>, vector<512x512xbf16>
    %cst_42 = arith.constant dense<0.000000e+00> : vector<16x512xf32>
    %50 = tpu.matmul %48, %49, %cst_42 {dimension_numbers = #tpu.dot_dimension_numbers<[1], [0], [0], [1], [0, 0, 1, 1], [], []>} : vector<16x512xbf16>, vector<512x512xbf16>, vector<16x512xf32> -> vector<16x512xf32>
    %c0_43 = arith.constant 0 : index
    %c0_44 = arith.constant 0 : index
    %51 = vector.load %arg5[%c0_43, %c0_44] : memref<1x512xf32, #tpu.memory_space<vmem>>, vector<1x512xf32>
    %52 = vector.broadcast %51 : vector<1x512xf32> to vector<16x512xf32>
    %53 = arith.addf %50, %52 : vector<16x512xf32>
    %cst_45 = arith.constant 0.000000e+00 : f32
    %54 = vector.broadcast %cst_45 : f32 to vector<16x512xf32>
    %55 = arith.maximumf %53, %54 : vector<16x512xf32>
    %56 = arith.truncf %55 : vector<16x512xf32> to vector<16x512xbf16>
    %c0_46 = arith.constant 0 : index
    %c0_47 = arith.constant 0 : index
    %57 = vector.load %arg6[%c0_46, %c0_47] : memref<512x512xbf16, #tpu.memory_space<vmem>>, vector<512x512xbf16>
    %cst_48 = arith.constant dense<0.000000e+00> : vector<16x512xf32>
    %58 = tpu.matmul %56, %57, %cst_48 {dimension_numbers = #tpu.dot_dimension_numbers<[1], [0], [0], [1], [0, 0, 1, 1], [], []>} : vector<16x512xbf16>, vector<512x512xbf16>, vector<16x512xf32> -> vector<16x512xf32>
    %c0_49 = arith.constant 0 : index
    %c0_50 = arith.constant 0 : index
    %59 = vector.load %arg7[%c0_49, %c0_50] : memref<1x512xf32, #tpu.memory_space<vmem>>, vector<1x512xf32>
    %60 = vector.broadcast %59 : vector<1x512xf32> to vector<16x512xf32>
    %61 = arith.addf %58, %60 : vector<16x512xf32>
    %cst_51 = arith.constant 0.000000e+00 : f32
    %62 = vector.broadcast %cst_51 : f32 to vector<16x512xf32>
    %63 = arith.maximumf %61, %62 : vector<16x512xf32>
    %64 = arith.truncf %63 : vector<16x512xf32> to vector<16x512xbf16>
    %c0_52 = arith.constant 0 : index
    %c0_53 = arith.constant 0 : index
    %65 = vector.load %arg8[%c0_52, %c0_53] : memref<512x128xbf16, #tpu.memory_space<vmem>>, vector<512x128xbf16>
    %cst_54 = arith.constant dense<0.000000e+00> : vector<16x128xf32>
    %66 = tpu.matmul %64, %65, %cst_54 {dimension_numbers = #tpu.dot_dimension_numbers<[1], [0], [0], [1], [0, 0, 1, 1], [], []>} : vector<16x512xbf16>, vector<512x128xbf16>, vector<16x128xf32> -> vector<16x128xf32>
    %c0_55 = arith.constant 0 : index
    %c0_56 = arith.constant 0 : index
    %67 = vector.load %arg9[%c0_55, %c0_56] : memref<1x128xf32, #tpu.memory_space<vmem>>, vector<1x128xf32>
    %68 = vector.broadcast %67 : vector<1x128xf32> to vector<16x128xf32>
    %69 = arith.addf %66, %68 : vector<16x128xf32>
    %70 = math.tanh %69 : vector<16x128xf32>
    %cst_57 = arith.constant 3.970000e-01 : f32
    %71 = vector.broadcast %cst_57 : f32 to vector<16x128xf32>
    %72 = arith.mulf %70, %71 : vector<16x128xf32>
    %73 = arith.truncf %72 : vector<16x128xf32> to vector<16x128xbf16>
    %c16_58 = arith.constant 16 : index
    %c0_59 = arith.constant 0 : index
    %74 = vector.load %arg10[%c16_58, %c0_59] : memref<32x128xbf16, #tpu.memory_space<vmem>>, vector<16x128xbf16>
    tpu.vector_store %arg10[%c16_58, %c0_59], %73 {strides = array<i32>} : memref<32x128xbf16, #tpu.memory_space<vmem>>, vector<16x128xbf16>,
    return
  }
  func.func @transform_0(%arg0: i32) -> (i32, i32) {
    %c0_i32 = arith.constant 0 : i32
    %c0_i32_0 = arith.constant 0 : i32
    return %arg0, %c0_i32 : i32, i32
  }
  func.func @transform_1(%arg0: i32) -> (i32, i32) {
    %c0_i32 = arith.constant 0 : i32
    %c0_i32_0 = arith.constant 0 : i32
    %c0_i32_1 = arith.constant 0 : i32
    return %c0_i32, %c0_i32_0 : i32, i32
  }
  func.func @transform_2(%arg0: i32) -> (i32, i32) {
    %c0_i32 = arith.constant 0 : i32
    %c0_i32_0 = arith.constant 0 : i32
    %c0_i32_1 = arith.constant 0 : i32
    return %c0_i32, %c0_i32_0 : i32, i32
  }
  func.func @transform_3(%arg0: i32) -> (i32, i32) {
    %c0_i32 = arith.constant 0 : i32
    %c0_i32_0 = arith.constant 0 : i32
    %c0_i32_1 = arith.constant 0 : i32
    return %c0_i32, %c0_i32_0 : i32, i32
  }
  func.func @transform_4(%arg0: i32) -> (i32, i32) {
    %c0_i32 = arith.constant 0 : i32
    %c0_i32_0 = arith.constant 0 : i32
    %c0_i32_1 = arith.constant 0 : i32
    return %c0_i32, %c0_i32_0 : i32, i32
  }
  func.func @transform_5(%arg0: i32) -> (i32, i32) {
    %c0_i32 = arith.constant 0 : i32
    %c0_i32_0 = arith.constant 0 : i32
    %c0_i32_1 = arith.constant 0 : i32
    return %c0_i32, %c0_i32_0 : i32, i32
  }
  func.func @transform_6(%arg0: i32) -> (i32, i32) {
    %c0_i32 = arith.constant 0 : i32
    %c0_i32_0 = arith.constant 0 : i32
    %c0_i32_1 = arith.constant 0 : i32
    return %c0_i32, %c0_i32_0 : i32, i32
  }
  func.func @transform_7(%arg0: i32) -> (i32, i32) {
    %c0_i32 = arith.constant 0 : i32
    %c0_i32_0 = arith.constant 0 : i32
    %c0_i32_1 = arith.constant 0 : i32
    return %c0_i32, %c0_i32_0 : i32, i32
  }
  func.func @transform_8(%arg0: i32) -> (i32, i32) {
    %c0_i32 = arith.constant 0 : i32
    %c0_i32_0 = arith.constant 0 : i32
    %c0_i32_1 = arith.constant 0 : i32
    return %c0_i32, %c0_i32_0 : i32, i32
  }
  func.func @transform_9(%arg0: i32) -> (i32, i32) {
    %c0_i32 = arith.constant 0 : i32
    %c0_i32_0 = arith.constant 0 : i32
    return %arg0, %c0_i32 : i32, i32
  }
}

</mosaic_0001>

<llo_original>
// kernel: network_forward.1
$region0: #{network_forward.1}
  #allocation0 [shape = 'u32[]', space=smem, size = 0x4, offset = 0x4, fixed_abs, tag = 'smem constant byte address 0x4 - core index']
  #allocation1 [shape = 'u32[144,128]{1,0:T(1,128)}', space=vmem, size = 0x12000, scoped, tag = 'internal scratch']
  #allocation2 [shape = 'bf16[32,128]{1,0:T(16,128)(2,1)}', space=vmem, size = 0x2000, scoped, tag = 'scratch operand']
  %s0 = inlined_call_operand.vmem [shape: f32[32,114], index: 0, kind: input, shape index: {}]
  %s1 = inlined_call_operand.hbm [shape: bf16[128,512], index: 1, kind: input, shape index: {}]
  %s2 = inlined_call_operand.vmem [shape: f32[1,512], index: 2, kind: input, shape index: {}]
  %s3 = inlined_call_operand.hbm [shape: bf16[512,512], index: 3, kind: input, shape index: {}]
  %s4 = inlined_call_operand.vmem [shape: f32[1,512], index: 4, kind: input, shape index: {}]
  %s5 = inlined_call_operand.hbm [shape: bf16[512,512], index: 5, kind: input, shape index: {}]
  %s6 = inlined_call_operand.vmem [shape: f32[1,512], index: 6, kind: input, shape index: {}]
  %s7 = inlined_call_operand.hbm [shape: bf16[512,128], index: 7, kind: input, shape index: {}]
  %s8 = inlined_call_operand.vmem [shape: f32[1,128], index: 8, kind: input, shape index: {}]
  %s9 = inlined_call_operand.vmem [shape: bf16[32,128], index: 9, kind: output, shape index: {}]
  %s10 = sld [smem:[#allocation0]]
  $region62: #{network_forward.1} parent=0
    _
  %s12 = ssub.s32 1, %s10
  %s13 = scalar_select 0, %s12, %s10
  $region1: #{network_forward.1} parent=0
    #allocation3 [shape = 'u8[131072]{0}', space=vmem, size = 0x20000, scoped, tag = 'input window, operand 1, single buffered']
    #allocation4 [shape = 's32[1]{0}', space=sflag, size = 0x4, scoped, tag = 'scoped memory for network_forward.1']
    #allocation5 [shape = 'u8[524288]{0}', space=vmem, size = 0x80000, scoped, tag = 'input window, operand 3, single buffered']
    #allocation6 [shape = 's32[1]{0}', space=sflag, size = 0x4, scoped, tag = 'scoped memory for network_forward.1']
    #allocation7 [shape = 'u8[524288]{0}', space=vmem, size = 0x80000, scoped, tag = 'input window, operand 5, single buffered']
    #allocation8 [shape = 'u8[131072]{0}', space=vmem, size = 0x20000, scoped, tag = 'input window, operand 7, single buffered']
    #allocation9 [shape = 's32[1]{0}', space=sflag, size = 0x4, scoped, tag = 'scoped memory for network_forward.1']
    %14 = vsyncpa [#allocation4], 0
    %15 = vsyncpa [#allocation6], 0
    %16 = vsyncpa [#allocation9], 0
    // Predicated region
    $region2: #{network_forward.1} parent=1 // pred_check
      _
    $region3: #{network_forward.1} parent=1 // pred_check_branch
      %18 = sbr.rel (0) target = $region5
    $region4: #{network_forward.1} parent=1 // pred_region
      _
    $region5: #{network_forward.1} parent=1 // pred_fallthru
      _
    // Predicated region
    $region6: #{network_forward.1} parent=1 // pred_check
      _
    $region7: #{network_forward.1} parent=1 // pred_check_branch
      %20 = sbr.rel (0) target = $region9
    $region8: #{network_forward.1} parent=1 // pred_region
      %s22 = ssub.s32 4096, 4096
      %23 = vsyncadd [#allocation4], %s22
      %s24 = sshll.u32 [#allocation3], 4
      %s25 = int_to_ptr.vmem [resolvable:$true] %s24
      %30 = dma.hbm_to_vmem [thread:$0]  %s1, 4096, %s25, [#allocation4], 256, 256, 16
    $region9: #{network_forward.1} parent=1 // pred_fallthru
      _
    // Predicated region
    $region10: #{network_forward.1} parent=1 // pred_check
      _
    $region11: #{network_forward.1} parent=1 // pred_check_branch
      %32 = sbr.rel (0) target = $region13
    $region12: #{network_forward.1} parent=1 // pred_region
      _
    $region13: #{network_forward.1} parent=1 // pred_fallthru
      _
    // Predicated region
    $region14: #{network_forward.1} parent=1 // pred_check
      _
    $region15: #{network_forward.1} parent=1 // pred_check_branch
      %34 = sbr.rel (0) target = $region17
    $region16: #{network_forward.1} parent=1 // pred_region
      %s36 = ssub.s32 16384, 16384
      %37 = vsyncadd [#allocation6], %s36
      %s38 = sshll.u32 [#allocation5], 4
      %s39 = int_to_ptr.vmem [resolvable:$true] %s38
      %44 = dma.hbm_to_vmem [thread:$0]  %s3, 16384, %s39, [#allocation6], 256, 256, 16
    $region17: #{network_forward.1} parent=1 // pred_fallthru
      _
    // Predicated region
    $region18: #{network_forward.1} parent=1 // pred_check
      _
    $region19: #{network_forward.1} parent=1 // pred_check_branch
      %46 = sbr.rel (0) target = $region21
    $region20: #{network_forward.1} parent=1 // pred_region
      _
    $region21: #{network_forward.1} parent=1 // pred_fallthru
      _
    // Predicated region
    $region22: #{network_forward.1} parent=1 // pred_check
      _
    $region23: #{network_forward.1} parent=1 // pred_check_branch
      %48 = sbr.rel (0) target = $region25
    $region24: #{network_forward.1} parent=1 // pred_region
      %s50 = ssub.s32 16384, 16384
      %51 = vsyncadd [#allocation6], %s50
      %s52 = sshll.u32 [#allocation7], 4
      %s53 = int_to_ptr.vmem [resolvable:$true] %s52
      %58 = dma.hbm_to_vmem [thread:$0]  %s5, 16384, %s53, [#allocation6], 256, 256, 16
    $region25: #{network_forward.1} parent=1 // pred_fallthru
      _
    // Predicated region
    $region26: #{network_forward.1} parent=1 // pred_check
      _
    $region27: #{network_forward.1} parent=1 // pred_check_branch
      %60 = sbr.rel (0) target = $region29
    $region28: #{network_forward.1} parent=1 // pred_region
      _
    $region29: #{network_forward.1} parent=1 // pred_fallthru
      _
    // Predicated region
    $region30: #{network_forward.1} parent=1 // pred_check
      _
    $region31: #{network_forward.1} parent=1 // pred_check_branch
      %62 = sbr.rel (0) target = $region33
    $region32: #{network_forward.1} parent=1 // pred_region
      %s64 = ssub.s32 4096, 4096
      %65 = vsyncadd [#allocation9], %s64
      %s66 = sshll.u32 [#allocation8], 4
      %s67 = int_to_ptr.vmem [resolvable:$true] %s66
      %72 = dma.hbm_to_vmem [thread:$0]  %s7, 4096, %s67, [#allocation9], 64, 64, 4
    $region33: #{network_forward.1} parent=1 // pred_fallthru
      _
    // Predicated region
    $region34: #{network_forward.1} parent=1 // pred_check
      _
    $region35: #{network_forward.1} parent=1 // pred_check_branch
      %74 = sbr.rel (0) target = $region37
    $region36: #{network_forward.1} parent=1 // pred_region
      _
    $region37: #{network_forward.1} parent=1 // pred_fallthru
      _
    // Predicated region
    $region38: #{network_forward.1} parent=1 // pred_check
      _
    $region39: #{network_forward.1} parent=1 // pred_check_branch
      %76 = sbr.rel (0) target = $region41
    $region40: #{network_forward.1} parent=1 // pred_region
      %77 = dma.done [#allocation4], 4096
    $region41: #{network_forward.1} parent=1 // pred_fallthru
      _
    // Predicated region
    $region42: #{network_forward.1} parent=1 // pred_check
      _
    $region43: #{network_forward.1} parent=1 // pred_check_branch
      %79 = sbr.rel (0) target = $region45
    $region44: #{network_forward.1} parent=1 // pred_region
      %80 = dma.done [#allocation6], 16384
    $region45: #{network_forward.1} parent=1 // pred_fallthru
      _
    // Predicated region
    $region46: #{network_forward.1} parent=1 // pred_check
      _
    $region47: #{network_forward.1} parent=1 // pred_check_branch
      %82 = sbr.rel (0) target = $region49
    $region48: #{network_forward.1} parent=1 // pred_region
      %83 = dma.done [#allocation6], 16384
    $region49: #{network_forward.1} parent=1 // pred_fallthru
      _
    // Predicated region
    $region50: #{network_forward.1} parent=1 // pred_check
      _
    $region51: #{network_forward.1} parent=1 // pred_check_branch
      %85 = sbr.rel (0) target = $region53
    $region52: #{network_forward.1} parent=1 // pred_region
      %86 = dma.done [#allocation9], 4096
    $region53: #{network_forward.1} parent=1 // pred_fallthru
      _
    %88 = vst [vmem:[#allocation2] sm:$0xff] 0
    %89 = vst [vmem:[#allocation2 + $0x8] sm:$0xff] 0
    %v90 = vld [vmem:[%s0] sm:$0xff]
    %v91 = vld [vmem:[%s0 + $0x8] sm:$0xff]
    %v92 = vld [vmem:[%s0 + $0x10] sm:$0xff]
    %v93 = vld [vmem:[%s0 + $0x18] sm:$0xff]
    %v94 = vpack.c.bf16 %v91, %v90
    %v95 = vpack.c.bf16 %v93, %v92
    %vm96 = vcmask 932864
    %97 = vst.msk [vmem:[#allocation2] sm:$0xff] %vm96, %v94
    %98 = vst.msk [vmem:[#allocation2 + $0x8] sm:$0xff] %vm96, %v95
    %v99 = vld [vmem:[#allocation2] sm:$0xff]
    %v100 = vld [vmem:[#allocation3] sm:$0xff]
    %v101 = vld [vmem:[#allocation3 + $0x8] sm:$0xff]
    %v102 = vld [vmem:[#allocation3 + $0x10] sm:$0xff]
    %v103 = vld [vmem:[#allocation3 + $0x18] sm:$0xff]
    %v104 = vld [vmem:[#allocation3 + $0x20] sm:$0xff]
    %v105 = vld [vmem:[#allocation3 + $0x28] sm:$0xff]
    %v106 = vld [vmem:[#allocation3 + $0x30] sm:$0xff]
    %v107 = vld [vmem:[#allocation3 + $0x38] sm:$0xff]
    %v108 = vld [vmem:[#allocation3 + $0x40] sm:$0xff]
    %v109 = vld [vmem:[#allocation3 + $0x48] sm:$0xff]
    %v110 = vld [vmem:[#allocation3 + $0x50] sm:$0xff]
    %v111 = vld [vmem:[#allocation3 + $0x58] sm:$0xff]
    %v112 = vld [vmem:[#allocation3 + $0x60] sm:$0xff]
    %v113 = vld [vmem:[#allocation3 + $0x68] sm:$0xff]
    %v114 = vld [vmem:[#allocation3 + $0x70] sm:$0xff]
    %v115 = vld [vmem:[#allocation3 + $0x78] sm:$0xff]
    %v116 = vld [vmem:[#allocation3 + $0x80] sm:$0xff]
    %v117 = vld [vmem:[#allocation3 + $0x88] sm:$0xff]
    %v118 = vld [vmem:[#allocation3 + $0x90] sm:$0xff]
    %v119 = vld [vmem:[#allocation3 + $0x98] sm:$0xff]
    %v120 = vld [vmem:[#allocation3 + $0xa0] sm:$0xff]
    %v121 = vld [vmem:[#allocation3 + $0xa8] sm:$0xff]
    %v122 = vld [vmem:[#allocation3 + $0xb0] sm:$0xff]
    %v123 = vld [vmem:[#allocation3 + $0xb8] sm:$0xff]
    %v124 = vld [vmem:[#allocation3 + $0xc0] sm:$0xff]
    %v125 = vld [vmem:[#allocation3 + $0xc8] sm:$0xff]
    %v126 = vld [vmem:[#allocation3 + $0xd0] sm:$0xff]
    %v127 = vld [vmem:[#allocation3 + $0xd8] sm:$0xff]
    %v128 = vld [vmem:[#allocation3 + $0xe0] sm:$0xff]
    %v129 = vld [vmem:[#allocation3 + $0xe8] sm:$0xff]
    %v130 = vld [vmem:[#allocation3 + $0xf0] sm:$0xff]
    %v131 = vld [vmem:[#allocation3 + $0xf8] sm:$0xff]
    %v132 = vld [vmem:[%s2] sm:$0xf]
    %v134 = vlaneseq
    %v135 = vshrl.u32 %v134, 7
    %v136 = vsub.s32 0, %v135
    %v137 = vrot.slane %v132, %v136
    %v138 = vlaneseq
    %v139 = vshrl.u32 %v138, 7
    %v140 = vsub.s32 1, %v139
    %v141 = vrot.slane %v132, %v140
    %v142 = vlaneseq
    %v143 = vshrl.u32 %v142, 7
    %v144 = vsub.s32 2, %v143
    %v145 = vrot.slane %v132, %v144
    %v146 = vlaneseq
    %v147 = vshrl.u32 %v146, 7
    %v148 = vsub.s32 3, %v147
    %v149 = vrot.slane %v132, %v148
    %v186 = vunpack.c.l.b16 %v100
    %v187 = vunpack.c.h.b16 %v100
    %v188 = vunpack.c.l.b16 %v101
    %v189 = vunpack.c.h.b16 %v101
    %v190 = vunpack.c.l.b16 %v102
    %v191 = vunpack.c.h.b16 %v102
    %v192 = vunpack.c.l.b16 %v103
    %v193 = vunpack.c.h.b16 %v103
    %v194 = vunpack.c.l.b16 %v104
    %v195 = vunpack.c.h.b16 %v104
    %v196 = vunpack.c.l.b16 %v105
    %v197 = vunpack.c.h.b16 %v105
    %v198 = vunpack.c.l.b16 %v106
    %v199 = vunpack.c.h.b16 %v106
    %v200 = vunpack.c.l.b16 %v107
    %v201 = vunpack.c.h.b16 %v107
    %v202 = vunpack.c.l.b16 %v108
    %v203 = vunpack.c.h.b16 %v108
    %v204 = vunpack.c.l.b16 %v109
    %v205 = vunpack.c.h.b16 %v109
    %v206 = vunpack.c.l.b16 %v110
    %v207 = vunpack.c.h.b16 %v110
    %v208 = vunpack.c.l.b16 %v111
    %v209 = vunpack.c.h.b16 %v111
    %v210 = vunpack.c.l.b16 %v112
    %v211 = vunpack.c.h.b16 %v112
    %v212 = vunpack.c.l.b16 %v113
    %v213 = vunpack.c.h.b16 %v113
    %v214 = vunpack.c.l.b16 %v114
    %v215 = vunpack.c.h.b16 %v114
    %v216 = vunpack.c.l.b16 %v115
    %v217 = vunpack.c.h.b16 %v115
    %v218 = vunpack.c.l.b16 %v116
    %v219 = vunpack.c.h.b16 %v116
    %v220 = vunpack.c.l.b16 %v117
    %v221 = vunpack.c.h.b16 %v117
    %v222 = vunpack.c.l.b16 %v118
    %v223 = vunpack.c.h.b16 %v118
    %v224 = vunpack.c.l.b16 %v119
    %v225 = vunpack.c.h.b16 %v119
    %v226 = vunpack.c.l.b16 %v120
    %v227 = vunpack.c.h.b16 %v120
    %v228 = vunpack.c.l.b16 %v121
    %v229 = vunpack.c.h.b16 %v121
    %v230 = vunpack.c.l.b16 %v122
    %v231 = vunpack.c.h.b16 %v122
    %v232 = vunpack.c.l.b16 %v123
    %v233 = vunpack.c.h.b16 %v123
    %v234 = vunpack.c.l.b16 %v124
    %v235 = vunpack.c.h.b16 %v124
    %v236 = vunpack.c.l.b16 %v125
    %v237 = vunpack.c.h.b16 %v125
    %v238 = vunpack.c.l.b16 %v126
    %v239 = vunpack.c.h.b16 %v126
    %v240 = vunpack.c.l.b16 %v127
    %v241 = vunpack.c.h.b16 %v127
    %v242 = vunpack.c.l.b16 %v128
    %v243 = vunpack.c.h.b16 %v128
    %v244 = vunpack.c.l.b16 %v129
    %v245 = vunpack.c.h.b16 %v129
    %v246 = vunpack.c.l.b16 %v130
    %v247 = vunpack.c.h.b16 %v130
    %v248 = vunpack.c.l.b16 %v131
    %v249 = vunpack.c.h.b16 %v131
    %v250 = vpack.c.b16 %v190, %v186
    %v251 = vpack.c.b16 %v191, %v187
    %v252 = vpack.c.b16 %v192, %v188
    %v253 = vpack.c.b16 %v193, %v189
    %v254 = vpack.c.b16 %v198, %v194
    %v255 = vpack.c.b16 %v199, %v195
    %v256 = vpack.c.b16 %v200, %v196
    %v257 = vpack.c.b16 %v201, %v197
    %v258 = vpack.c.b16 %v206, %v202
    %v259 = vpack.c.b16 %v207, %v203
    %v260 = vpack.c.b16 %v208, %v204
    %v261 = vpack.c.b16 %v209, %v205
    %v262 = vpack.c.b16 %v214, %v210
    %v263 = vpack.c.b16 %v215, %v211
    %v264 = vpack.c.b16 %v216, %v212
    %v265 = vpack.c.b16 %v217, %v213
    %v266 = vpack.c.b16 %v222, %v218
    %v267 = vpack.c.b16 %v223, %v219
    %v268 = vpack.c.b16 %v224, %v220
    %v269 = vpack.c.b16 %v225, %v221
    %v270 = vpack.c.b16 %v230, %v226
    %v271 = vpack.c.b16 %v231, %v227
    %v272 = vpack.c.b16 %v232, %v228
    %v273 = vpack.c.b16 %v233, %v229
    %v274 = vpack.c.b16 %v238, %v234
    %v275 = vpack.c.b16 %v239, %v235
    %v276 = vpack.c.b16 %v240, %v236
    %v277 = vpack.c.b16 %v241, %v237
    %v278 = vpack.c.b16 %v246, %v242
    %v279 = vpack.c.b16 %v247, %v243
    %v280 = vpack.c.b16 %v248, %v244
    %v281 = vpack.c.b16 %v249, %v245
    %314 = vmatprep.subr.bf16.mxu0 %v251
    %315 = vmatpush1.bf16.msra.mxu0 %v250
    %316 = vmatprep.subr.bf16.mxu0 %v255
    %317 = vmatpush1.bf16.msra.mxu0 %v254
    %318 = vmatprep.subr.bf16.mxu0 %v259
    %319 = vmatpush1.bf16.msra.mxu0 %v258
    %320 = vmatprep.subr.bf16.mxu0 %v263
    %321 = vmatpush1.bf16.msra.mxu0 %v262
    %322 = vmatprep.subr.bf16.mxu0 %v267
    %323 = vmatpush1.bf16.msra.mxu0 %v266
    %324 = vmatprep.subr.bf16.mxu0 %v271
    %325 = vmatpush1.bf16.msra.mxu0 %v270
    %326 = vmatprep.subr.bf16.mxu0 %v275
    %327 = vmatpush1.bf16.msra.mxu0 %v274
    %328 = vmatprep.subr.bf16.mxu0 %v279
    %329 = vmatpush1.bf16.msra.mxu0 %v278
    %330 = vmatprep.subr.bf16.mxu0 0
    %331 = vmatpush1.bf16.msra.mxu0 0
    %332 = vmatprep.subr.bf16.mxu0 0
    %333 = vmatpush1.bf16.msra.mxu0 0
    %334 = vmatprep.subr.bf16.mxu0 0
    %335 = vmatpush1.bf16.msra.mxu0 0
    %336 = vmatprep.subr.bf16.mxu0 0
    %337 = vmatpush1.bf16.msra.mxu0 0
    %338 = vmatprep.subr.bf16.mxu0 0
    %339 = vmatpush1.bf16.msra.mxu0 0
    %340 = vmatprep.subr.bf16.mxu0 0
    %341 = vmatpush1.bf16.msra.mxu0 0
    %342 = vmatprep.subr.bf16.mxu0 0
    %343 = vmatpush1.bf16.msra.mxu0 0
    %344 = vmatprep.subr.bf16.mxu0 0
    %345 = vmatpush1.bf16.msra.mxu0 0
    %346 = vmatprep.mubr.bf16.mxu0 0
    %347 = vmatmul.mubr.bf16.gmra.mrb[0].mxu0 %v99
    %v348 = vpop.f32.mrb[0].mxu0
    %v349 = vadd.f32 %v137, %v348
    %v350 = vpop.f32.mrb[0].mxu0
    %v351 = vadd.f32 %v141, %v350
    %v352 = vpop.f32.mrb[0].mxu0
    %v353 = vadd.f32 %v137, %v352
    %v354 = vpop.f32.mrb[0].mxu0
    %v355 = vadd.f32 %v141, %v354
    %356 = vdwg.mxu0
    %357 = vmatprep.subr.bf16.mxu0 %v253
    %358 = vmatpush1.bf16.msra.mxu0 %v252
    %359 = vmatprep.subr.bf16.mxu0 %v257
    %360 = vmatpush1.bf16.msra.mxu0 %v256
    %361 = vmatprep.subr.bf16.mxu0 %v261
    %362 = vmatpush1.bf16.msra.mxu0 %v260
    %363 = vmatprep.subr.bf16.mxu0 %v265
    %364 = vmatpush1.bf16.msra.mxu0 %v264
    %365 = vmatprep.subr.bf16.mxu0 %v269
    %366 = vmatpush1.bf16.msra.mxu0 %v268
    %367 = vmatprep.subr.bf16.mxu0 %v273
    %368 = vmatpush1.bf16.msra.mxu0 %v272
    %369 = vmatprep.subr.bf16.mxu0 %v277
    %370 = vmatpush1.bf16.msra.mxu0 %v276
    %371 = vmatprep.subr.bf16.mxu0 %v281
    %372 = vmatpush1.bf16.msra.mxu0 %v280
    %373 = vmatprep.subr.bf16.mxu0 0
    %374 = vmatpush1.bf16.msra.mxu0 0
    %375 = vmatprep.subr.bf16.mxu0 0
    %376 = vmatpush1.bf16.msra.mxu0 0
    %377 = vmatprep.subr.bf16.mxu0 0
    %378 = vmatpush1.bf16.msra.mxu0 0
    %379 = vmatprep.subr.bf16.mxu0 0
    %380 = vmatpush1.bf16.msra.mxu0 0
    %381 = vmatprep.subr.bf16.mxu0 0
    %382 = vmatpush1.bf16.msra.mxu0 0
    %383 = vmatprep.subr.bf16.mxu0 0
    %384 = vmatpush1.bf16.msra.mxu0 0
    %385 = vmatprep.subr.bf16.mxu0 0
    %386 = vmatpush1.bf16.msra.mxu0 0
    %387 = vmatprep.subr.bf16.mxu0 0
    %388 = vmatpush1.bf16.msra.mxu0 0
    %389 = vmatprep.mubr.bf16.mxu0 0
    %390 = vmatmul.mubr.bf16.gmra.mrb[0].mxu0 %v99
    %v391 = vpop.f32.mrb[0].mxu0
    %v392 = vadd.f32 %v145, %v391
    %v393 = vpop.f32.mrb[0].mxu0
    %v394 = vadd.f32 %v149, %v393
    %v395 = vpop.f32.mrb[0].mxu0
    %v396 = vadd.f32 %v145, %v395
    %v397 = vpop.f32.mrb[0].mxu0
    %v398 = vadd.f32 %v149, %v397
    %399 = vdwg.mxu0
    %v400 = vmax.f32 %v349, 0.0
    %v401 = vmax.f32 %v351, 0.0
    %v402 = vmax.f32 %v392, 0.0
    %v403 = vmax.f32 %v394, 0.0
    %v404 = vmax.f32 %v353, 0.0
    %v405 = vmax.f32 %v355, 0.0
    %v406 = vmax.f32 %v396, 0.0
    %v407 = vmax.f32 %v398, 0.0
    %v408 = vpack.c.bf16 %v404, %v400
    %v409 = vpack.c.bf16 %v405, %v401
    %v410 = vpack.c.bf16 %v406, %v402
    %v411 = vpack.c.bf16 %v407, %v403
    %v412 = vld [vmem:[#allocation5] sm:$0xff]
    %v413 = vld [vmem:[#allocation5 + $0x8] sm:$0xff]
    %v414 = vld [vmem:[#allocation5 + $0x10] sm:$0xff]
    %v415 = vld [vmem:[#allocation5 + $0x18] sm:$0xff]
    %v416 = vld [vmem:[#allocation5 + $0x20] sm:$0xff]
    %v417 = vld [vmem:[#allocation5 + $0x28] sm:$0xff]
    %v418 = vld [vmem:[#allocation5 + $0x30] sm:$0xff]
    %v419 = vld [vmem:[#allocation5 + $0x38] sm:$0xff]
    %v420 = vld [vmem:[#allocation5 + $0x40] sm:$0xff]
    %v421 = vld [vmem:[#allocation5 + $0x48] sm:$0xff]
    %v422 = vld [vmem:[#allocation5 + $0x50] sm:$0xff]
    %v423 = vld [vmem:[#allocation5 + $0x58] sm:$0xff]
    %v424 = vld [vmem:[#allocation5 + $0x60] sm:$0xff]
    %v425 = vld [vmem:[#allocation5 + $0x68] sm:$0xff]
    %v426 = vld [vmem:[#allocation5 + $0x70] sm:$0xff]
    %v427 = vld [vmem:[#allocation5 + $0x78] sm:$0xff]
    %v428 = vld [vmem:[#allocation5 + $0x80] sm:$0xff]
    %v429 = vld [vmem:[#allocation5 + $0x88] sm:$0xff]
    %v430 = vld [vmem:[#allocation5 + $0x90] sm:$0xff]
    %v431 = vld [vmem:[#allocation5 + $0x98] sm:$0xff]
    %v432 = vld [vmem:[#allocation5 + $0xa0] sm:$0xff]
    %v433 = vld [vmem:[#allocation5 + $0xa8] sm:$0xff]
    %v434 = vld [vmem:[#allocation5 + $0xb0] sm:$0xff]
    %v435 = vld [vmem:[#allocation5 + $0xb8] sm:$0xff]
    %v436 = vld [vmem:[#allocation5 + $0xc0] sm:$0xff]
    %v437 = vld [vmem:[#allocation5 + $0xc8] sm:$0xff]
    %v438 = vld [vmem:[#allocation5 + $0xd0] sm:$0xff]
    %v439 = vld [vmem:[#allocation5 + $0xd8] sm:$0xff]
    %v440 = vld [vmem:[#allocation5 + $0xe0] sm:$0xff]
    %v441 = vld [vmem:[#allocation5 + $0xe8] sm:$0xff]
    %v442 = vld [vmem:[#allocation5 + $0xf0] sm:$0xff]
    %v443 = vld [vmem:[#allocation5 + $0xf8] sm:$0xff]
    %v444 = vld [vmem:[#allocation5 + $0x100] sm:$0xff]
    %v445 = vld [vmem:[#allocation5 + $0x108] sm:$0xff]
    %v446 = vld [vmem:[#allocation5 + $0x110] sm:$0xff]
    %v447 = vld [vmem:[#allocation5 + $0x118] sm:$0xff]
    %v448 = vld [vmem:[#allocation5 + $0x120] sm:$0xff]
    %v449 = vld [vmem:[#allocation5 + $0x128] sm:$0xff]
    %v450 = vld [vmem:[#allocation5 + $0x130] sm:$0xff]
    %v451 = vld [vmem:[#allocation5 + $0x138] sm:$0xff]
    %v452 = vld [vmem:[#allocation5 + $0x140] sm:$0xff]
    %v453 = vld [vmem:[#allocation5 + $0x148] sm:$0xff]
    %v454 = vld [vmem:[#allocation5 + $0x150] sm:$0xff]
    %v455 = vld [vmem:[#allocation5 + $0x158] sm:$0xff]
    %v456 = vld [vmem:[#allocation5 + $0x160] sm:$0xff]
    %v457 = vld [vmem:[#allocation5 + $0x168] sm:$0xff]
    %v458 = vld [vmem:[#allocation5 + $0x170] sm:$0xff]
    %v459 = vld [vmem:[#allocation5 + $0x178] sm:$0xff]
    %v460 = vld [vmem:[#allocation5 + $0x180] sm:$0xff]
    %v461 = vld [vmem:[#allocation5 + $0x188] sm:$0xff]
    %v462 = vld [vmem:[#allocation5 + $0x190] sm:$0xff]
    %v463 = vld [vmem:[#allocation5 + $0x198] sm:$0xff]
    %v464 = vld [vmem:[#allocation5 + $0x1a0] sm:$0xff]
    %v465 = vld [vmem:[#allocation5 + $0x1a8] sm:$0xff]
    %v466 = vld [vmem:[#allocation5 + $0x1b0] sm:$0xff]
    %v467 = vld [vmem:[#allocation5 + $0x1b8] sm:$0xff]
    %v468 = vld [vmem:[#allocation5 + $0x1c0] sm:$0xff]
    %v469 = vld [vmem:[#allocation5 + $0x1c8] sm:$0xff]
    %v470 = vld [vmem:[#allocation5 + $0x1d0] sm:$0xff]
    %v471 = vld [vmem:[#allocation5 + $0x1d8] sm:$0xff]
    %v472 = vld [vmem:[#allocation5 + $0x1e0] sm:$0xff]
    %v473 = vld [vmem:[#allocation5 + $0x1e8] sm:$0xff]
    %v474 = vld [vmem:[#allocation5 + $0x1f0] sm:$0xff]
    %v475 = vld [vmem:[#allocation5 + $0x1f8] sm:$0xff]
    %v476 = vld [vmem:[#allocation5 + $0x200] sm:$0xff]
    %v477 = vld [vmem:[#allocation5 + $0x208] sm:$0xff]
    %v478 = vld [vmem:[#allocation5 + $0x210] sm:$0xff]
    %v479 = vld [vmem:[#allocation5 + $0x218] sm:$0xff]
    %v480 = vld [vmem:[#allocation5 + $0x220] sm:$0xff]
    %v481 = vld [vmem:[#allocation5 + $0x228] sm:$0xff]
    %v482 = vld [vmem:[#allocation5 + $0x230] sm:$0xff]
    %v483 = vld [vmem:[#allocation5 + $0x238] sm:$0xff]
    %v484 = vld [vmem:[#allocation5 + $0x240] sm:$0xff]
    %v485 = vld [vmem:[#allocation5 + $0x248] sm:$0xff]
    %v486 = vld [vmem:[#allocation5 + $0x250] sm:$0xff]
    %v487 = vld [vmem:[#allocation5 + $0x258] sm:$0xff]
    %v488 = vld [vmem:[#allocation5 + $0x260] sm:$0xff]
    %v489 = vld [vmem:[#allocation5 + $0x268] sm:$0xff]
    %v490 = vld [vmem:[#allocation5 + $0x270] sm:$0xff]
    %v491 = vld [vmem:[#allocation5 + $0x278] sm:$0xff]
    %v492 = vld [vmem:[#allocation5 + $0x280] sm:$0xff]
    %v493 = vld [vmem:[#allocation5 + $0x288] sm:$0xff]
    %v494 = vld [vmem:[#allocation5 + $0x290] sm:$0xff]
    %v495 = vld [vmem:[#allocation5 + $0x298] sm:$0xff]
    %v496 = vld [vmem:[#allocation5 + $0x2a0] sm:$0xff]
    %v497 = vld [vmem:[#allocation5 + $0x2a8] sm:$0xff]
    %v498 = vld [vmem:[#allocation5 + $0x2b0] sm:$0xff]
    %v499 = vld [vmem:[#allocation5 + $0x2b8] sm:$0xff]
    %v500 = vld [vmem:[#allocation5 + $0x2c0] sm:$0xff]
    %v501 = vld [vmem:[#allocation5 + $0x2c8] sm:$0xff]
    %v502 = vld [vmem:[#allocation5 + $0x2d0] sm:$0xff]
    %v503 = vld [vmem:[#allocation5 + $0x2d8] sm:$0xff]
    %v504 = vld [vmem:[#allocation5 + $0x2e0] sm:$0xff]
    %v505 = vld [vmem:[#allocation5 + $0x2e8] sm:$0xff]
    %v506 = vld [vmem:[#allocation5 + $0x2f0] sm:$0xff]
    %v507 = vld [vmem:[#allocation5 + $0x2f8] sm:$0xff]
    %v508 = vld [vmem:[#allocation5 + $0x300] sm:$0xff]
    %v509 = vld [vmem:[#allocation5 + $0x308] sm:$0xff]
    %v510 = vld [vmem:[#allocation5 + $0x310] sm:$0xff]
    %v511 = vld [vmem:[#allocation5 + $0x318] sm:$0xff]
    %v512 = vld [vmem:[#allocation5 + $0x320] sm:$0xff]
    %v513 = vld [vmem:[#allocation5 + $0x328] sm:$0xff]
    %v514 = vld [vmem:[#allocation5 + $0x330] sm:$0xff]
    %v515 = vld [vmem:[#allocation5 + $0x338] sm:$0xff]
    %v516 = vld [vmem:[#allocation5 + $0x340] sm:$0xff]
    %v517 = vld [vmem:[#allocation5 + $0x348] sm:$0xff]
    %v518 = vld [vmem:[#allocation5 + $0x350] sm:$0xff]
    %v519 = vld [vmem:[#allocation5 + $0x358] sm:$0xff]
    %v520 = vld [vmem:[#allocation5 + $0x360] sm:$0xff]
    %v521 = vld [vmem:[#allocation5 + $0x368] sm:$0xff]
    %v522 = vld [vmem:[#allocation5 + $0x370] sm:$0xff]
    %v523 = vld [vmem:[#allocation5 + $0x378] sm:$0xff]
    %v524 = vld [vmem:[#allocation5 + $0x380] sm:$0xff]
    %v525 = vld [vmem:[#allocation5 + $0x388] sm:$0xff]
    %v526 = vld [vmem:[#allocation5 + $0x390] sm:$0xff]
    %v527 = vld [vmem:[#allocation5 + $0x398] sm:$0xff]
    %v528 = vld [vmem:[#allocation5 + $0x3a0] sm:$0xff]
    %v529 = vld [vmem:[#allocation5 + $0x3a8] sm:$0xff]
    %v530 = vld [vmem:[#allocation5 + $0x3b0] sm:$0xff]
    %v531 = vld [vmem:[#allocation5 + $0x3b8] sm:$0xff]
    %v532 = vld [vmem:[#allocation5 + $0x3c0] sm:$0xff]
    %v533 = vld [vmem:[#allocation5 + $0x3c8] sm:$0xff]
    %v534 = vld [vmem:[#allocation5 + $0x3d0] sm:$0xff]
    %v535 = vld [vmem:[#allocation5 + $0x3d8] sm:$0xff]
    %v536 = vld [vmem:[#allocation5 + $0x3e0] sm:$0xff]
    %v537 = vld [vmem:[#allocation5 + $0x3e8] sm:$0xff]
    %v538 = vld [vmem:[#allocation5 + $0x3f0] sm:$0xff]
    %v539 = vld [vmem:[#allocation5 + $0x3f8] sm:$0xff]
    %v540 = vld [vmem:[%s4] sm:$0xf]
    %v542 = vlaneseq
    %v543 = vshrl.u32 %v542, 7
    %v544 = vsub.s32 0, %v543
    %v545 = vrot.slane %v540, %v544
    %v546 = vlaneseq
    %v547 = vshrl.u32 %v546, 7
    %v548 = vsub.s32 1, %v547
    %v549 = vrot.slane %v540, %v548
    %v550 = vlaneseq
    %v551 = vshrl.u32 %v550, 7
    %v552 = vsub.s32 2, %v551
    %v553 = vrot.slane %v540, %v552
    %v554 = vlaneseq
    %v555 = vshrl.u32 %v554, 7
    %v556 = vsub.s32 3, %v555
    %v557 = vrot.slane %v540, %v556
    %v690 = vunpack.c.l.b16 %v412
    %v691 = vunpack.c.h.b16 %v412
    %v692 = vunpack.c.l.b16 %v413
    %v693 = vunpack.c.h.b16 %v413
    %v694 = vunpack.c.l.b16 %v414
    %v695 = vunpack.c.h.b16 %v414
    %v696 = vunpack.c.l.b16 %v415
    %v697 = vunpack.c.h.b16 %v415
    %v698 = vunpack.c.l.b16 %v416
    %v699 = vunpack.c.h.b16 %v416
    %v700 = vunpack.c.l.b16 %v417
    %v701 = vunpack.c.h.b16 %v417
    %v702 = vunpack.c.l.b16 %v418
    %v703 = vunpack.c.h.b16 %v418
    %v704 = vunpack.c.l.b16 %v419
    %v705 = vunpack.c.h.b16 %v419
    %v706 = vunpack.c.l.b16 %v420
    %v707 = vunpack.c.h.b16 %v420
    %v708 = vunpack.c.l.b16 %v421
    %v709 = vunpack.c.h.b16 %v421
    %v710 = vunpack.c.l.b16 %v422
    %v711 = vunpack.c.h.b16 %v422
    %v712 = vunpack.c.l.b16 %v423
    %v713 = vunpack.c.h.b16 %v423
    %v714 = vunpack.c.l.b16 %v424
    %v715 = vunpack.c.h.b16 %v424
    %v716 = vunpack.c.l.b16 %v425
    %v717 = vunpack.c.h.b16 %v425
    %v718 = vunpack.c.l.b16 %v426
    %v719 = vunpack.c.h.b16 %v426
    %v720 = vunpack.c.l.b16 %v427
    %v721 = vunpack.c.h.b16 %v427
    %v722 = vunpack.c.l.b16 %v428
    %v723 = vunpack.c.h.b16 %v428
    %v724 = vunpack.c.l.b16 %v429
    %v725 = vunpack.c.h.b16 %v429
    %v726 = vunpack.c.l.b16 %v430
    %v727 = vunpack.c.h.b16 %v430
    %v728 = vunpack.c.l.b16 %v431
    %v729 = vunpack.c.h.b16 %v431
    %v730 = vunpack.c.l.b16 %v432
    %v731 = vunpack.c.h.b16 %v432
    %v732 = vunpack.c.l.b16 %v433
    %v733 = vunpack.c.h.b16 %v433
    %v734 = vunpack.c.l.b16 %v434
    %v735 = vunpack.c.h.b16 %v434
    %v736 = vunpack.c.l.b16 %v435
    %v737 = vunpack.c.h.b16 %v435
    %v738 = vunpack.c.l.b16 %v436
    %v739 = vunpack.c.h.b16 %v436
    %v740 = vunpack.c.l.b16 %v437
    %v741 = vunpack.c.h.b16 %v437
    %v742 = vunpack.c.l.b16 %v438
    %v743 = vunpack.c.h.b16 %v438
    %v744 = vunpack.c.l.b16 %v439
    %v745 = vunpack.c.h.b16 %v439
    %v746 = vunpack.c.l.b16 %v440
    %v747 = vunpack.c.h.b16 %v440
    %v748 = vunpack.c.l.b16 %v441
    %v749 = vunpack.c.h.b16 %v441
    %v750 = vunpack.c.l.b16 %v442
    %v751 = vunpack.c.h.b16 %v442
    %v752 = vunpack.c.l.b16 %v443
    %v753 = vunpack.c.h.b16 %v443
    %v754 = vunpack.c.l.b16 %v444
    %v755 = vunpack.c.h.b16 %v444
    %v756 = vunpack.c.l.b16 %v445
    %v757 = vunpack.c.h.b16 %v445
    %v758 = vunpack.c.l.b16 %v446
    %v759 = vunpack.c.h.b16 %v446
    %v760 = vunpack.c.l.b16 %v447
    %v761 = vunpack.c.h.b16 %v447
    %v762 = vunpack.c.l.b16 %v448
    %v763 = vunpack.c.h.b16 %v448
    %v764 = vunpack.c.l.b16 %v449
    %v765 = vunpack.c.h.b16 %v449
    %v766 = vunpack.c.l.b16 %v450
    %v767 = vunpack.c.h.b16 %v450
    %v768 = vunpack.c.l.b16 %v451
    %v769 = vunpack.c.h.b16 %v451
    %v770 = vunpack.c.l.b16 %v452
    %v771 = vunpack.c.h.b16 %v452
    %v772 = vunpack.c.l.b16 %v453
    %v773 = vunpack.c.h.b16 %v453
    %v774 = vunpack.c.l.b16 %v454
    %v775 = vunpack.c.h.b16 %v454
    %v776 = vunpack.c.l.b16 %v455
    %v777 = vunpack.c.h.b16 %v455
    %v778 = vunpack.c.l.b16 %v456
    %v779 = vunpack.c.h.b16 %v456
    %v780 = vunpack.c.l.b16 %v457
    %v781 = vunpack.c.h.b16 %v457
    %v782 = vunpack.c.l.b16 %v458
    %v783 = vunpack.c.h.b16 %v458
    %v784 = vunpack.c.l.b16 %v459
    %v785 = vunpack.c.h.b16 %v459
    %v786 = vunpack.c.l.b16 %v460
    %v787 = vunpack.c.h.b16 %v460
    %v788 = vunpack.c.l.b16 %v461
    %v789 = vunpack.c.h.b16 %v461
    %v790 = vunpack.c.l.b16 %v462
    %v791 = vunpack.c.h.b16 %v462
    %v792 = vunpack.c.l.b16 %v463
    %v793 = vunpack.c.h.b16 %v463
    %v794 = vunpack.c.l.b16 %v464
    %v795 = vunpack.c.h.b16 %v464
    %v796 = vunpack.c.l.b16 %v465
    %v797 = vunpack.c.h.b16 %v465
    %v798 = vunpack.c.l.b16 %v466
    %v799 = vunpack.c.h.b16 %v466
    %v800 = vunpack.c.l.b16 %v467
    %v801 = vunpack.c.h.b16 %v467
    %v802 = vunpack.c.l.b16 %v468
    %v803 = vunpack.c.h.b16 %v468
    %v804 = vunpack.c.l.b16 %v469
    %v805 = vunpack.c.h.b16 %v469
    %v806 = vunpack.c.l.b16 %v470
    %v807 = vunpack.c.h.b16 %v470
    %v808 = vunpack.c.l.b16 %v471
    %v809 = vunpack.c.h.b16 %v471
    %v810 = vunpack.c.l.b16 %v472
    %v811 = vunpack.c.h.b16 %v472
    %v812 = vunpack.c.l.b16 %v473
    %v813 = vunpack.c.h.b16 %v473
    %v814 = vunpack.c.l.b16 %v474
    %v815 = vunpack.c.h.b16 %v474
    %v816 = vunpack.c.l.b16 %v475
    %v817 = vunpack.c.h.b16 %v475
    %v818 = vunpack.c.l.b16 %v476
    %v819 = vunpack.c.h.b16 %v476
    %v820 = vunpack.c.l.b16 %v477
    %v821 = vunpack.c.h.b16 %v477
    %v822 = vunpack.c.l.b16 %v478
    %v823 = vunpack.c.h.b16 %v478
    %v824 = vunpack.c.l.b16 %v479
    %v825 = vunpack.c.h.b16 %v479
    %v826 = vunpack.c.l.b16 %v480
    %v827 = vunpack.c.h.b16 %v480
    %v828 = vunpack.c.l.b16 %v481
    %v829 = vunpack.c.h.b16 %v481
    %v830 = vunpack.c.l.b16 %v482
    %v831 = vunpack.c.h.b16 %v482
    %v832 = vunpack.c.l.b16 %v483
    %v833 = vunpack.c.h.b16 %v483
    %v834 = vunpack.c.l.b16 %v484
    %v835 = vunpack.c.h.b16 %v484
    %v836 = vunpack.c.l.b16 %v485
    %v837 = vunpack.c.h.b16 %v485
    %v838 = vunpack.c.l.b16 %v486
    %v839 = vunpack.c.h.b16 %v486
    %v840 = vunpack.c.l.b16 %v487
    %v841 = vunpack.c.h.b16 %v487
    %v842 = vunpack.c.l.b16 %v488
    %v843 = vunpack.c.h.b16 %v488
    %v844 = vunpack.c.l.b16 %v489
    %v845 = vunpack.c.h.b16 %v489
    %v846 = vunpack.c.l.b16 %v490
    %v847 = vunpack.c.h.b16 %v490
    %v848 = vunpack.c.l.b16 %v491
    %v849 = vunpack.c.h.b16 %v491
    %v850 = vunpack.c.l.b16 %v492
    %v851 = vunpack.c.h.b16 %v492
    %v852 = vunpack.c.l.b16 %v493
    %v853 = vunpack.c.h.b16 %v493
    %v854 = vunpack.c.l.b16 %v494
    %v855 = vunpack.c.h.b16 %v494
    %v856 = vunpack.c.l.b16 %v495
    %v857 = vunpack.c.h.b16 %v495
    %v858 = vunpack.c.l.b16 %v496
    %v859 = vunpack.c.h.b16 %v496
    %v860 = vunpack.c.l.b16 %v497
    %v861 = vunpack.c.h.b16 %v497
    %v862 = vunpack.c.l.b16 %v498
    %v863 = vunpack.c.h.b16 %v498
    %v864 = vunpack.c.l.b16 %v499
    %v865 = vunpack.c.h.b16 %v499
    %v866 = vunpack.c.l.b16 %v500
    %v867 = vunpack.c.h.b16 %v500
    %v868 = vunpack.c.l.b16 %v501
    %v869 = vunpack.c.h.b16 %v501
    %v870 = vunpack.c.l.b16 %v502
    %v871 = vunpack.c.h.b16 %v502
    %v872 = vunpack.c.l.b16 %v503
    %v873 = vunpack.c.h.b16 %v503
    %v874 = vunpack.c.l.b16 %v504
    %v875 = vunpack.c.h.b16 %v504
    %v876 = vunpack.c.l.b16 %v505
    %v877 = vunpack.c.h.b16 %v505
    %v878 = vunpack.c.l.b16 %v506
    %v879 = vunpack.c.h.b16 %v506
    %v880 = vunpack.c.l.b16 %v507
    %v881 = vunpack.c.h.b16 %v507
    %v882 = vunpack.c.l.b16 %v508
    %v883 = vunpack.c.h.b16 %v508
    %v884 = vunpack.c.l.b16 %v509
    %v885 = vunpack.c.h.b16 %v509
    %v886 = vunpack.c.l.b16 %v510
    %v887 = vunpack.c.h.b16 %v510
    %v888 = vunpack.c.l.b16 %v511
    %v889 = vunpack.c.h.b16 %v511
    %v890 = vunpack.c.l.b16 %v512
    %v891 = vunpack.c.h.b16 %v512
    %v892 = vunpack.c.l.b16 %v513
    %v893 = vunpack.c.h.b16 %v513
    %v894 = vunpack.c.l.b16 %v514
    %v895 = vunpack.c.h.b16 %v514
    %v896 = vunpack.c.l.b16 %v515
    %v897 = vunpack.c.h.b16 %v515
    %v898 = vunpack.c.l.b16 %v516
    %v899 = vunpack.c.h.b16 %v516
    %v900 = vunpack.c.l.b16 %v517
    %v901 = vunpack.c.h.b16 %v517
    %v902 = vunpack.c.l.b16 %v518
    %v903 = vunpack.c.h.b16 %v518
    %v904 = vunpack.c.l.b16 %v519
    %v905 = vunpack.c.h.b16 %v519
    %v906 = vunpack.c.l.b16 %v520
    %v907 = vunpack.c.h.b16 %v520
    %v908 = vunpack.c.l.b16 %v521
    %v909 = vunpack.c.h.b16 %v521
    %v910 = vunpack.c.l.b16 %v522
    %v911 = vunpack.c.h.b16 %v522
    %v912 = vunpack.c.l.b16 %v523
    %v913 = vunpack.c.h.b16 %v523
    %v914 = vunpack.c.l.b16 %v524
    %v915 = vunpack.c.h.b16 %v524
    %v916 = vunpack.c.l.b16 %v525
    %v917 = vunpack.c.h.b16 %v525
    %v918 = vunpack.c.l.b16 %v526
    %v919 = vunpack.c.h.b16 %v526
    %v920 = vunpack.c.l.b16 %v527
    %v921 = vunpack.c.h.b16 %v527
    %v922 = vunpack.c.l.b16 %v528
    %v923 = vunpack.c.h.b16 %v528
    %v924 = vunpack.c.l.b16 %v529
    %v925 = vunpack.c.h.b16 %v529
    %v926 = vunpack.c.l.b16 %v530
    %v927 = vunpack.c.h.b16 %v530
    %v928 = vunpack.c.l.b16 %v531
    %v929 = vunpack.c.h.b16 %v531
    %v930 = vunpack.c.l.b16 %v532
    %v931 = vunpack.c.h.b16 %v532
    %v932 = vunpack.c.l.b16 %v533
    %v933 = vunpack.c.h.b16 %v533
    %v934 = vunpack.c.l.b16 %v534
    %v935 = vunpack.c.h.b16 %v534
    %v936 = vunpack.c.l.b16 %v535
    %v937 = vunpack.c.h.b16 %v535
    %v938 = vunpack.c.l.b16 %v536
    %v939 = vunpack.c.h.b16 %v536
    %v940 = vunpack.c.l.b16 %v537
    %v941 = vunpack.c.h.b16 %v537
    %v942 = vunpack.c.l.b16 %v538
    %v943 = vunpack.c.h.b16 %v538
    %v944 = vunpack.c.l.b16 %v539
    %v945 = vunpack.c.h.b16 %v539
    %v946 = vpack.c.b16 %v694, %v690
    %v947 = vpack.c.b16 %v695, %v691
    %v948 = vpack.c.b16 %v696, %v692
    %v949 = vpack.c.b16 %v697, %v693
    %v950 = vpack.c.b16 %v702, %v698
    %v951 = vpack.c.b16 %v703, %v699
    %v952 = vpack.c.b16 %v704, %v700
    %v953 = vpack.c.b16 %v705, %v701
    %v954 = vpack.c.b16 %v710, %v706
    %v955 = vpack.c.b16 %v711, %v707
    %v956 = vpack.c.b16 %v712, %v708
    %v957 = vpack.c.b16 %v713, %v709
    %v958 = vpack.c.b16 %v718, %v714
    %v959 = vpack.c.b16 %v719, %v715
    %v960 = vpack.c.b16 %v720, %v716
    %v961 = vpack.c.b16 %v721, %v717
    %v962 = vpack.c.b16 %v726, %v722
    %v963 = vpack.c.b16 %v727, %v723
    %v964 = vpack.c.b16 %v728, %v724
    %v965 = vpack.c.b16 %v729, %v725
    %v966 = vpack.c.b16 %v734, %v730
    %v967 = vpack.c.b16 %v735, %v731
    %v968 = vpack.c.b16 %v736, %v732
    %v969 = vpack.c.b16 %v737, %v733
    %v970 = vpack.c.b16 %v742, %v738
    %v971 = vpack.c.b16 %v743, %v739
    %v972 = vpack.c.b16 %v744, %v740
    %v973 = vpack.c.b16 %v745, %v741
    %v974 = vpack.c.b16 %v750, %v746
    %v975 = vpack.c.b16 %v751, %v747
    %v976 = vpack.c.b16 %v752, %v748
    %v977 = vpack.c.b16 %v753, %v749
    %v978 = vpack.c.b16 %v758, %v754
    %v979 = vpack.c.b16 %v759, %v755
    %v980 = vpack.c.b16 %v760, %v756
    %v981 = vpack.c.b16 %v761, %v757
    %v982 = vpack.c.b16 %v766, %v762
    %v983 = vpack.c.b16 %v767, %v763
    %v984 = vpack.c.b16 %v768, %v764
    %v985 = vpack.c.b16 %v769, %v765
    %v986 = vpack.c.b16 %v774, %v770
    %v987 = vpack.c.b16 %v775, %v771
    %v988 = vpack.c.b16 %v776, %v772
    %v989 = vpack.c.b16 %v777, %v773
    %v990 = vpack.c.b16 %v782, %v778
    %v991 = vpack.c.b16 %v783, %v779
    %v992 = vpack.c.b16 %v784, %v780
    %v993 = vpack.c.b16 %v785, %v781
    %v994 = vpack.c.b16 %v790, %v786
    %v995 = vpack.c.b16 %v791, %v787
    %v996 = vpack.c.b16 %v792, %v788
    %v997 = vpack.c.b16 %v793, %v789
    %v998 = vpack.c.b16 %v798, %v794
    %v999 = vpack.c.b16 %v799, %v795
    %v1000 = vpack.c.b16 %v800, %v796
    %v1001 = vpack.c.b16 %v801, %v797
    %v1002 = vpack.c.b16 %v806, %v802
    %v1003 = vpack.c.b16 %v807, %v803
    %v1004 = vpack.c.b16 %v808, %v804
    %v1005 = vpack.c.b16 %v809, %v805
    %v1006 = vpack.c.b16 %v814, %v810
    %v1007 = vpack.c.b16 %v815, %v811
    %v1008 = vpack.c.b16 %v816, %v812
    %v1009 = vpack.c.b16 %v817, %v813
    %v1010 = vpack.c.b16 %v822, %v818
    %v1011 = vpack.c.b16 %v823, %v819
    %v1012 = vpack.c.b16 %v824, %v820
    %v1013 = vpack.c.b16 %v825, %v821
    %v1014 = vpack.c.b16 %v830, %v826
    %v1015 = vpack.c.b16 %v831, %v827
    %v1016 = vpack.c.b16 %v832, %v828
    %v1017 = vpack.c.b16 %v833, %v829
    %v1018 = vpack.c.b16 %v838, %v834
    %v1019 = vpack.c.b16 %v839, %v835
    %v1020 = vpack.c.b16 %v840, %v836
    %v1021 = vpack.c.b16 %v841, %v837
    %v1022 = vpack.c.b16 %v846, %v842
    %v1023 = vpack.c.b16 %v847, %v843
    %v1024 = vpack.c.b16 %v848, %v844
    %v1025 = vpack.c.b16 %v849, %v845
    %v1026 = vpack.c.b16 %v854, %v850
    %v1027 = vpack.c.b16 %v855, %v851
    %v1028 = vpack.c.b16 %v856, %v852
    %v1029 = vpack.c.b16 %v857, %v853
    %v1030 = vpack.c.b16 %v862, %v858
    %v1031 = vpack.c.b16 %v863, %v859
    %v1032 = vpack.c.b16 %v864, %v860
    %v1033 = vpack.c.b16 %v865, %v861
    %v1034 = vpack.c.b16 %v870, %v866
    %v1035 = vpack.c.b16 %v871, %v867
    %v1036 = vpack.c.b16 %v872, %v868
    %v1037 = vpack.c.b16 %v873, %v869
    %v1038 = vpack.c.b16 %v878, %v874
    %v1039 = vpack.c.b16 %v879, %v875
    %v1040 = vpack.c.b16 %v880, %v876
    %v1041 = vpack.c.b16 %v881, %v877
    %v1042 = vpack.c.b16 %v886, %v882
    %v1043 = vpack.c.b16 %v887, %v883
    %v1044 = vpack.c.b16 %v888, %v884
    %v1045 = vpack.c.b16 %v889, %v885
    %v1046 = vpack.c.b16 %v894, %v890
    %v1047 = vpack.c.b16 %v895, %v891
    %v1048 = vpack.c.b16 %v896, %v892
    %v1049 = vpack.c.b16 %v897, %v893
    %v1050 = vpack.c.b16 %v902, %v898
    %v1051 = vpack.c.b16 %v903, %v899
    %v1052 = vpack.c.b16 %v904, %v900
    %v1053 = vpack.c.b16 %v905, %v901
    %v1054 = vpack.c.b16 %v910, %v906
    %v1055 = vpack.c.b16 %v911, %v907
    %v1056 = vpack.c.b16 %v912, %v908
    %v1057 = vpack.c.b16 %v913, %v909
    %v1058 = vpack.c.b16 %v918, %v914
    %v1059 = vpack.c.b16 %v919, %v915
    %v1060 = vpack.c.b16 %v920, %v916
    %v1061 = vpack.c.b16 %v921, %v917
    %v1062 = vpack.c.b16 %v926, %v922
    %v1063 = vpack.c.b16 %v927, %v923
    %v1064 = vpack.c.b16 %v928, %v924
    %v1065 = vpack.c.b16 %v929, %v925
    %v1066 = vpack.c.b16 %v934, %v930
    %v1067 = vpack.c.b16 %v935, %v931
    %v1068 = vpack.c.b16 %v936, %v932
    %v1069 = vpack.c.b16 %v937, %v933
    %v1070 = vpack.c.b16 %v942, %v938
    %v1071 = vpack.c.b16 %v943, %v939
    %v1072 = vpack.c.b16 %v944, %v940
    %v1073 = vpack.c.b16 %v945, %v941
    %1202 = vmatprep.subr.bf16.mxu0 %v947
    %1203 = vmatpush1.bf16.msra.mxu0 %v946
    %1204 = vmatprep.subr.bf16.mxu0 %v951
    %1205 = vmatpush1.bf16.msra.mxu0 %v950
    %1206 = vmatprep.subr.bf16.mxu0 %v955
    %1207 = vmatpush1.bf16.msra.mxu0 %v954
    %1208 = vmatprep.subr.bf16.mxu0 %v959
    %1209 = vmatpush1.bf16.msra.mxu0 %v958
    %1210 = vmatprep.subr.bf16.mxu0 %v963
    %1211 = vmatpush1.bf16.msra.mxu0 %v962
    %1212 = vmatprep.subr.bf16.mxu0 %v967
    %1213 = vmatpush1.bf16.msra.mxu0 %v966
    %1214 = vmatprep.subr.bf16.mxu0 %v971
    %1215 = vmatpush1.bf16.msra.mxu0 %v970
    %1216 = vmatprep.subr.bf16.mxu0 %v975
    %1217 = vmatpush1.bf16.msra.mxu0 %v974
    %1218 = vmatprep.subr.bf16.mxu0 %v979
    %1219 = vmatpush1.bf16.msra.mxu0 %v978
    %1220 = vmatprep.subr.bf16.mxu0 %v983
    %1221 = vmatpush1.bf16.msra.mxu0 %v982
    %1222 = vmatprep.subr.bf16.mxu0 %v987
    %1223 = vmatpush1.bf16.msra.mxu0 %v986
    %1224 = vmatprep.subr.bf16.mxu0 %v991
    %1225 = vmatpush1.bf16.msra.mxu0 %v990
    %1226 = vmatprep.subr.bf16.mxu0 %v995
    %1227 = vmatpush1.bf16.msra.mxu0 %v994
    %1228 = vmatprep.subr.bf16.mxu0 %v999
    %1229 = vmatpush1.bf16.msra.mxu0 %v998
    %1230 = vmatprep.subr.bf16.mxu0 %v1003
    %1231 = vmatpush1.bf16.msra.mxu0 %v1002
    %1232 = vmatprep.subr.bf16.mxu0 %v1007
    %1233 = vmatpush1.bf16.msra.mxu0 %v1006
    %1234 = vmatprep.mubr.bf16.mxu0 %v409
    %1235 = vmatmul.mubr.bf16.gmra.mrb[0].mxu0 %v408
    %v1236 = vpop.f32.mrb[0].mxu0
    %v1237 = vadd.f32 %v545, %v1236
    %v1238 = vpop.f32.mrb[0].mxu0
    %v1239 = vadd.f32 %v549, %v1238
    %v1240 = vpop.f32.mrb[0].mxu0
    %v1241 = vadd.f32 %v545, %v1240
    %v1242 = vpop.f32.mrb[0].mxu0
    %v1243 = vadd.f32 %v549, %v1242
    %1244 = vdwg.mxu0
    %1245 = vmatprep.subr.bf16.mxu0 %v1011
    %1246 = vmatpush1.bf16.msra.mxu0 %v1010
    %1247 = vmatprep.subr.bf16.mxu0 %v1015
    %1248 = vmatpush1.bf16.msra.mxu0 %v1014
    %1249 = vmatprep.subr.bf16.mxu0 %v1019
    %1250 = vmatpush1.bf16.msra.mxu0 %v1018
    %1251 = vmatprep.subr.bf16.mxu0 %v1023
    %1252 = vmatpush1.bf16.msra.mxu0 %v1022
    %1253 = vmatprep.subr.bf16.mxu0 %v1027
    %1254 = vmatpush1.bf16.msra.mxu0 %v1026
    %1255 = vmatprep.subr.bf16.mxu0 %v1031
    %1256 = vmatpush1.bf16.msra.mxu0 %v1030
    %1257 = vmatprep.subr.bf16.mxu0 %v1035
    %1258 = vmatpush1.bf16.msra.mxu0 %v1034
    %1259 = vmatprep.subr.bf16.mxu0 %v1039
    %1260 = vmatpush1.bf16.msra.mxu0 %v1038
    %1261 = vmatprep.subr.bf16.mxu0 %v1043
    %1262 = vmatpush1.bf16.msra.mxu0 %v1042
    %1263 = vmatprep.subr.bf16.mxu0 %v1047
    %1264 = vmatpush1.bf16.msra.mxu0 %v1046
    %1265 = vmatprep.subr.bf16.mxu0 %v1051
    %1266 = vmatpush1.bf16.msra.mxu0 %v1050
    %1267 = vmatprep.subr.bf16.mxu0 %v1055
    %1268 = vmatpush1.bf16.msra.mxu0 %v1054
    %1269 = vmatprep.subr.bf16.mxu0 %v1059
    %1270 = vmatpush1.bf16.msra.mxu0 %v1058
    %1271 = vmatprep.subr.bf16.mxu0 %v1063
    %1272 = vmatpush1.bf16.msra.mxu0 %v1062
    %1273 = vmatprep.subr.bf16.mxu0 %v1067
    %1274 = vmatpush1.bf16.msra.mxu0 %v1066
    %1275 = vmatprep.subr.bf16.mxu0 %v1071
    %1276 = vmatpush1.bf16.msra.mxu0 %v1070
    %1277 = vmatprep.mubr.bf16.mxu0 %v411
    %1278 = vmatmul.mubr.bf16.gmra.mrb[0].mxu0 %v410
    %v1279 = vpop.f32.mrb[0].mxu0
    %v1280 = vadd.f32 %v1237, %v1279
    %v1281 = vpop.f32.mrb[0].mxu0
    %v1282 = vadd.f32 %v1239, %v1281
    %v1283 = vpop.f32.mrb[0].mxu0
    %v1284 = vadd.f32 %v1241, %v1283
    %v1285 = vpop.f32.mrb[0].mxu0
    %v1286 = vadd.f32 %v1243, %v1285
    %1287 = vdwg.mxu0
    %1288 = vmatprep.subr.bf16.mxu0 %v949
    %1289 = vmatpush1.bf16.msra.mxu0 %v948
    %1290 = vmatprep.subr.bf16.mxu0 %v953
    %1291 = vmatpush1.bf16.msra.mxu0 %v952
    %1292 = vmatprep.subr.bf16.mxu0 %v957
    %1293 = vmatpush1.bf16.msra.mxu0 %v956
    %1294 = vmatprep.subr.bf16.mxu0 %v961
    %1295 = vmatpush1.bf16.msra.mxu0 %v960
    %1296 = vmatprep.subr.bf16.mxu0 %v965
    %1297 = vmatpush1.bf16.msra.mxu0 %v964
    %1298 = vmatprep.subr.bf16.mxu0 %v969
    %1299 = vmatpush1.bf16.msra.mxu0 %v968
    %1300 = vmatprep.subr.bf16.mxu0 %v973
    %1301 = vmatpush1.bf16.msra.mxu0 %v972
    %1302 = vmatprep.subr.bf16.mxu0 %v977
    %1303 = vmatpush1.bf16.msra.mxu0 %v976
    %1304 = vmatprep.subr.bf16.mxu0 %v981
    %1305 = vmatpush1.bf16.msra.mxu0 %v980
    %1306 = vmatprep.subr.bf16.mxu0 %v985
    %1307 = vmatpush1.bf16.msra.mxu0 %v984
    %1308 = vmatprep.subr.bf16.mxu0 %v989
    %1309 = vmatpush1.bf16.msra.mxu0 %v988
    %1310 = vmatprep.subr.bf16.mxu0 %v993
    %1311 = vmatpush1.bf16.msra.mxu0 %v992
    %1312 = vmatprep.subr.bf16.mxu0 %v997
    %1313 = vmatpush1.bf16.msra.mxu0 %v996
    %1314 = vmatprep.subr.bf16.mxu0 %v1001
    %1315 = vmatpush1.bf16.msra.mxu0 %v1000
    %1316 = vmatprep.subr.bf16.mxu0 %v1005
    %1317 = vmatpush1.bf16.msra.mxu0 %v1004
    %1318 = vmatprep.subr.bf16.mxu0 %v1009
    %1319 = vmatpush1.bf16.msra.mxu0 %v1008
    %1320 = vmatprep.mubr.bf16.mxu0 %v409
    %1321 = vmatmul.mubr.bf16.gmra.mrb[0].mxu0 %v408
    %v1322 = vpop.f32.mrb[0].mxu0
    %v1323 = vadd.f32 %v553, %v1322
    %v1324 = vpop.f32.mrb[0].mxu0
    %v1325 = vadd.f32 %v557, %v1324
    %v1326 = vpop.f32.mrb[0].mxu0
    %v1327 = vadd.f32 %v553, %v1326
    %v1328 = vpop.f32.mrb[0].mxu0
    %v1329 = vadd.f32 %v557, %v1328
    %1330 = vdwg.mxu0
    %1331 = vmatprep.subr.bf16.mxu0 %v1013
    %1332 = vmatpush1.bf16.msra.mxu0 %v1012
    %1333 = vmatprep.subr.bf16.mxu0 %v1017
    %1334 = vmatpush1.bf16.msra.mxu0 %v1016
    %1335 = vmatprep.subr.bf16.mxu0 %v1021
    %1336 = vmatpush1.bf16.msra.mxu0 %v1020
    %1337 = vmatprep.subr.bf16.mxu0 %v1025
    %1338 = vmatpush1.bf16.msra.mxu0 %v1024
    %1339 = vmatprep.subr.bf16.mxu0 %v1029
    %1340 = vmatpush1.bf16.msra.mxu0 %v1028
    %1341 = vmatprep.subr.bf16.mxu0 %v1033
    %1342 = vmatpush1.bf16.msra.mxu0 %v1032
    %1343 = vmatprep.subr.bf16.mxu0 %v1037
    %1344 = vmatpush1.bf16.msra.mxu0 %v1036
    %1345 = vmatprep.subr.bf16.mxu0 %v1041
    %1346 = vmatpush1.bf16.msra.mxu0 %v1040
    %1347 = vmatprep.subr.bf16.mxu0 %v1045
    %1348 = vmatpush1.bf16.msra.mxu0 %v1044
    %1349 = vmatprep.subr.bf16.mxu0 %v1049
    %1350 = vmatpush1.bf16.msra.mxu0 %v1048
    %1351 = vmatprep.subr.bf16.mxu0 %v1053
    %1352 = vmatpush1.bf16.msra.mxu0 %v1052
    %1353 = vmatprep.subr.bf16.mxu0 %v1057
    %1354 = vmatpush1.bf16.msra.mxu0 %v1056
    %1355 = vmatprep.subr.bf16.mxu0 %v1061
    %1356 = vmatpush1.bf16.msra.mxu0 %v1060
    %1357 = vmatprep.subr.bf16.mxu0 %v1065
    %1358 = vmatpush1.bf16.msra.mxu0 %v1064
    %1359 = vmatprep.subr.bf16.mxu0 %v1069
    %1360 = vmatpush1.bf16.msra.mxu0 %v1068
    %1361 = vmatprep.subr.bf16.mxu0 %v1073
    %1362 = vmatpush1.bf16.msra.mxu0 %v1072
    %1363 = vmatprep.mubr.bf16.mxu0 %v411
    %1364 = vmatmul.mubr.bf16.gmra.mrb[0].mxu0 %v410
    %v1365 = vpop.f32.mrb[0].mxu0
    %v1366 = vadd.f32 %v1323, %v1365
    %v1367 = vpop.f32.mrb[0].mxu0
    %v1368 = vadd.f32 %v1325, %v1367
    %v1369 = vpop.f32.mrb[0].mxu0
    %v1370 = vadd.f32 %v1327, %v1369
    %v1371 = vpop.f32.mrb[0].mxu0
    %v1372 = vadd.f32 %v1329, %v1371
    %1373 = vdwg.mxu0
    %v1374 = vmax.f32 %v1280, 0.0
    %v1375 = vmax.f32 %v1282, 0.0
    %v1376 = vmax.f32 %v1366, 0.0
    %v1377 = vmax.f32 %v1368, 0.0
    %v1378 = vmax.f32 %v1284, 0.0
    %v1379 = vmax.f32 %v1286, 0.0
    %v1380 = vmax.f32 %v1370, 0.0
    %v1381 = vmax.f32 %v1372, 0.0
    %v1382 = vpack.c.bf16 %v1378, %v1374
    %v1383 = vpack.c.bf16 %v1379, %v1375
    %v1384 = vpack.c.bf16 %v1380, %v1376
    %v1385 = vpack.c.bf16 %v1381, %v1377
    %v1386 = vld [vmem:[#allocation7] sm:$0xff]
    %v1387 = vld [vmem:[#allocation7 + $0x8] sm:$0xff]
    %v1388 = vld [vmem:[#allocation7 + $0x10] sm:$0xff]
    %v1389 = vld [vmem:[#allocation7 + $0x18] sm:$0xff]
    %v1390 = vld [vmem:[#allocation7 + $0x20] sm:$0xff]
    %v1391 = vld [vmem:[#allocation7 + $0x28] sm:$0xff]
    %v1392 = vld [vmem:[#allocation7 + $0x30] sm:$0xff]
    %v1393 = vld [vmem:[#allocation7 + $0x38] sm:$0xff]
    %v1394 = vld [vmem:[#allocation7 + $0x40] sm:$0xff]
    %v1395 = vld [vmem:[#allocation7 + $0x48] sm:$0xff]
    %v1396 = vld [vmem:[#allocation7 + $0x50] sm:$0xff]
    %v1397 = vld [vmem:[#allocation7 + $0x58] sm:$0xff]
    %v1398 = vld [vmem:[#allocation7 + $0x60] sm:$0xff]
    %v1399 = vld [vmem:[#allocation7 + $0x68] sm:$0xff]
    %v1400 = vld [vmem:[#allocation7 + $0x70] sm:$0xff]
    %v1401 = vld [vmem:[#allocation7 + $0x78] sm:$0xff]
    %v1402 = vld [vmem:[#allocation7 + $0x80] sm:$0xff]
    %v1403 = vld [vmem:[#allocation7 + $0x88] sm:$0xff]
    %v1404 = vld [vmem:[#allocation7 + $0x90] sm:$0xff]
    %v1405 = vld [vmem:[#allocation7 + $0x98] sm:$0xff]
    %v1406 = vld [vmem:[#allocation7 + $0xa0] sm:$0xff]
    %v1407 = vld [vmem:[#allocation7 + $0xa8] sm:$0xff]
    %v1408 = vld [vmem:[#allocation7 + $0xb0] sm:$0xff]
    %v1409 = vld [vmem:[#allocation7 + $0xb8] sm:$0xff]
    %v1410 = vld [vmem:[#allocation7 + $0xc0] sm:$0xff]
    %v1411 = vld [vmem:[#allocation7 + $0xc8] sm:$0xff]
    %v1412 = vld [vmem:[#allocation7 + $0xd0] sm:$0xff]
    %v1413 = vld [vmem:[#allocation7 + $0xd8] sm:$0xff]
    %v1414 = vld [vmem:[#allocation7 + $0xe0] sm:$0xff]
    %v1415 = vld [vmem:[#allocation7 + $0xe8] sm:$0xff]
    %v1416 = vld [vmem:[#allocation7 + $0xf0] sm:$0xff]
    %v1417 = vld [vmem:[#allocation7 + $0xf8] sm:$0xff]
    %v1418 = vld [vmem:[#allocation7 + $0x100] sm:$0xff]
    %v1419 = vld [vmem:[#allocation7 + $0x108] sm:$0xff]
    %v1420 = vld [vmem:[#allocation7 + $0x110] sm:$0xff]
    %v1421 = vld [vmem:[#allocation7 + $0x118] sm:$0xff]
    %v1422 = vld [vmem:[#allocation7 + $0x120] sm:$0xff]
    %v1423 = vld [vmem:[#allocation7 + $0x128] sm:$0xff]
    %v1424 = vld [vmem:[#allocation7 + $0x130] sm:$0xff]
    %v1425 = vld [vmem:[#allocation7 + $0x138] sm:$0xff]
    %v1426 = vld [vmem:[#allocation7 + $0x140] sm:$0xff]
    %v1427 = vld [vmem:[#allocation7 + $0x148] sm:$0xff]
    %v1428 = vld [vmem:[#allocation7 + $0x150] sm:$0xff]
    %v1429 = vld [vmem:[#allocation7 + $0x158] sm:$0xff]
    %v1430 = vld [vmem:[#allocation7 + $0x160] sm:$0xff]
    %v1431 = vld [vmem:[#allocation7 + $0x168] sm:$0xff]
    %v1432 = vld [vmem:[#allocation7 + $0x170] sm:$0xff]
    %v1433 = vld [vmem:[#allocation7 + $0x178] sm:$0xff]
    %v1434 = vld [vmem:[#allocation7 + $0x180] sm:$0xff]
    %v1435 = vld [vmem:[#allocation7 + $0x188] sm:$0xff]
    %v1436 = vld [vmem:[#allocation7 + $0x190] sm:$0xff]
    %v1437 = vld [vmem:[#allocation7 + $0x198] sm:$0xff]
    %v1438 = vld [vmem:[#allocation7 + $0x1a0] sm:$0xff]
    %v1439 = vld [vmem:[#allocation7 + $0x1a8] sm:$0xff]
    %v1440 = vld [vmem:[#allocation7 + $0x1b0] sm:$0xff]
    %v1441 = vld [vmem:[#allocation7 + $0x1b8] sm:$0xff]
    %v1442 = vld [vmem:[#allocation7 + $0x1c0] sm:$0xff]
    %v1443 = vld [vmem:[#allocation7 + $0x1c8] sm:$0xff]
    %v1444 = vld [vmem:[#allocation7 + $0x1d0] sm:$0xff]
    %v1445 = vld [vmem:[#allocation7 + $0x1d8] sm:$0xff]
    %v1446 = vld [vmem:[#allocation7 + $0x1e0] sm:$0xff]
    %v1447 = vld [vmem:[#allocation7 + $0x1e8] sm:$0xff]
    %v1448 = vld [vmem:[#allocation7 + $0x1f0] sm:$0xff]
    %v1449 = vld [vmem:[#allocation7 + $0x1f8] sm:$0xff]
    %v1450 = vld [vmem:[#allocation7 + $0x200] sm:$0xff]
    %v1451 = vld [vmem:[#allocation7 + $0x208] sm:$0xff]
    %v1452 = vld [vmem:[#allocation7 + $0x210] sm:$0xff]
    %v1453 = vld [vmem:[#allocation7 + $0x218] sm:$0xff]
    %v1454 = vld [vmem:[#allocation7 + $0x220] sm:$0xff]
    %v1455 = vld [vmem:[#allocation7 + $0x228] sm:$0xff]
    %v1456 = vld [vmem:[#allocation7 + $0x230] sm:$0xff]
    %v1457 = vld [vmem:[#allocation7 + $0x238] sm:$0xff]
    %v1458 = vld [vmem:[#allocation7 + $0x240] sm:$0xff]
    %v1459 = vld [vmem:[#allocation7 + $0x248] sm:$0xff]
    %v1460 = vld [vmem:[#allocation7 + $0x250] sm:$0xff]
    %v1461 = vld [vmem:[#allocation7 + $0x258] sm:$0xff]
    %v1462 = vld [vmem:[#allocation7 + $0x260] sm:$0xff]
    %v1463 = vld [vmem:[#allocation7 + $0x268] sm:$0xff]
    %v1464 = vld [vmem:[#allocation7 + $0x270] sm:$0xff]
    %v1465 = vld [vmem:[#allocation7 + $0x278] sm:$0xff]
    %v1466 = vld [vmem:[#allocation7 + $0x280] sm:$0xff]
    %v1467 = vld [vmem:[#allocation7 + $0x288] sm:$0xff]
    %v1468 = vld [vmem:[#allocation7 + $0x290] sm:$0xff]
    %v1469 = vld [vmem:[#allocation7 + $0x298] sm:$0xff]
    %v1470 = vld [vmem:[#allocation7 + $0x2a0] sm:$0xff]
    %v1471 = vld [vmem:[#allocation7 + $0x2a8] sm:$0xff]
    %v1472 = vld [vmem:[#allocation7 + $0x2b0] sm:$0xff]
    %v1473 = vld [vmem:[#allocation7 + $0x2b8] sm:$0xff]
    %v1474 = vld [vmem:[#allocation7 + $0x2c0] sm:$0xff]
    %v1475 = vld [vmem:[#allocation7 + $0x2c8] sm:$0xff]
    %v1476 = vld [vmem:[#allocation7 + $0x2d0] sm:$0xff]
    %v1477 = vld [vmem:[#allocation7 + $0x2d8] sm:$0xff]
    %v1478 = vld [vmem:[#allocation7 + $0x2e0] sm:$0xff]
    %v1479 = vld [vmem:[#allocation7 + $0x2e8] sm:$0xff]
    %v1480 = vld [vmem:[#allocation7 + $0x2f0] sm:$0xff]
    %v1481 = vld [vmem:[#allocation7 + $0x2f8] sm:$0xff]
    %v1482 = vld [vmem:[#allocation7 + $0x300] sm:$0xff]
    %v1483 = vld [vmem:[#allocation7 + $0x308] sm:$0xff]
    %v1484 = vld [vmem:[#allocation7 + $0x310] sm:$0xff]
    %v1485 = vld [vmem:[#allocation7 + $0x318] sm:$0xff]
    %v1486 = vld [vmem:[#allocation7 + $0x320] sm:$0xff]
    %v1487 = vld [vmem:[#allocation7 + $0x328] sm:$0xff]
    %v1488 = vld [vmem:[#allocation7 + $0x330] sm:$0xff]
    %v1489 = vld [vmem:[#allocation7 + $0x338] sm:$0xff]
    %v1490 = vld [vmem:[#allocation7 + $0x340] sm:$0xff]
    %v1491 = vld [vmem:[#allocation7 + $0x348] sm:$0xff]
    %v1492 = vld [vmem:[#allocation7 + $0x350] sm:$0xff]
    %v1493 = vld [vmem:[#allocation7 + $0x358] sm:$0xff]
    %v1494 = vld [vmem:[#allocation7 + $0x360] sm:$0xff]
    %v1495 = vld [vmem:[#allocation7 + $0x368] sm:$0xff]
    %v1496 = vld [vmem:[#allocation7 + $0x370] sm:$0xff]
    %v1497 = vld [vmem:[#allocation7 + $0x378] sm:$0xff]
    %v1498 = vld [vmem:[#allocation7 + $0x380] sm:$0xff]
    %v1499 = vld [vmem:[#allocation7 + $0x388] sm:$0xff]
    %v1500 = vld [vmem:[#allocation7 + $0x390] sm:$0xff]
    %v1501 = vld [vmem:[#allocation7 + $0x398] sm:$0xff]
    %v1502 = vld [vmem:[#allocation7 + $0x3a0] sm:$0xff]
    %v1503 = vld [vmem:[#allocation7 + $0x3a8] sm:$0xff]
    %v1504 = vld [vmem:[#allocation7 + $0x3b0] sm:$0xff]
    %v1505 = vld [vmem:[#allocation7 + $0x3b8] sm:$0xff]
    %v1506 = vld [vmem:[#allocation7 + $0x3c0] sm:$0xff]
    %v1507 = vld [vmem:[#allocation7 + $0x3c8] sm:$0xff]
    %v1508 = vld [vmem:[#allocation7 + $0x3d0] sm:$0xff]
    %v1509 = vld [vmem:[#allocation7 + $0x3d8] sm:$0xff]
    %v1510 = vld [vmem:[#allocation7 + $0x3e0] sm:$0xff]
    %v1511 = vld [vmem:[#allocation7 + $0x3e8] sm:$0xff]
    %v1512 = vld [vmem:[#allocation7 + $0x3f0] sm:$0xff]
    %v1513 = vld [vmem:[#allocation7 + $0x3f8] sm:$0xff]
    %v1514 = vld [vmem:[%s6] sm:$0xf]
    %v1516 = vlaneseq
    %v1517 = vshrl.u32 %v1516, 7
    %v1518 = vsub.s32 0, %v1517
    %v1519 = vrot.slane %v1514, %v1518
    %v1520 = vlaneseq
    %v1521 = vshrl.u32 %v1520, 7
    %v1522 = vsub.s32 1, %v1521
    %v1523 = vrot.slane %v1514, %v1522
    %v1524 = vlaneseq
    %v1525 = vshrl.u32 %v1524, 7
    %v1526 = vsub.s32 2, %v1525
    %v1527 = vrot.slane %v1514, %v1526
    %v1528 = vlaneseq
    %v1529 = vshrl.u32 %v1528, 7
    %v1530 = vsub.s32 3, %v1529
    %v1531 = vrot.slane %v1514, %v1530
    %v1664 = vunpack.c.l.b16 %v1386
    %v1665 = vunpack.c.h.b16 %v1386
    %v1666 = vunpack.c.l.b16 %v1387
    %v1667 = vunpack.c.h.b16 %v1387
    %v1668 = vunpack.c.l.b16 %v1388
    %v1669 = vunpack.c.h.b16 %v1388
    %v1670 = vunpack.c.l.b16 %v1389
    %v1671 = vunpack.c.h.b16 %v1389
    %v1672 = vunpack.c.l.b16 %v1390
    %v1673 = vunpack.c.h.b16 %v1390
    %v1674 = vunpack.c.l.b16 %v1391
    %v1675 = vunpack.c.h.b16 %v1391
    %v1676 = vunpack.c.l.b16 %v1392
    %v1677 = vunpack.c.h.b16 %v1392
    %v1678 = vunpack.c.l.b16 %v1393
    %v1679 = vunpack.c.h.b16 %v1393
    %v1680 = vunpack.c.l.b16 %v1394
    %v1681 = vunpack.c.h.b16 %v1394
    %v1682 = vunpack.c.l.b16 %v1395
    %v1683 = vunpack.c.h.b16 %v1395
    %v1684 = vunpack.c.l.b16 %v1396
    %v1685 = vunpack.c.h.b16 %v1396
    %v1686 = vunpack.c.l.b16 %v1397
    %v1687 = vunpack.c.h.b16 %v1397
    %v1688 = vunpack.c.l.b16 %v1398
    %v1689 = vunpack.c.h.b16 %v1398
    %v1690 = vunpack.c.l.b16 %v1399
    %v1691 = vunpack.c.h.b16 %v1399
    %v1692 = vunpack.c.l.b16 %v1400
    %v1693 = vunpack.c.h.b16 %v1400
    %v1694 = vunpack.c.l.b16 %v1401
    %v1695 = vunpack.c.h.b16 %v1401
    %v1696 = vunpack.c.l.b16 %v1402
    %v1697 = vunpack.c.h.b16 %v1402
    %v1698 = vunpack.c.l.b16 %v1403
    %v1699 = vunpack.c.h.b16 %v1403
    %v1700 = vunpack.c.l.b16 %v1404
    %v1701 = vunpack.c.h.b16 %v1404
    %v1702 = vunpack.c.l.b16 %v1405
    %v1703 = vunpack.c.h.b16 %v1405
    %v1704 = vunpack.c.l.b16 %v1406
    %v1705 = vunpack.c.h.b16 %v1406
    %v1706 = vunpack.c.l.b16 %v1407
    %v1707 = vunpack.c.h.b16 %v1407
    %v1708 = vunpack.c.l.b16 %v1408
    %v1709 = vunpack.c.h.b16 %v1408
    %v1710 = vunpack.c.l.b16 %v1409
    %v1711 = vunpack.c.h.b16 %v1409
    %v1712 = vunpack.c.l.b16 %v1410
    %v1713 = vunpack.c.h.b16 %v1410
    %v1714 = vunpack.c.l.b16 %v1411
    %v1715 = vunpack.c.h.b16 %v1411
    %v1716 = vunpack.c.l.b16 %v1412
    %v1717 = vunpack.c.h.b16 %v1412
    %v1718 = vunpack.c.l.b16 %v1413
    %v1719 = vunpack.c.h.b16 %v1413
    %v1720 = vunpack.c.l.b16 %v1414
    %v1721 = vunpack.c.h.b16 %v1414
    %v1722 = vunpack.c.l.b16 %v1415
    %v1723 = vunpack.c.h.b16 %v1415
    %v1724 = vunpack.c.l.b16 %v1416
    %v1725 = vunpack.c.h.b16 %v1416
    %v1726 = vunpack.c.l.b16 %v1417
    %v1727 = vunpack.c.h.b16 %v1417
    %v1728 = vunpack.c.l.b16 %v1418
    %v1729 = vunpack.c.h.b16 %v1418
    %v1730 = vunpack.c.l.b16 %v1419
    %v1731 = vunpack.c.h.b16 %v1419
    %v1732 = vunpack.c.l.b16 %v1420
    %v1733 = vunpack.c.h.b16 %v1420
    %v1734 = vunpack.c.l.b16 %v1421
    %v1735 = vunpack.c.h.b16 %v1421
    %v1736 = vunpack.c.l.b16 %v1422
    %v1737 = vunpack.c.h.b16 %v1422
    %v1738 = vunpack.c.l.b16 %v1423
    %v1739 = vunpack.c.h.b16 %v1423
    %v1740 = vunpack.c.l.b16 %v1424
    %v1741 = vunpack.c.h.b16 %v1424
    %v1742 = vunpack.c.l.b16 %v1425
    %v1743 = vunpack.c.h.b16 %v1425
    %v1744 = vunpack.c.l.b16 %v1426
    %v1745 = vunpack.c.h.b16 %v1426
    %v1746 = vunpack.c.l.b16 %v1427
    %v1747 = vunpack.c.h.b16 %v1427
    %v1748 = vunpack.c.l.b16 %v1428
    %v1749 = vunpack.c.h.b16 %v1428
    %v1750 = vunpack.c.l.b16 %v1429
    %v1751 = vunpack.c.h.b16 %v1429
    %v1752 = vunpack.c.l.b16 %v1430
    %v1753 = vunpack.c.h.b16 %v1430
    %v1754 = vunpack.c.l.b16 %v1431
    %v1755 = vunpack.c.h.b16 %v1431
    %v1756 = vunpack.c.l.b16 %v1432
    %v1757 = vunpack.c.h.b16 %v1432
    %v1758 = vunpack.c.l.b16 %v1433
    %v1759 = vunpack.c.h.b16 %v1433
    %v1760 = vunpack.c.l.b16 %v1434
    %v1761 = vunpack.c.h.b16 %v1434
    %v1762 = vunpack.c.l.b16 %v1435
    %v1763 = vunpack.c.h.b16 %v1435
    %v1764 = vunpack.c.l.b16 %v1436
    %v1765 = vunpack.c.h.b16 %v1436
    %v1766 = vunpack.c.l.b16 %v1437
    %v1767 = vunpack.c.h.b16 %v1437
    %v1768 = vunpack.c.l.b16 %v1438
    %v1769 = vunpack.c.h.b16 %v1438
    %v1770 = vunpack.c.l.b16 %v1439
    %v1771 = vunpack.c.h.b16 %v1439
    %v1772 = vunpack.c.l.b16 %v1440
    %v1773 = vunpack.c.h.b16 %v1440
    %v1774 = vunpack.c.l.b16 %v1441
    %v1775 = vunpack.c.h.b16 %v1441
    %v1776 = vunpack.c.l.b16 %v1442
    %v1777 = vunpack.c.h.b16 %v1442
    %v1778 = vunpack.c.l.b16 %v1443
    %v1779 = vunpack.c.h.b16 %v1443
    %v1780 = vunpack.c.l.b16 %v1444
    %v1781 = vunpack.c.h.b16 %v1444
    %v1782 = vunpack.c.l.b16 %v1445
    %v1783 = vunpack.c.h.b16 %v1445
    %v1784 = vunpack.c.l.b16 %v1446
    %v1785 = vunpack.c.h.b16 %v1446
    %v1786 = vunpack.c.l.b16 %v1447
    %v1787 = vunpack.c.h.b16 %v1447
    %v1788 = vunpack.c.l.b16 %v1448
    %v1789 = vunpack.c.h.b16 %v1448
    %v1790 = vunpack.c.l.b16 %v1449
    %v1791 = vunpack.c.h.b16 %v1449
    %v1792 = vunpack.c.l.b16 %v1450
    %v1793 = vunpack.c.h.b16 %v1450
    %v1794 = vunpack.c.l.b16 %v1451
    %v1795 = vunpack.c.h.b16 %v1451
    %v1796 = vunpack.c.l.b16 %v1452
    %v1797 = vunpack.c.h.b16 %v1452
    %v1798 = vunpack.c.l.b16 %v1453
    %v1799 = vunpack.c.h.b16 %v1453
    %v1800 = vunpack.c.l.b16 %v1454
    %v1801 = vunpack.c.h.b16 %v1454
    %v1802 = vunpack.c.l.b16 %v1455
    %v1803 = vunpack.c.h.b16 %v1455
    %v1804 = vunpack.c.l.b16 %v1456
    %v1805 = vunpack.c.h.b16 %v1456
    %v1806 = vunpack.c.l.b16 %v1457
    %v1807 = vunpack.c.h.b16 %v1457
    %v1808 = vunpack.c.l.b16 %v1458
    %v1809 = vunpack.c.h.b16 %v1458
    %v1810 = vunpack.c.l.b16 %v1459
    %v1811 = vunpack.c.h.b16 %v1459
    %v1812 = vunpack.c.l.b16 %v1460
    %v1813 = vunpack.c.h.b16 %v1460
    %v1814 = vunpack.c.l.b16 %v1461
    %v1815 = vunpack.c.h.b16 %v1461
    %v1816 = vunpack.c.l.b16 %v1462
    %v1817 = vunpack.c.h.b16 %v1462
    %v1818 = vunpack.c.l.b16 %v1463
    %v1819 = vunpack.c.h.b16 %v1463
    %v1820 = vunpack.c.l.b16 %v1464
    %v1821 = vunpack.c.h.b16 %v1464
    %v1822 = vunpack.c.l.b16 %v1465
    %v1823 = vunpack.c.h.b16 %v1465
    %v1824 = vunpack.c.l.b16 %v1466
    %v1825 = vunpack.c.h.b16 %v1466
    %v1826 = vunpack.c.l.b16 %v1467
    %v1827 = vunpack.c.h.b16 %v1467
    %v1828 = vunpack.c.l.b16 %v1468
    %v1829 = vunpack.c.h.b16 %v1468
    %v1830 = vunpack.c.l.b16 %v1469
    %v1831 = vunpack.c.h.b16 %v1469
    %v1832 = vunpack.c.l.b16 %v1470
    %v1833 = vunpack.c.h.b16 %v1470
    %v1834 = vunpack.c.l.b16 %v1471
    %v1835 = vunpack.c.h.b16 %v1471
    %v1836 = vunpack.c.l.b16 %v1472
    %v1837 = vunpack.c.h.b16 %v1472
    %v1838 = vunpack.c.l.b16 %v1473
    %v1839 = vunpack.c.h.b16 %v1473
    %v1840 = vunpack.c.l.b16 %v1474
    %v1841 = vunpack.c.h.b16 %v1474
    %v1842 = vunpack.c.l.b16 %v1475
    %v1843 = vunpack.c.h.b16 %v1475
    %v1844 = vunpack.c.l.b16 %v1476
    %v1845 = vunpack.c.h.b16 %v1476
    %v1846 = vunpack.c.l.b16 %v1477
    %v1847 = vunpack.c.h.b16 %v1477
    %v1848 = vunpack.c.l.b16 %v1478
    %v1849 = vunpack.c.h.b16 %v1478
    %v1850 = vunpack.c.l.b16 %v1479
    %v1851 = vunpack.c.h.b16 %v1479
    %v1852 = vunpack.c.l.b16 %v1480
    %v1853 = vunpack.c.h.b16 %v1480
    %v1854 = vunpack.c.l.b16 %v1481
    %v1855 = vunpack.c.h.b16 %v1481
    %v1856 = vunpack.c.l.b16 %v1482
    %v1857 = vunpack.c.h.b16 %v1482
    %v1858 = vunpack.c.l.b16 %v1483
    %v1859 = vunpack.c.h.b16 %v1483
    %v1860 = vunpack.c.l.b16 %v1484
    %v1861 = vunpack.c.h.b16 %v1484
    %v1862 = vunpack.c.l.b16 %v1485
    %v1863 = vunpack.c.h.b16 %v1485
    %v1864 = vunpack.c.l.b16 %v1486
    %v1865 = vunpack.c.h.b16 %v1486
    %v1866 = vunpack.c.l.b16 %v1487
    %v1867 = vunpack.c.h.b16 %v1487
    %v1868 = vunpack.c.l.b16 %v1488
    %v1869 = vunpack.c.h.b16 %v1488
    %v1870 = vunpack.c.l.b16 %v1489
    %v1871 = vunpack.c.h.b16 %v1489
    %v1872 = vunpack.c.l.b16 %v1490
    %v1873 = vunpack.c.h.b16 %v1490
    %v1874 = vunpack.c.l.b16 %v1491
    %v1875 = vunpack.c.h.b16 %v1491
    %v1876 = vunpack.c.l.b16 %v1492
    %v1877 = vunpack.c.h.b16 %v1492
    %v1878 = vunpack.c.l.b16 %v1493
    %v1879 = vunpack.c.h.b16 %v1493
    %v1880 = vunpack.c.l.b16 %v1494
    %v1881 = vunpack.c.h.b16 %v1494
    %v1882 = vunpack.c.l.b16 %v1495
    %v1883 = vunpack.c.h.b16 %v1495
    %v1884 = vunpack.c.l.b16 %v1496
    %v1885 = vunpack.c.h.b16 %v1496
    %v1886 = vunpack.c.l.b16 %v1497
    %v1887 = vunpack.c.h.b16 %v1497
    %v1888 = vunpack.c.l.b16 %v1498
    %v1889 = vunpack.c.h.b16 %v1498
    %v1890 = vunpack.c.l.b16 %v1499
    %v1891 = vunpack.c.h.b16 %v1499
    %v1892 = vunpack.c.l.b16 %v1500
    %v1893 = vunpack.c.h.b16 %v1500
    %v1894 = vunpack.c.l.b16 %v1501
    %v1895 = vunpack.c.h.b16 %v1501
    %v1896 = vunpack.c.l.b16 %v1502
    %v1897 = vunpack.c.h.b16 %v1502
    %v1898 = vunpack.c.l.b16 %v1503
    %v1899 = vunpack.c.h.b16 %v1503
    %v1900 = vunpack.c.l.b16 %v1504
    %v1901 = vunpack.c.h.b16 %v1504
    %v1902 = vunpack.c.l.b16 %v1505
    %v1903 = vunpack.c.h.b16 %v1505
    %v1904 = vunpack.c.l.b16 %v1506
    %v1905 = vunpack.c.h.b16 %v1506
    %v1906 = vunpack.c.l.b16 %v1507
    %v1907 = vunpack.c.h.b16 %v1507
    %v1908 = vunpack.c.l.b16 %v1508
    %v1909 = vunpack.c.h.b16 %v1508
    %v1910 = vunpack.c.l.b16 %v1509
    %v1911 = vunpack.c.h.b16 %v1509
    %v1912 = vunpack.c.l.b16 %v1510
    %v1913 = vunpack.c.h.b16 %v1510
    %v1914 = vunpack.c.l.b16 %v1511
    %v1915 = vunpack.c.h.b16 %v1511
    %v1916 = vunpack.c.l.b16 %v1512
    %v1917 = vunpack.c.h.b16 %v1512
    %v1918 = vunpack.c.l.b16 %v1513
    %v1919 = vunpack.c.h.b16 %v1513
    %v1920 = vpack.c.b16 %v1668, %v1664
    %v1921 = vpack.c.b16 %v1669, %v1665
    %v1922 = vpack.c.b16 %v1670, %v1666
    %v1923 = vpack.c.b16 %v1671, %v1667
    %v1924 = vpack.c.b16 %v1676, %v1672
    %v1925 = vpack.c.b16 %v1677, %v1673
    %v1926 = vpack.c.b16 %v1678, %v1674
    %v1927 = vpack.c.b16 %v1679, %v1675
    %v1928 = vpack.c.b16 %v1684, %v1680
    %v1929 = vpack.c.b16 %v1685, %v1681
    %v1930 = vpack.c.b16 %v1686, %v1682
    %v1931 = vpack.c.b16 %v1687, %v1683
    %v1932 = vpack.c.b16 %v1692, %v1688
    %v1933 = vpack.c.b16 %v1693, %v1689
    %v1934 = vpack.c.b16 %v1694, %v1690
    %v1935 = vpack.c.b16 %v1695, %v1691
    %v1936 = vpack.c.b16 %v1700, %v1696
    %v1937 = vpack.c.b16 %v1701, %v1697
    %v1938 = vpack.c.b16 %v1702, %v1698
    %v1939 = vpack.c.b16 %v1703, %v1699
    %v1940 = vpack.c.b16 %v1708, %v1704
    %v1941 = vpack.c.b16 %v1709, %v1705
    %v1942 = vpack.c.b16 %v1710, %v1706
    %v1943 = vpack.c.b16 %v1711, %v1707
    %v1944 = vpack.c.b16 %v1716, %v1712
    %v1945 = vpack.c.b16 %v1717, %v1713
    %v1946 = vpack.c.b16 %v1718, %v1714
    %v1947 = vpack.c.b16 %v1719, %v1715
    %v1948 = vpack.c.b16 %v1724, %v1720
    %v1949 = vpack.c.b16 %v1725, %v1721
    %v1950 = vpack.c.b16 %v1726, %v1722
    %v1951 = vpack.c.b16 %v1727, %v1723
    %v1952 = vpack.c.b16 %v1732, %v1728
    %v1953 = vpack.c.b16 %v1733, %v1729
    %v1954 = vpack.c.b16 %v1734, %v1730
    %v1955 = vpack.c.b16 %v1735, %v1731
    %v1956 = vpack.c.b16 %v1740, %v1736
    %v1957 = vpack.c.b16 %v1741, %v1737
    %v1958 = vpack.c.b16 %v1742, %v1738
    %v1959 = vpack.c.b16 %v1743, %v1739
    %v1960 = vpack.c.b16 %v1748, %v1744
    %v1961 = vpack.c.b16 %v1749, %v1745
    %v1962 = vpack.c.b16 %v1750, %v1746
    %v1963 = vpack.c.b16 %v1751, %v1747
    %v1964 = vpack.c.b16 %v1756, %v1752
    %v1965 = vpack.c.b16 %v1757, %v1753
    %v1966 = vpack.c.b16 %v1758, %v1754
    %v1967 = vpack.c.b16 %v1759, %v1755
    %v1968 = vpack.c.b16 %v1764, %v1760
    %v1969 = vpack.c.b16 %v1765, %v1761
    %v1970 = vpack.c.b16 %v1766, %v1762
    %v1971 = vpack.c.b16 %v1767, %v1763
    %v1972 = vpack.c.b16 %v1772, %v1768
    %v1973 = vpack.c.b16 %v1773, %v1769
    %v1974 = vpack.c.b16 %v1774, %v1770
    %v1975 = vpack.c.b16 %v1775, %v1771
    %v1976 = vpack.c.b16 %v1780, %v1776
    %v1977 = vpack.c.b16 %v1781, %v1777
    %v1978 = vpack.c.b16 %v1782, %v1778
    %v1979 = vpack.c.b16 %v1783, %v1779
    %v1980 = vpack.c.b16 %v1788, %v1784
    %v1981 = vpack.c.b16 %v1789, %v1785
    %v1982 = vpack.c.b16 %v1790, %v1786
    %v1983 = vpack.c.b16 %v1791, %v1787
    %v1984 = vpack.c.b16 %v1796, %v1792
    %v1985 = vpack.c.b16 %v1797, %v1793
    %v1986 = vpack.c.b16 %v1798, %v1794
    %v1987 = vpack.c.b16 %v1799, %v1795
    %v1988 = vpack.c.b16 %v1804, %v1800
    %v1989 = vpack.c.b16 %v1805, %v1801
    %v1990 = vpack.c.b16 %v1806, %v1802
    %v1991 = vpack.c.b16 %v1807, %v1803
    %v1992 = vpack.c.b16 %v1812, %v1808
    %v1993 = vpack.c.b16 %v1813, %v1809
    %v1994 = vpack.c.b16 %v1814, %v1810
    %v1995 = vpack.c.b16 %v1815, %v1811
    %v1996 = vpack.c.b16 %v1820, %v1816
    %v1997 = vpack.c.b16 %v1821, %v1817
    %v1998 = vpack.c.b16 %v1822, %v1818
    %v1999 = vpack.c.b16 %v1823, %v1819
    %v2000 = vpack.c.b16 %v1828, %v1824
    %v2001 = vpack.c.b16 %v1829, %v1825
    %v2002 = vpack.c.b16 %v1830, %v1826
    %v2003 = vpack.c.b16 %v1831, %v1827
    %v2004 = vpack.c.b16 %v1836, %v1832
    %v2005 = vpack.c.b16 %v1837, %v1833
    %v2006 = vpack.c.b16 %v1838, %v1834
    %v2007 = vpack.c.b16 %v1839, %v1835
    %v2008 = vpack.c.b16 %v1844, %v1840
    %v2009 = vpack.c.b16 %v1845, %v1841
    %v2010 = vpack.c.b16 %v1846, %v1842
    %v2011 = vpack.c.b16 %v1847, %v1843
    %v2012 = vpack.c.b16 %v1852, %v1848
    %v2013 = vpack.c.b16 %v1853, %v1849
    %v2014 = vpack.c.b16 %v1854, %v1850
    %v2015 = vpack.c.b16 %v1855, %v1851
    %v2016 = vpack.c.b16 %v1860, %v1856
    %v2017 = vpack.c.b16 %v1861, %v1857
    %v2018 = vpack.c.b16 %v1862, %v1858
    %v2019 = vpack.c.b16 %v1863, %v1859
    %v2020 = vpack.c.b16 %v1868, %v1864
    %v2021 = vpack.c.b16 %v1869, %v1865
    %v2022 = vpack.c.b16 %v1870, %v1866
    %v2023 = vpack.c.b16 %v1871, %v1867
    %v2024 = vpack.c.b16 %v1876, %v1872
    %v2025 = vpack.c.b16 %v1877, %v1873
    %v2026 = vpack.c.b16 %v1878, %v1874
    %v2027 = vpack.c.b16 %v1879, %v1875
    %v2028 = vpack.c.b16 %v1884, %v1880
    %v2029 = vpack.c.b16 %v1885, %v1881
    %v2030 = vpack.c.b16 %v1886, %v1882
    %v2031 = vpack.c.b16 %v1887, %v1883
    %v2032 = vpack.c.b16 %v1892, %v1888
    %v2033 = vpack.c.b16 %v1893, %v1889
    %v2034 = vpack.c.b16 %v1894, %v1890
    %v2035 = vpack.c.b16 %v1895, %v1891
    %v2036 = vpack.c.b16 %v1900, %v1896
    %v2037 = vpack.c.b16 %v1901, %v1897
    %v2038 = vpack.c.b16 %v1902, %v1898
    %v2039 = vpack.c.b16 %v1903, %v1899
    %v2040 = vpack.c.b16 %v1908, %v1904
    %v2041 = vpack.c.b16 %v1909, %v1905
    %v2042 = vpack.c.b16 %v1910, %v1906
    %v2043 = vpack.c.b16 %v1911, %v1907
    %v2044 = vpack.c.b16 %v1916, %v1912
    %v2045 = vpack.c.b16 %v1917, %v1913
    %v2046 = vpack.c.b16 %v1918, %v1914
    %v2047 = vpack.c.b16 %v1919, %v1915
    %2176 = vmatprep.subr.bf16.mxu0 %v1921
    %2177 = vmatpush1.bf16.msra.mxu0 %v1920
    %2178 = vmatprep.subr.bf16.mxu0 %v1925
    %2179 = vmatpush1.bf16.msra.mxu0 %v1924
    %2180 = vmatprep.subr.bf16.mxu0 %v1929
    %2181 = vmatpush1.bf16.msra.mxu0 %v1928
    %2182 = vmatprep.subr.bf16.mxu0 %v1933
    %2183 = vmatpush1.bf16.msra.mxu0 %v1932
    %2184 = vmatprep.subr.bf16.mxu0 %v1937
    %2185 = vmatpush1.bf16.msra.mxu0 %v1936
    %2186 = vmatprep.subr.bf16.mxu0 %v1941
    %2187 = vmatpush1.bf16.msra.mxu0 %v1940
    %2188 = vmatprep.subr.bf16.mxu0 %v1945
    %2189 = vmatpush1.bf16.msra.mxu0 %v1944
    %2190 = vmatprep.subr.bf16.mxu0 %v1949
    %2191 = vmatpush1.bf16.msra.mxu0 %v1948
    %2192 = vmatprep.subr.bf16.mxu0 %v1953
    %2193 = vmatpush1.bf16.msra.mxu0 %v1952
    %2194 = vmatprep.subr.bf16.mxu0 %v1957
    %2195 = vmatpush1.bf16.msra.mxu0 %v1956
    %2196 = vmatprep.subr.bf16.mxu0 %v1961
    %2197 = vmatpush1.bf16.msra.mxu0 %v1960
    %2198 = vmatprep.subr.bf16.mxu0 %v1965
    %2199 = vmatpush1.bf16.msra.mxu0 %v1964
    %2200 = vmatprep.subr.bf16.mxu0 %v1969
    %2201 = vmatpush1.bf16.msra.mxu0 %v1968
    %2202 = vmatprep.subr.bf16.mxu0 %v1973
    %2203 = vmatpush1.bf16.msra.mxu0 %v1972
    %2204 = vmatprep.subr.bf16.mxu0 %v1977
    %2205 = vmatpush1.bf16.msra.mxu0 %v1976
    %2206 = vmatprep.subr.bf16.mxu0 %v1981
    %2207 = vmatpush1.bf16.msra.mxu0 %v1980
    %2208 = vmatprep.mubr.bf16.mxu0 %v1383
    %2209 = vmatmul.mubr.bf16.gmra.mrb[0].mxu0 %v1382
    %v2210 = vpop.f32.mrb[0].mxu0
    %v2211 = vadd.f32 %v1519, %v2210
    %v2212 = vpop.f32.mrb[0].mxu0
    %v2213 = vadd.f32 %v1523, %v2212
    %v2214 = vpop.f32.mrb[0].mxu0
    %v2215 = vadd.f32 %v1519, %v2214
    %v2216 = vpop.f32.mrb[0].mxu0
    %v2217 = vadd.f32 %v1523, %v2216
    %2218 = vdwg.mxu0
    %2219 = vmatprep.subr.bf16.mxu0 %v1985
    %2220 = vmatpush1.bf16.msra.mxu0 %v1984
    %2221 = vmatprep.subr.bf16.mxu0 %v1989
    %2222 = vmatpush1.bf16.msra.mxu0 %v1988
    %2223 = vmatprep.subr.bf16.mxu0 %v1993
    %2224 = vmatpush1.bf16.msra.mxu0 %v1992
    %2225 = vmatprep.subr.bf16.mxu0 %v1997
    %2226 = vmatpush1.bf16.msra.mxu0 %v1996
    %2227 = vmatprep.subr.bf16.mxu0 %v2001
    %2228 = vmatpush1.bf16.msra.mxu0 %v2000
    %2229 = vmatprep.subr.bf16.mxu0 %v2005
    %2230 = vmatpush1.bf16.msra.mxu0 %v2004
    %2231 = vmatprep.subr.bf16.mxu0 %v2009
    %2232 = vmatpush1.bf16.msra.mxu0 %v2008
    %2233 = vmatprep.subr.bf16.mxu0 %v2013
    %2234 = vmatpush1.bf16.msra.mxu0 %v2012
    %2235 = vmatprep.subr.bf16.mxu0 %v2017
    %2236 = vmatpush1.bf16.msra.mxu0 %v2016
    %2237 = vmatprep.subr.bf16.mxu0 %v2021
    %2238 = vmatpush1.bf16.msra.mxu0 %v2020
    %2239 = vmatprep.subr.bf16.mxu0 %v2025
    %2240 = vmatpush1.bf16.msra.mxu0 %v2024
    %2241 = vmatprep.subr.bf16.mxu0 %v2029
    %2242 = vmatpush1.bf16.msra.mxu0 %v2028
    %2243 = vmatprep.subr.bf16.mxu0 %v2033
    %2244 = vmatpush1.bf16.msra.mxu0 %v2032
    %2245 = vmatprep.subr.bf16.mxu0 %v2037
    %2246 = vmatpush1.bf16.msra.mxu0 %v2036
    %2247 = vmatprep.subr.bf16.mxu0 %v2041
    %2248 = vmatpush1.bf16.msra.mxu0 %v2040
    %2249 = vmatprep.subr.bf16.mxu0 %v2045
    %2250 = vmatpush1.bf16.msra.mxu0 %v2044
    %2251 = vmatprep.mubr.bf16.mxu0 %v1385
    %2252 = vmatmul.mubr.bf16.gmra.mrb[0].mxu0 %v1384
    %v2253 = vpop.f32.mrb[0].mxu0
    %v2254 = vadd.f32 %v2211, %v2253
    %v2255 = vpop.f32.mrb[0].mxu0
    %v2256 = vadd.f32 %v2213, %v2255
    %v2257 = vpop.f32.mrb[0].mxu0
    %v2258 = vadd.f32 %v2215, %v2257
    %v2259 = vpop.f32.mrb[0].mxu0
    %v2260 = vadd.f32 %v2217, %v2259
    %2261 = vdwg.mxu0
    %2262 = vmatprep.subr.bf16.mxu0 %v1923
    %2263 = vmatpush1.bf16.msra.mxu0 %v1922
    %2264 = vmatprep.subr.bf16.mxu0 %v1927
    %2265 = vmatpush1.bf16.msra.mxu0 %v1926
    %2266 = vmatprep.subr.bf16.mxu0 %v1931
    %2267 = vmatpush1.bf16.msra.mxu0 %v1930
    %2268 = vmatprep.subr.bf16.mxu0 %v1935
    %2269 = vmatpush1.bf16.msra.mxu0 %v1934
    %2270 = vmatprep.subr.bf16.mxu0 %v1939
    %2271 = vmatpush1.bf16.msra.mxu0 %v1938
    %2272 = vmatprep.subr.bf16.mxu0 %v1943
    %2273 = vmatpush1.bf16.msra.mxu0 %v1942
    %2274 = vmatprep.subr.bf16.mxu0 %v1947
    %2275 = vmatpush1.bf16.msra.mxu0 %v1946
    %2276 = vmatprep.subr.bf16.mxu0 %v1951
    %2277 = vmatpush1.bf16.msra.mxu0 %v1950
    %2278 = vmatprep.subr.bf16.mxu0 %v1955
    %2279 = vmatpush1.bf16.msra.mxu0 %v1954
    %2280 = vmatprep.subr.bf16.mxu0 %v1959
    %2281 = vmatpush1.bf16.msra.mxu0 %v1958
    %2282 = vmatprep.subr.bf16.mxu0 %v1963
    %2283 = vmatpush1.bf16.msra.mxu0 %v1962
    %2284 = vmatprep.subr.bf16.mxu0 %v1967
    %2285 = vmatpush1.bf16.msra.mxu0 %v1966
    %2286 = vmatprep.subr.bf16.mxu0 %v1971
    %2287 = vmatpush1.bf16.msra.mxu0 %v1970
    %2288 = vmatprep.subr.bf16.mxu0 %v1975
    %2289 = vmatpush1.bf16.msra.mxu0 %v1974
    %2290 = vmatprep.subr.bf16.mxu0 %v1979
    %2291 = vmatpush1.bf16.msra.mxu0 %v1978
    %2292 = vmatprep.subr.bf16.mxu0 %v1983
    %2293 = vmatpush1.bf16.msra.mxu0 %v1982
    %2294 = vmatprep.mubr.bf16.mxu0 %v1383
    %2295 = vmatmul.mubr.bf16.gmra.mrb[0].mxu0 %v1382
    %v2296 = vpop.f32.mrb[0].mxu0
    %v2297 = vadd.f32 %v1527, %v2296
    %v2298 = vpop.f32.mrb[0].mxu0
    %v2299 = vadd.f32 %v1531, %v2298
    %v2300 = vpop.f32.mrb[0].mxu0
    %v2301 = vadd.f32 %v1527, %v2300
    %v2302 = vpop.f32.mrb[0].mxu0
    %v2303 = vadd.f32 %v1531, %v2302
    %2304 = vdwg.mxu0
    %2305 = vmatprep.subr.bf16.mxu0 %v1987
    %2306 = vmatpush1.bf16.msra.mxu0 %v1986
    %2307 = vmatprep.subr.bf16.mxu0 %v1991
    %2308 = vmatpush1.bf16.msra.mxu0 %v1990
    %2309 = vmatprep.subr.bf16.mxu0 %v1995
    %2310 = vmatpush1.bf16.msra.mxu0 %v1994
    %2311 = vmatprep.subr.bf16.mxu0 %v1999
    %2312 = vmatpush1.bf16.msra.mxu0 %v1998
    %2313 = vmatprep.subr.bf16.mxu0 %v2003
    %2314 = vmatpush1.bf16.msra.mxu0 %v2002
    %2315 = vmatprep.subr.bf16.mxu0 %v2007
    %2316 = vmatpush1.bf16.msra.mxu0 %v2006
    %2317 = vmatprep.subr.bf16.mxu0 %v2011
    %2318 = vmatpush1.bf16.msra.mxu0 %v2010
    %2319 = vmatprep.subr.bf16.mxu0 %v2015
    %2320 = vmatpush1.bf16.msra.mxu0 %v2014
    %2321 = vmatprep.subr.bf16.mxu0 %v2019
    %2322 = vmatpush1.bf16.msra.mxu0 %v2018
    %2323 = vmatprep.subr.bf16.mxu0 %v2023
    %2324 = vmatpush1.bf16.msra.mxu0 %v2022
    %2325 = vmatprep.subr.bf16.mxu0 %v2027
    %2326 = vmatpush1.bf16.msra.mxu0 %v2026
    %2327 = vmatprep.subr.bf16.mxu0 %v2031
    %2328 = vmatpush1.bf16.msra.mxu0 %v2030
    %2329 = vmatprep.subr.bf16.mxu0 %v2035
    %2330 = vmatpush1.bf16.msra.mxu0 %v2034
    %2331 = vmatprep.subr.bf16.mxu0 %v2039
    %2332 = vmatpush1.bf16.msra.mxu0 %v2038
    %2333 = vmatprep.subr.bf16.mxu0 %v2043
    %2334 = vmatpush1.bf16.msra.mxu0 %v2042
    %2335 = vmatprep.subr.bf16.mxu0 %v2047
    %2336 = vmatpush1.bf16.msra.mxu0 %v2046
    %2337 = vmatprep.mubr.bf16.mxu0 %v1385
    %2338 = vmatmul.mubr.bf16.gmra.mrb[0].mxu0 %v1384
    %v2339 = vpop.f32.mrb[0].mxu0
    %v2340 = vadd.f32 %v2297, %v2339
    %v2341 = vpop.f32.mrb[0].mxu0
    %v2342 = vadd.f32 %v2299, %v2341
    %v2343 = vpop.f32.mrb[0].mxu0
    %v2344 = vadd.f32 %v2301, %v2343
    %v2345 = vpop.f32.mrb[0].mxu0
    %v2346 = vadd.f32 %v2303, %v2345
    %2347 = vdwg.mxu0
    %v2348 = vmax.f32 %v2254, 0.0
    %v2349 = vmax.f32 %v2256, 0.0
    %v2350 = vmax.f32 %v2340, 0.0
    %v2351 = vmax.f32 %v2342, 0.0
    %v2352 = vmax.f32 %v2258, 0.0
    %v2353 = vmax.f32 %v2260, 0.0
    %v2354 = vmax.f32 %v2344, 0.0
    %v2355 = vmax.f32 %v2346, 0.0
    %v2356 = vpack.c.bf16 %v2352, %v2348
    %v2357 = vpack.c.bf16 %v2353, %v2349
    %v2358 = vpack.c.bf16 %v2354, %v2350
    %v2359 = vpack.c.bf16 %v2355, %v2351
    %v2360 = vld [vmem:[#allocation8] sm:$0xf]
    %v2361 = vld [vmem:[#allocation8 + $0x4] sm:$0xf]
    %v2362 = vld [vmem:[#allocation8 + $0x8] sm:$0xf]
    %v2363 = vld [vmem:[#allocation8 + $0xc] sm:$0xf]
    %v2364 = vld [vmem:[#allocation8 + $0x10] sm:$0xf]
    %v2365 = vld [vmem:[#allocation8 + $0x14] sm:$0xf]
    %v2366 = vld [vmem:[#allocation8 + $0x18] sm:$0xf]
    %v2367 = vld [vmem:[#allocation8 + $0x1c] sm:$0xf]
    %v2368 = vld [vmem:[#allocation8 + $0x20] sm:$0xf]
    %v2369 = vld [vmem:[#allocation8 + $0x24] sm:$0xf]
    %v2370 = vld [vmem:[#allocation8 + $0x28] sm:$0xf]
    %v2371 = vld [vmem:[#allocation8 + $0x2c] sm:$0xf]
    %v2372 = vld [vmem:[#allocation8 + $0x30] sm:$0xf]
    %v2373 = vld [vmem:[#allocation8 + $0x34] sm:$0xf]
    %v2374 = vld [vmem:[#allocation8 + $0x38] sm:$0xf]
    %v2375 = vld [vmem:[#allocation8 + $0x3c] sm:$0xf]
    %v2376 = vld [vmem:[#allocation8 + $0x40] sm:$0xf]
    %v2377 = vld [vmem:[#allocation8 + $0x44] sm:$0xf]
    %v2378 = vld [vmem:[#allocation8 + $0x48] sm:$0xf]
    %v2379 = vld [vmem:[#allocation8 + $0x4c] sm:$0xf]
    %v2380 = vld [vmem:[#allocation8 + $0x50] sm:$0xf]
    %v2381 = vld [vmem:[#allocation8 + $0x54] sm:$0xf]
    %v2382 = vld [vmem:[#allocation8 + $0x58] sm:$0xf]
    %v2383 = vld [vmem:[#allocation8 + $0x5c] sm:$0xf]
    %v2384 = vld [vmem:[#allocation8 + $0x60] sm:$0xf]
    %v2385 = vld [vmem:[#allocation8 + $0x64] sm:$0xf]
    %v2386 = vld [vmem:[#allocation8 + $0x68] sm:$0xf]
    %v2387 = vld [vmem:[#allocation8 + $0x6c] sm:$0xf]
    %v2388 = vld [vmem:[#allocation8 + $0x70] sm:$0xf]
    %v2389 = vld [vmem:[#allocation8 + $0x74] sm:$0xf]
    %v2390 = vld [vmem:[#allocation8 + $0x78] sm:$0xf]
    %v2391 = vld [vmem:[#allocation8 + $0x7c] sm:$0xf]
    %v2392 = vld [vmem:[#allocation8 + $0x80] sm:$0xf]
    %v2393 = vld [vmem:[#allocation8 + $0x84] sm:$0xf]
    %v2394 = vld [vmem:[#allocation8 + $0x88] sm:$0xf]
    %v2395 = vld [vmem:[#allocation8 + $0x8c] sm:$0xf]
    %v2396 = vld [vmem:[#allocation8 + $0x90] sm:$0xf]
    %v2397 = vld [vmem:[#allocation8 + $0x94] sm:$0xf]
    %v2398 = vld [vmem:[#allocation8 + $0x98] sm:$0xf]
    %v2399 = vld [vmem:[#allocation8 + $0x9c] sm:$0xf]
    %v2400 = vld [vmem:[#allocation8 + $0xa0] sm:$0xf]
    %v2401 = vld [vmem:[#allocation8 + $0xa4] sm:$0xf]
    %v2402 = vld [vmem:[#allocation8 + $0xa8] sm:$0xf]
    %v2403 = vld [vmem:[#allocation8 + $0xac] sm:$0xf]
    %v2404 = vld [vmem:[#allocation8 + $0xb0] sm:$0xf]
    %v2405 = vld [vmem:[#allocation8 + $0xb4] sm:$0xf]
    %v2406 = vld [vmem:[#allocation8 + $0xb8] sm:$0xf]
    %v2407 = vld [vmem:[#allocation8 + $0xbc] sm:$0xf]
    %v2408 = vld [vmem:[#allocation8 + $0xc0] sm:$0xf]
    %v2409 = vld [vmem:[#allocation8 + $0xc4] sm:$0xf]
    %v2410 = vld [vmem:[#allocation8 + $0xc8] sm:$0xf]
    %v2411 = vld [vmem:[#allocation8 + $0xcc] sm:$0xf]
    %v2412 = vld [vmem:[#allocation8 + $0xd0] sm:$0xf]
    %v2413 = vld [vmem:[#allocation8 + $0xd4] sm:$0xf]
    %v2414 = vld [vmem:[#allocation8 + $0xd8] sm:$0xf]
    %v2415 = vld [vmem:[#allocation8 + $0xdc] sm:$0xf]
    %v2416 = vld [vmem:[#allocation8 + $0xe0] sm:$0xf]
    %v2417 = vld [vmem:[#allocation8 + $0xe4] sm:$0xf]
    %v2418 = vld [vmem:[#allocation8 + $0xe8] sm:$0xf]
    %v2419 = vld [vmem:[#allocation8 + $0xec] sm:$0xf]
    %v2420 = vld [vmem:[#allocation8 + $0xf0] sm:$0xf]
    %v2421 = vld [vmem:[#allocation8 + $0xf4] sm:$0xf]
    %v2422 = vld [vmem:[#allocation8 + $0xf8] sm:$0xf]
    %v2423 = vld [vmem:[#allocation8 + $0xfc] sm:$0xf]
    %v2424 = vld [vmem:[%s8] sm:$0x1]
    %v2426 = vlaneseq
    %v2427 = vshrl.u32 %v2426, 7
    %v2428 = vsub.s32 0, %v2427
    %v2429 = vrot.slane %v2424, %v2428
    %v2495 = vunpack.c.l.b16 %v2360
    %v2496 = vunpack.c.l.b16 %v2361
    %v2497 = vunpack.c.l.b16 %v2362
    %v2498 = vunpack.c.l.b16 %v2363
    %v2499 = vunpack.c.l.b16 %v2364
    %v2500 = vunpack.c.l.b16 %v2365
    %v2501 = vunpack.c.l.b16 %v2366
    %v2502 = vunpack.c.l.b16 %v2367
    %v2503 = vunpack.c.l.b16 %v2368
    %v2504 = vunpack.c.l.b16 %v2369
    %v2505 = vunpack.c.l.b16 %v2370
    %v2506 = vunpack.c.l.b16 %v2371
    %v2507 = vunpack.c.l.b16 %v2372
    %v2508 = vunpack.c.l.b16 %v2373
    %v2509 = vunpack.c.l.b16 %v2374
    %v2510 = vunpack.c.l.b16 %v2375
    %v2511 = vunpack.c.l.b16 %v2376
    %v2512 = vunpack.c.l.b16 %v2377
    %v2513 = vunpack.c.l.b16 %v2378
    %v2514 = vunpack.c.l.b16 %v2379
    %v2515 = vunpack.c.l.b16 %v2380
    %v2516 = vunpack.c.l.b16 %v2381
    %v2517 = vunpack.c.l.b16 %v2382
    %v2518 = vunpack.c.l.b16 %v2383
    %v2519 = vunpack.c.l.b16 %v2384
    %v2520 = vunpack.c.l.b16 %v2385
    %v2521 = vunpack.c.l.b16 %v2386
    %v2522 = vunpack.c.l.b16 %v2387
    %v2523 = vunpack.c.l.b16 %v2388
    %v2524 = vunpack.c.l.b16 %v2389
    %v2525 = vunpack.c.l.b16 %v2390
    %v2526 = vunpack.c.l.b16 %v2391
    %v2527 = vunpack.c.l.b16 %v2392
    %v2528 = vunpack.c.l.b16 %v2393
    %v2529 = vunpack.c.l.b16 %v2394
    %v2530 = vunpack.c.l.b16 %v2395
    %v2531 = vunpack.c.l.b16 %v2396
    %v2532 = vunpack.c.l.b16 %v2397
    %v2533 = vunpack.c.l.b16 %v2398
    %v2534 = vunpack.c.l.b16 %v2399
    %v2535 = vunpack.c.l.b16 %v2400
    %v2536 = vunpack.c.l.b16 %v2401
    %v2537 = vunpack.c.l.b16 %v2402
    %v2538 = vunpack.c.l.b16 %v2403
    %v2539 = vunpack.c.l.b16 %v2404
    %v2540 = vunpack.c.l.b16 %v2405
    %v2541 = vunpack.c.l.b16 %v2406
    %v2542 = vunpack.c.l.b16 %v2407
    %v2543 = vunpack.c.l.b16 %v2408
    %v2544 = vunpack.c.l.b16 %v2409
    %v2545 = vunpack.c.l.b16 %v2410
    %v2546 = vunpack.c.l.b16 %v2411
    %v2547 = vunpack.c.l.b16 %v2412
    %v2548 = vunpack.c.l.b16 %v2413
    %v2549 = vunpack.c.l.b16 %v2414
    %v2550 = vunpack.c.l.b16 %v2415
    %v2551 = vunpack.c.l.b16 %v2416
    %v2552 = vunpack.c.l.b16 %v2417
    %v2553 = vunpack.c.l.b16 %v2418
    %v2554 = vunpack.c.l.b16 %v2419
    %v2555 = vunpack.c.l.b16 %v2420
    %v2556 = vunpack.c.l.b16 %v2421
    %v2557 = vunpack.c.l.b16 %v2422
    %v2558 = vunpack.c.l.b16 %v2423
    %v2559 = vpack.c.b16 %v2496, %v2495
    %v2560 = vpack.c.b16 %v2498, %v2497
    %v2561 = vpack.c.b16 %v2500, %v2499
    %v2562 = vpack.c.b16 %v2502, %v2501
    %v2563 = vpack.c.b16 %v2504, %v2503
    %v2564 = vpack.c.b16 %v2506, %v2505
    %v2565 = vpack.c.b16 %v2508, %v2507
    %v2566 = vpack.c.b16 %v2510, %v2509
    %v2567 = vpack.c.b16 %v2512, %v2511
    %v2568 = vpack.c.b16 %v2514, %v2513
    %v2569 = vpack.c.b16 %v2516, %v2515
    %v2570 = vpack.c.b16 %v2518, %v2517
    %v2571 = vpack.c.b16 %v2520, %v2519
    %v2572 = vpack.c.b16 %v2522, %v2521
    %v2573 = vpack.c.b16 %v2524, %v2523
    %v2574 = vpack.c.b16 %v2526, %v2525
    %v2575 = vpack.c.b16 %v2528, %v2527
    %v2576 = vpack.c.b16 %v2530, %v2529
    %v2577 = vpack.c.b16 %v2532, %v2531
    %v2578 = vpack.c.b16 %v2534, %v2533
    %v2579 = vpack.c.b16 %v2536, %v2535
    %v2580 = vpack.c.b16 %v2538, %v2537
    %v2581 = vpack.c.b16 %v2540, %v2539
    %v2582 = vpack.c.b16 %v2542, %v2541
    %v2583 = vpack.c.b16 %v2544, %v2543
    %v2584 = vpack.c.b16 %v2546, %v2545
    %v2585 = vpack.c.b16 %v2548, %v2547
    %v2586 = vpack.c.b16 %v2550, %v2549
    %v2587 = vpack.c.b16 %v2552, %v2551
    %v2588 = vpack.c.b16 %v2554, %v2553
    %v2589 = vpack.c.b16 %v2556, %v2555
    %v2590 = vpack.c.b16 %v2558, %v2557
    %2623 = vmatprep.subr.bf16.mxu0 0
    %2624 = vmatpush1.bf16.msra.mxu0 %v2559
    %2625 = vmatprep.subr.bf16.mxu0 0
    %2626 = vmatpush1.bf16.msra.mxu0 %v2560
    %2627 = vmatprep.subr.bf16.mxu0 0
    %2628 = vmatpush1.bf16.msra.mxu0 %v2561
    %2629 = vmatprep.subr.bf16.mxu0 0
    %2630 = vmatpush1.bf16.msra.mxu0 %v2562
    %2631 = vmatprep.subr.bf16.mxu0 0
    %2632 = vmatpush1.bf16.msra.mxu0 %v2563
    %2633 = vmatprep.subr.bf16.mxu0 0
    %2634 = vmatpush1.bf16.msra.mxu0 %v2564
    %2635 = vmatprep.subr.bf16.mxu0 0
    %2636 = vmatpush1.bf16.msra.mxu0 %v2565
    %2637 = vmatprep.subr.bf16.mxu0 0
    %2638 = vmatpush1.bf16.msra.mxu0 %v2566
    %2639 = vmatprep.subr.bf16.mxu0 0
    %2640 = vmatpush1.bf16.msra.mxu0 %v2567
    %2641 = vmatprep.subr.bf16.mxu0 0
    %2642 = vmatpush1.bf16.msra.mxu0 %v2568
    %2643 = vmatprep.subr.bf16.mxu0 0
    %2644 = vmatpush1.bf16.msra.mxu0 %v2569
    %2645 = vmatprep.subr.bf16.mxu0 0
    %2646 = vmatpush1.bf16.msra.mxu0 %v2570
    %2647 = vmatprep.subr.bf16.mxu0 0
    %2648 = vmatpush1.bf16.msra.mxu0 %v2571
    %2649 = vmatprep.subr.bf16.mxu0 0
    %2650 = vmatpush1.bf16.msra.mxu0 %v2572
    %2651 = vmatprep.subr.bf16.mxu0 0
    %2652 = vmatpush1.bf16.msra.mxu0 %v2573
    %2653 = vmatprep.subr.bf16.mxu0 0
    %2654 = vmatpush1.bf16.msra.mxu0 %v2574
    %2655 = vmatprep.mubr.bf16.mxu0 %v2357
    %2656 = vmatmul.mubr.bf16.gmra.mrb[0].mxu0 %v2356
    %v2657 = vpop.f32.mrb[0].mxu0
    %v2658 = vadd.f32 %v2429, %v2657
    %v2659 = vpop.f32.mrb[0].mxu0
    %v2660 = vpop.f32.mrb[0].mxu0
    %v2661 = vadd.f32 %v2429, %v2660
    %v2662 = vpop.f32.mrb[0].mxu0
    %2663 = vdwg.mxu0
    %2664 = vmatprep.subr.bf16.mxu0 0
    %2665 = vmatpush1.bf16.msra.mxu0 %v2575
    %2666 = vmatprep.subr.bf16.mxu0 0
    %2667 = vmatpush1.bf16.msra.mxu0 %v2576
    %2668 = vmatprep.subr.bf16.mxu0 0
    %2669 = vmatpush1.bf16.msra.mxu0 %v2577
    %2670 = vmatprep.subr.bf16.mxu0 0
    %2671 = vmatpush1.bf16.msra.mxu0 %v2578
    %2672 = vmatprep.subr.bf16.mxu0 0
    %2673 = vmatpush1.bf16.msra.mxu0 %v2579
    %2674 = vmatprep.subr.bf16.mxu0 0
    %2675 = vmatpush1.bf16.msra.mxu0 %v2580
    %2676 = vmatprep.subr.bf16.mxu0 0
    %2677 = vmatpush1.bf16.msra.mxu0 %v2581
    %2678 = vmatprep.subr.bf16.mxu0 0
    %2679 = vmatpush1.bf16.msra.mxu0 %v2582
    %2680 = vmatprep.subr.bf16.mxu0 0
    %2681 = vmatpush1.bf16.msra.mxu0 %v2583
    %2682 = vmatprep.subr.bf16.mxu0 0
    %2683 = vmatpush1.bf16.msra.mxu0 %v2584
    %2684 = vmatprep.subr.bf16.mxu0 0
    %2685 = vmatpush1.bf16.msra.mxu0 %v2585
    %2686 = vmatprep.subr.bf16.mxu0 0
    %2687 = vmatpush1.bf16.msra.mxu0 %v2586
    %2688 = vmatprep.subr.bf16.mxu0 0
    %2689 = vmatpush1.bf16.msra.mxu0 %v2587
    %2690 = vmatprep.subr.bf16.mxu0 0
    %2691 = vmatpush1.bf16.msra.mxu0 %v2588
    %2692 = vmatprep.subr.bf16.mxu0 0
    %2693 = vmatpush1.bf16.msra.mxu0 %v2589
    %2694 = vmatprep.subr.bf16.mxu0 0
    %2695 = vmatpush1.bf16.msra.mxu0 %v2590
    %2696 = vmatprep.mubr.bf16.mxu0 %v2359
    %2697 = vmatmul.mubr.bf16.gmra.mrb[0].mxu0 %v2358
    %v2698 = vpop.f32.mrb[0].mxu0
    %v2699 = vadd.f32 %v2658, %v2698
    %v2700 = vpop.f32.mrb[0].mxu0
    %v2701 = vpop.f32.mrb[0].mxu0
    %v2702 = vadd.f32 %v2661, %v2701
    %v2703 = vpop.f32.mrb[0].mxu0
    %2704 = vdwg.mxu0
    %v2705 = vtanh.pop %v2699
    %v2706 = vtanh.pop %v2702
    %v2707 = vmul.f32 %v2705, 0.397
    %v2708 = vmul.f32 %v2706, 0.397
    %v2709 = vpack.c.bf16 %v2708, %v2707
    %v2711 = vunpack.c.l.b16 %v2709
    %v2712 = vunpack.c.h.b16 %v2709
    %v2713 = vpack.c.b16 %v2711, %v2711
    %v2714 = vpack.c.b16 %v2712, %v2712
    %2717 = vst [vmem:[%s9] sm:$0xf] %v2713
    %2718 = vst [vmem:[%s9 + $0x4] sm:$0xf] %v2714
    %v2719 = vld [vmem:[#allocation2 + $0x8] sm:$0xff]
    %v2720 = vld [vmem:[#allocation3] sm:$0xff]
    %v2721 = vld [vmem:[#allocation3 + $0x8] sm:$0xff]
    %v2722 = vld [vmem:[#allocation3 + $0x10] sm:$0xff]
    %v2723 = vld [vmem:[#allocation3 + $0x18] sm:$0xff]
    %v2724 = vld [vmem:[#allocation3 + $0x20] sm:$0xff]
    %v2725 = vld [vmem:[#allocation3 + $0x28] sm:$0xff]
    %v2726 = vld [vmem:[#allocation3 + $0x30] sm:$0xff]
    %v2727 = vld [vmem:[#allocation3 + $0x38] sm:$0xff]
    %v2728 = vld [vmem:[#allocation3 + $0x40] sm:$0xff]
    %v2729 = vld [vmem:[#allocation3 + $0x48] sm:$0xff]
    %v2730 = vld [vmem:[#allocation3 + $0x50] sm:$0xff]
    %v2731 = vld [vmem:[#allocation3 + $0x58] sm:$0xff]
    %v2732 = vld [vmem:[#allocation3 + $0x60] sm:$0xff]
    %v2733 = vld [vmem:[#allocation3 + $0x68] sm:$0xff]
    %v2734 = vld [vmem:[#allocation3 + $0x70] sm:$0xff]
    %v2735 = vld [vmem:[#allocation3 + $0x78] sm:$0xff]
    %v2736 = vld [vmem:[#allocation3 + $0x80] sm:$0xff]
    %v2737 = vld [vmem:[#allocation3 + $0x88] sm:$0xff]
    %v2738 = vld [vmem:[#allocation3 + $0x90] sm:$0xff]
    %v2739 = vld [vmem:[#allocation3 + $0x98] sm:$0xff]
    %v2740 = vld [vmem:[#allocation3 + $0xa0] sm:$0xff]
    %v2741 = vld [vmem:[#allocation3 + $0xa8] sm:$0xff]
    %v2742 = vld [vmem:[#allocation3 + $0xb0] sm:$0xff]
    %v2743 = vld [vmem:[#allocation3 + $0xb8] sm:$0xff]
    %v2744 = vld [vmem:[#allocation3 + $0xc0] sm:$0xff]
    %v2745 = vld [vmem:[#allocation3 + $0xc8] sm:$0xff]
    %v2746 = vld [vmem:[#allocation3 + $0xd0] sm:$0xff]
    %v2747 = vld [vmem:[#allocation3 + $0xd8] sm:$0xff]
    %v2748 = vld [vmem:[#allocation3 + $0xe0] sm:$0xff]
    %v2749 = vld [vmem:[#allocation3 + $0xe8] sm:$0xff]
    %v2750 = vld [vmem:[#allocation3 + $0xf0] sm:$0xff]
    %v2751 = vld [vmem:[#allocation3 + $0xf8] sm:$0xff]
    %v2752 = vld [vmem:[%s2] sm:$0xf]
    %v2754 = vlaneseq
    %v2755 = vshrl.u32 %v2754, 7
    %v2756 = vsub.s32 0, %v2755
    %v2757 = vrot.slane %v2752, %v2756
    %v2758 = vlaneseq
    %v2759 = vshrl.u32 %v2758, 7
    %v2760 = vsub.s32 1, %v2759
    %v2761 = vrot.slane %v2752, %v2760
    %v2762 = vlaneseq
    %v2763 = vshrl.u32 %v2762, 7
    %v2764 = vsub.s32 2, %v2763
    %v2765 = vrot.slane %v2752, %v2764
    %v2766 = vlaneseq
    %v2767 = vshrl.u32 %v2766, 7
    %v2768 = vsub.s32 3, %v2767
    %v2769 = vrot.slane %v2752, %v2768
    %v2806 = vunpack.c.l.b16 %v2720
    %v2807 = vunpack.c.h.b16 %v2720
    %v2808 = vunpack.c.l.b16 %v2721
    %v2809 = vunpack.c.h.b16 %v2721
    %v2810 = vunpack.c.l.b16 %v2722
    %v2811 = vunpack.c.h.b16 %v2722
    %v2812 = vunpack.c.l.b16 %v2723
    %v2813 = vunpack.c.h.b16 %v2723
    %v2814 = vunpack.c.l.b16 %v2724
    %v2815 = vunpack.c.h.b16 %v2724
    %v2816 = vunpack.c.l.b16 %v2725
    %v2817 = vunpack.c.h.b16 %v2725
    %v2818 = vunpack.c.l.b16 %v2726
    %v2819 = vunpack.c.h.b16 %v2726
    %v2820 = vunpack.c.l.b16 %v2727
    %v2821 = vunpack.c.h.b16 %v2727
    %v2822 = vunpack.c.l.b16 %v2728
    %v2823 = vunpack.c.h.b16 %v2728
    %v2824 = vunpack.c.l.b16 %v2729
    %v2825 = vunpack.c.h.b16 %v2729
    %v2826 = vunpack.c.l.b16 %v2730
    %v2827 = vunpack.c.h.b16 %v2730
    %v2828 = vunpack.c.l.b16 %v2731
    %v2829 = vunpack.c.h.b16 %v2731
    %v2830 = vunpack.c.l.b16 %v2732
    %v2831 = vunpack.c.h.b16 %v2732
    %v2832 = vunpack.c.l.b16 %v2733
    %v2833 = vunpack.c.h.b16 %v2733
    %v2834 = vunpack.c.l.b16 %v2734
    %v2835 = vunpack.c.h.b16 %v2734
    %v2836 = vunpack.c.l.b16 %v2735
    %v2837 = vunpack.c.h.b16 %v2735
    %v2838 = vunpack.c.l.b16 %v2736
    %v2839 = vunpack.c.h.b16 %v2736
    %v2840 = vunpack.c.l.b16 %v2737
    %v2841 = vunpack.c.h.b16 %v2737
    %v2842 = vunpack.c.l.b16 %v2738
    %v2843 = vunpack.c.h.b16 %v2738
    %v2844 = vunpack.c.l.b16 %v2739
    %v2845 = vunpack.c.h.b16 %v2739
    %v2846 = vunpack.c.l.b16 %v2740
    %v2847 = vunpack.c.h.b16 %v2740
    %v2848 = vunpack.c.l.b16 %v2741
    %v2849 = vunpack.c.h.b16 %v2741
    %v2850 = vunpack.c.l.b16 %v2742
    %v2851 = vunpack.c.h.b16 %v2742
    %v2852 = vunpack.c.l.b16 %v2743
    %v2853 = vunpack.c.h.b16 %v2743
    %v2854 = vunpack.c.l.b16 %v2744
    %v2855 = vunpack.c.h.b16 %v2744
    %v2856 = vunpack.c.l.b16 %v2745
    %v2857 = vunpack.c.h.b16 %v2745
    %v2858 = vunpack.c.l.b16 %v2746
    %v2859 = vunpack.c.h.b16 %v2746
    %v2860 = vunpack.c.l.b16 %v2747
    %v2861 = vunpack.c.h.b16 %v2747
    %v2862 = vunpack.c.l.b16 %v2748
    %v2863 = vunpack.c.h.b16 %v2748
    %v2864 = vunpack.c.l.b16 %v2749
    %v2865 = vunpack.c.h.b16 %v2749
    %v2866 = vunpack.c.l.b16 %v2750
    %v2867 = vunpack.c.h.b16 %v2750
    %v2868 = vunpack.c.l.b16 %v2751
    %v2869 = vunpack.c.h.b16 %v2751
    %v2870 = vpack.c.b16 %v2810, %v2806
    %v2871 = vpack.c.b16 %v2811, %v2807
    %v2872 = vpack.c.b16 %v2812, %v2808
    %v2873 = vpack.c.b16 %v2813, %v2809
    %v2874 = vpack.c.b16 %v2818, %v2814
    %v2875 = vpack.c.b16 %v2819, %v2815
    %v2876 = vpack.c.b16 %v2820, %v2816
    %v2877 = vpack.c.b16 %v2821, %v2817
    %v2878 = vpack.c.b16 %v2826, %v2822
    %v2879 = vpack.c.b16 %v2827, %v2823
    %v2880 = vpack.c.b16 %v2828, %v2824
    %v2881 = vpack.c.b16 %v2829, %v2825
    %v2882 = vpack.c.b16 %v2834, %v2830
    %v2883 = vpack.c.b16 %v2835, %v2831
    %v2884 = vpack.c.b16 %v2836, %v2832
    %v2885 = vpack.c.b16 %v2837, %v2833
    %v2886 = vpack.c.b16 %v2842, %v2838
    %v2887 = vpack.c.b16 %v2843, %v2839
    %v2888 = vpack.c.b16 %v2844, %v2840
    %v2889 = vpack.c.b16 %v2845, %v2841
    %v2890 = vpack.c.b16 %v2850, %v2846
    %v2891 = vpack.c.b16 %v2851, %v2847
    %v2892 = vpack.c.b16 %v2852, %v2848
    %v2893 = vpack.c.b16 %v2853, %v2849
    %v2894 = vpack.c.b16 %v2858, %v2854
    %v2895 = vpack.c.b16 %v2859, %v2855
    %v2896 = vpack.c.b16 %v2860, %v2856
    %v2897 = vpack.c.b16 %v2861, %v2857
    %v2898 = vpack.c.b16 %v2866, %v2862
    %v2899 = vpack.c.b16 %v2867, %v2863
    %v2900 = vpack.c.b16 %v2868, %v2864
    %v2901 = vpack.c.b16 %v2869, %v2865
    %2934 = vmatprep.subr.bf16.mxu0 %v2871
    %2935 = vmatpush1.bf16.msra.mxu0 %v2870
    %2936 = vmatprep.subr.bf16.mxu0 %v2875
    %2937 = vmatpush1.bf16.msra.mxu0 %v2874
    %2938 = vmatprep.subr.bf16.mxu0 %v2879
    %2939 = vmatpush1.bf16.msra.mxu0 %v2878
    %2940 = vmatprep.subr.bf16.mxu0 %v2883
    %2941 = vmatpush1.bf16.msra.mxu0 %v2882
    %2942 = vmatprep.subr.bf16.mxu0 %v2887
    %2943 = vmatpush1.bf16.msra.mxu0 %v2886
    %2944 = vmatprep.subr.bf16.mxu0 %v2891
    %2945 = vmatpush1.bf16.msra.mxu0 %v2890
    %2946 = vmatprep.subr.bf16.mxu0 %v2895
    %2947 = vmatpush1.bf16.msra.mxu0 %v2894
    %2948 = vmatprep.subr.bf16.mxu0 %v2899
    %2949 = vmatpush1.bf16.msra.mxu0 %v2898
    %2950 = vmatprep.subr.bf16.mxu0 0
    %2951 = vmatpush1.bf16.msra.mxu0 0
    %2952 = vmatprep.subr.bf16.mxu0 0
    %2953 = vmatpush1.bf16.msra.mxu0 0
    %2954 = vmatprep.subr.bf16.mxu0 0
    %2955 = vmatpush1.bf16.msra.mxu0 0
    %2956 = vmatprep.subr.bf16.mxu0 0
    %2957 = vmatpush1.bf16.msra.mxu0 0
    %2958 = vmatprep.subr.bf16.mxu0 0
    %2959 = vmatpush1.bf16.msra.mxu0 0
    %2960 = vmatprep.subr.bf16.mxu0 0
    %2961 = vmatpush1.bf16.msra.mxu0 0
    %2962 = vmatprep.subr.bf16.mxu0 0
    %2963 = vmatpush1.bf16.msra.mxu0 0
    %2964 = vmatprep.subr.bf16.mxu0 0
    %2965 = vmatpush1.bf16.msra.mxu0 0
    %2966 = vmatprep.mubr.bf16.mxu0 0
    %2967 = vmatmul.mubr.bf16.gmra.mrb[0].mxu0 %v2719
    %v2968 = vpop.f32.mrb[0].mxu0
    %v2969 = vadd.f32 %v2757, %v2968
    %v2970 = vpop.f32.mrb[0].mxu0
    %v2971 = vadd.f32 %v2761, %v2970
    %v2972 = vpop.f32.mrb[0].mxu0
    %v2973 = vadd.f32 %v2757, %v2972
    %v2974 = vpop.f32.mrb[0].mxu0
    %v2975 = vadd.f32 %v2761, %v2974
    %2976 = vdwg.mxu0
    %2977 = vmatprep.subr.bf16.mxu0 %v2873
    %2978 = vmatpush1.bf16.msra.mxu0 %v2872
    %2979 = vmatprep.subr.bf16.mxu0 %v2877
    %2980 = vmatpush1.bf16.msra.mxu0 %v2876
    %2981 = vmatprep.subr.bf16.mxu0 %v2881
    %2982 = vmatpush1.bf16.msra.mxu0 %v2880
    %2983 = vmatprep.subr.bf16.mxu0 %v2885
    %2984 = vmatpush1.bf16.msra.mxu0 %v2884
    %2985 = vmatprep.subr.bf16.mxu0 %v2889
    %2986 = vmatpush1.bf16.msra.mxu0 %v2888
    %2987 = vmatprep.subr.bf16.mxu0 %v2893
    %2988 = vmatpush1.bf16.msra.mxu0 %v2892
    %2989 = vmatprep.subr.bf16.mxu0 %v2897
    %2990 = vmatpush1.bf16.msra.mxu0 %v2896
    %2991 = vmatprep.subr.bf16.mxu0 %v2901
    %2992 = vmatpush1.bf16.msra.mxu0 %v2900
    %2993 = vmatprep.subr.bf16.mxu0 0
    %2994 = vmatpush1.bf16.msra.mxu0 0
    %2995 = vmatprep.subr.bf16.mxu0 0
    %2996 = vmatpush1.bf16.msra.mxu0 0
    %2997 = vmatprep.subr.bf16.mxu0 0
    %2998 = vmatpush1.bf16.msra.mxu0 0
    %2999 = vmatprep.subr.bf16.mxu0 0
    %3000 = vmatpush1.bf16.msra.mxu0 0
    %3001 = vmatprep.subr.bf16.mxu0 0
    %3002 = vmatpush1.bf16.msra.mxu0 0
    %3003 = vmatprep.subr.bf16.mxu0 0
    %3004 = vmatpush1.bf16.msra.mxu0 0
    %3005 = vmatprep.subr.bf16.mxu0 0
    %3006 = vmatpush1.bf16.msra.mxu0 0
    %3007 = vmatprep.subr.bf16.mxu0 0
    %3008 = vmatpush1.bf16.msra.mxu0 0
    %3009 = vmatprep.mubr.bf16.mxu0 0
    %3010 = vmatmul.mubr.bf16.gmra.mrb[0].mxu0 %v2719
    %v3011 = vpop.f32.mrb[0].mxu0
    %v3012 = vadd.f32 %v2765, %v3011
    %v3013 = vpop.f32.mrb[0].mxu0
    %v3014 = vadd.f32 %v2769, %v3013
    %v3015 = vpop.f32.mrb[0].mxu0
    %v3016 = vadd.f32 %v2765, %v3015
    %v3017 = vpop.f32.mrb[0].mxu0
    %v3018 = vadd.f32 %v2769, %v3017
    %3019 = vdwg.mxu0
    %v3020 = vmax.f32 %v2969, 0.0
    %v3021 = vmax.f32 %v2971, 0.0
    %v3022 = vmax.f32 %v3012, 0.0
    %v3023 = vmax.f32 %v3014, 0.0
    %v3024 = vmax.f32 %v2973, 0.0
    %v3025 = vmax.f32 %v2975, 0.0
    %v3026 = vmax.f32 %v3016, 0.0
    %v3027 = vmax.f32 %v3018, 0.0
    %v3028 = vpack.c.bf16 %v3024, %v3020
    %v3029 = vpack.c.bf16 %v3025, %v3021
    %v3030 = vpack.c.bf16 %v3026, %v3022
    %v3031 = vpack.c.bf16 %v3027, %v3023
    %v3032 = vld [vmem:[#allocation5] sm:$0xff]
    %v3033 = vld [vmem:[#allocation5 + $0x8] sm:$0xff]
    %v3034 = vld [vmem:[#allocation5 + $0x10] sm:$0xff]
    %v3035 = vld [vmem:[#allocation5 + $0x18] sm:$0xff]
    %v3036 = vld [vmem:[#allocation5 + $0x20] sm:$0xff]
    %v3037 = vld [vmem:[#allocation5 + $0x28] sm:$0xff]
    %v3038 = vld [vmem:[#allocation5 + $0x30] sm:$0xff]
    %v3039 = vld [vmem:[#allocation5 + $0x38] sm:$0xff]
    %v3040 = vld [vmem:[#allocation5 + $0x40] sm:$0xff]
    %v3041 = vld [vmem:[#allocation5 + $0x48] sm:$0xff]
    %v3042 = vld [vmem:[#allocation5 + $0x50] sm:$0xff]
    %v3043 = vld [vmem:[#allocation5 + $0x58] sm:$0xff]
    %v3044 = vld [vmem:[#allocation5 + $0x60] sm:$0xff]
    %v3045 = vld [vmem:[#allocation5 + $0x68] sm:$0xff]
    %v3046 = vld [vmem:[#allocation5 + $0x70] sm:$0xff]
    %v3047 = vld [vmem:[#allocation5 + $0x78] sm:$0xff]
    %v3048 = vld [vmem:[#allocation5 + $0x80] sm:$0xff]
    %v3049 = vld [vmem:[#allocation5 + $0x88] sm:$0xff]
    %v3050 = vld [vmem:[#allocation5 + $0x90] sm:$0xff]
    %v3051 = vld [vmem:[#allocation5 + $0x98] sm:$0xff]
    %v3052 = vld [vmem:[#allocation5 + $0xa0] sm:$0xff]
    %v3053 = vld [vmem:[#allocation5 + $0xa8] sm:$0xff]
    %v3054 = vld [vmem:[#allocation5 + $0xb0] sm:$0xff]
    %v3055 = vld [vmem:[#allocation5 + $0xb8] sm:$0xff]
    %v3056 = vld [vmem:[#allocation5 + $0xc0] sm:$0xff]
    %v3057 = vld [vmem:[#allocation5 + $0xc8] sm:$0xff]
    %v3058 = vld [vmem:[#allocation5 + $0xd0] sm:$0xff]
    %v3059 = vld [vmem:[#allocation5 + $0xd8] sm:$0xff]
    %v3060 = vld [vmem:[#allocation5 + $0xe0] sm:$0xff]
    %v3061 = vld [vmem:[#allocation5 + $0xe8] sm:$0xff]
    %v3062 = vld [vmem:[#allocation5 + $0xf0] sm:$0xff]
    %v3063 = vld [vmem:[#allocation5 + $0xf8] sm:$0xff]
    %v3064 = vld [vmem:[#allocation5 + $0x100] sm:$0xff]
    %v3065 = vld [vmem:[#allocation5 + $0x108] sm:$0xff]
    %v3066 = vld [vmem:[#allocation5 + $0x110] sm:$0xff]
    %v3067 = vld [vmem:[#allocation5 + $0x118] sm:$0xff]
    %v3068 = vld [vmem:[#allocation5 + $0x120] sm:$0xff]
    %v3069 = vld [vmem:[#allocation5 + $0x128] sm:$0xff]
    %v3070 = vld [vmem:[#allocation5 + $0x130] sm:$0xff]
    %v3071 = vld [vmem:[#allocation5 + $0x138] sm:$0xff]
    %v3072 = vld [vmem:[#allocation5 + $0x140] sm:$0xff]
    %v3073 = vld [vmem:[#allocation5 + $0x148] sm:$0xff]
    %v3074 = vld [vmem:[#allocation5 + $0x150] sm:$0xff]
    %v3075 = vld [vmem:[#allocation5 + $0x158] sm:$0xff]
    %v3076 = vld [vmem:[#allocation5 + $0x160] sm:$0xff]
    %v3077 = vld [vmem:[#allocation5 + $0x168] sm:$0xff]
    %v3078 = vld [vmem:[#allocation5 + $0x170] sm:$0xff]
    %v3079 = vld [vmem:[#allocation5 + $0x178] sm:$0xff]
    %v3080 = vld [vmem:[#allocation5 + $0x180] sm:$0xff]
    %v3081 = vld [vmem:[#allocation5 + $0x188] sm:$0xff]
    %v3082 = vld [vmem:[#allocation5 + $0x190] sm:$0xff]
    %v3083 = vld [vmem:[#allocation5 + $0x198] sm:$0xff]
    %v3084 = vld [vmem:[#allocation5 + $0x1a0] sm:$0xff]
    %v3085 = vld [vmem:[#allocation5 + $0x1a8] sm:$0xff]
    %v3086 = vld [vmem:[#allocation5 + $0x1b0] sm:$0xff]
    %v3087 = vld [vmem:[#allocation5 + $0x1b8] sm:$0xff]
    %v3088 = vld [vmem:[#allocation5 + $0x1c0] sm:$0xff]
    %v3089 = vld [vmem:[#allocation5 + $0x1c8] sm:$0xff]
    %v3090 = vld [vmem:[#allocation5 + $0x1d0] sm:$0xff]
    %v3091 = vld [vmem:[#allocation5 + $0x1d8] sm:$0xff]
    %v3092 = vld [vmem:[#allocation5 + $0x1e0] sm:$0xff]
    %v3093 = vld [vmem:[#allocation5 + $0x1e8] sm:$0xff]
    %v3094 = vld [vmem:[#allocation5 + $0x1f0] sm:$0xff]
    %v3095 = vld [vmem:[#allocation5 + $0x1f8] sm:$0xff]
    %v3096 = vld [vmem:[#allocation5 + $0x200] sm:$0xff]
    %v3097 = vld [vmem:[#allocation5 + $0x208] sm:$0xff]
    %v3098 = vld [vmem:[#allocation5 + $0x210] sm:$0xff]
    %v3099 = vld [vmem:[#allocation5 + $0x218] sm:$0xff]
    %v3100 = vld [vmem:[#allocation5 + $0x220] sm:$0xff]
    %v3101 = vld [vmem:[#allocation5 + $0x228] sm:$0xff]
    %v3102 = vld [vmem:[#allocation5 + $0x230] sm:$0xff]
    %v3103 = vld [vmem:[#allocation5 + $0x238] sm:$0xff]
    %v3104 = vld [vmem:[#allocation5 + $0x240] sm:$0xff]
    %v3105 = vld [vmem:[#allocation5 + $0x248] sm:$0xff]
    %v3106 = vld [vmem:[#allocation5 + $0x250] sm:$0xff]
    %v3107 = vld [vmem:[#allocation5 + $0x258] sm:$0xff]
    %v3108 = vld [vmem:[#allocation5 + $0x260] sm:$0xff]
    %v3109 = vld [vmem:[#allocation5 + $0x268] sm:$0xff]
    %v3110 = vld [vmem:[#allocation5 + $0x270] sm:$0xff]
    %v3111 = vld [vmem:[#allocation5 + $0x278] sm:$0xff]
    %v3112 = vld [vmem:[#allocation5 + $0x280] sm:$0xff]
    %v3113 = vld [vmem:[#allocation5 + $0x288] sm:$0xff]
    %v3114 = vld [vmem:[#allocation5 + $0x290] sm:$0xff]
    %v3115 = vld [vmem:[#allocation5 + $0x298] sm:$0xff]
    %v3116 = vld [vmem:[#allocation5 + $0x2a0] sm:$0xff]
    %v3117 = vld [vmem:[#allocation5 + $0x2a8] sm:$0xff]
    %v3118 = vld [vmem:[#allocation5 + $0x2b0] sm:$0xff]
    %v3119 = vld [vmem:[#allocation5 + $0x2b8] sm:$0xff]
    %v3120 = vld [vmem:[#allocation5 + $0x2c0] sm:$0xff]
    %v3121 = vld [vmem:[#allocation5 + $0x2c8] sm:$0xff]
    %v3122 = vld [vmem:[#allocation5 + $0x2d0] sm:$0xff]
    %v3123 = vld [vmem:[#allocation5 + $0x2d8] sm:$0xff]
    %v3124 = vld [vmem:[#allocation5 + $0x2e0] sm:$0xff]
    %v3125 = vld [vmem:[#allocation5 + $0x2e8] sm:$0xff]
    %v3126 = vld [vmem:[#allocation5 + $0x2f0] sm:$0xff]
    %v3127 = vld [vmem:[#allocation5 + $0x2f8] sm:$0xff]
    %v3128 = vld [vmem:[#allocation5 + $0x300] sm:$0xff]
    %v3129 = vld [vmem:[#allocation5 + $0x308] sm:$0xff]
    %v3130 = vld [vmem:[#allocation5 + $0x310] sm:$0xff]
    %v3131 = vld [vmem:[#allocation5 + $0x318] sm:$0xff]
    %v3132 = vld [vmem:[#allocation5 + $0x320] sm:$0xff]
    %v3133 = vld [vmem:[#allocation5 + $0x328] sm:$0xff]
    %v3134 = vld [vmem:[#allocation5 + $0x330] sm:$0xff]
    %v3135 = vld [vmem:[#allocation5 + $0x338] sm:$0xff]
    %v3136 = vld [vmem:[#allocation5 + $0x340] sm:$0xff]
    %v3137 = vld [vmem:[#allocation5 + $0x348] sm:$0xff]
    %v3138 = vld [vmem:[#allocation5 + $0x350] sm:$0xff]
    %v3139 = vld [vmem:[#allocation5 + $0x358] sm:$0xff]
    %v3140 = vld [vmem:[#allocation5 + $0x360] sm:$0xff]
    %v3141 = vld [vmem:[#allocation5 + $0x368] sm:$0xff]
    %v3142 = vld [vmem:[#allocation5 + $0x370] sm:$0xff]
    %v3143 = vld [vmem:[#allocation5 + $0x378] sm:$0xff]
    %v3144 = vld [vmem:[#allocation5 + $0x380] sm:$0xff]
    %v3145 = vld [vmem:[#allocation5 + $0x388] sm:$0xff]
    %v3146 = vld [vmem:[#allocation5 + $0x390] sm:$0xff]
    %v3147 = vld [vmem:[#allocation5 + $0x398] sm:$0xff]
    %v3148 = vld [vmem:[#allocation5 + $0x3a0] sm:$0xff]
    %v3149 = vld [vmem:[#allocation5 + $0x3a8] sm:$0xff]
    %v3150 = vld [vmem:[#allocation5 + $0x3b0] sm:$0xff]
    %v3151 = vld [vmem:[#allocation5 + $0x3b8] sm:$0xff]
    %v3152 = vld [vmem:[#allocation5 + $0x3c0] sm:$0xff]
    %v3153 = vld [vmem:[#allocation5 + $0x3c8] sm:$0xff]
    %v3154 = vld [vmem:[#allocation5 + $0x3d0] sm:$0xff]
    %v3155 = vld [vmem:[#allocation5 + $0x3d8] sm:$0xff]
    %v3156 = vld [vmem:[#allocation5 + $0x3e0] sm:$0xff]
    %v3157 = vld [vmem:[#allocation5 + $0x3e8] sm:$0xff]
    %v3158 = vld [vmem:[#allocation5 + $0x3f0] sm:$0xff]
    %v3159 = vld [vmem:[#allocation5 + $0x3f8] sm:$0xff]
    %v3160 = vld [vmem:[%s4] sm:$0xf]
    %v3162 = vlaneseq
    %v3163 = vshrl.u32 %v3162, 7
    %v3164 = vsub.s32 0, %v3163
    %v3165 = vrot.slane %v3160, %v3164
    %v3166 = vlaneseq
    %v3167 = vshrl.u32 %v3166, 7
    %v3168 = vsub.s32 1, %v3167
    %v3169 = vrot.slane %v3160, %v3168
    %v3170 = vlaneseq
    %v3171 = vshrl.u32 %v3170, 7
    %v3172 = vsub.s32 2, %v3171
    %v3173 = vrot.slane %v3160, %v3172
    %v3174 = vlaneseq
    %v3175 = vshrl.u32 %v3174, 7
    %v3176 = vsub.s32 3, %v3175
    %v3177 = vrot.slane %v3160, %v3176
    %v3310 = vunpack.c.l.b16 %v3032
    %v3311 = vunpack.c.h.b16 %v3032
    %v3312 = vunpack.c.l.b16 %v3033
    %v3313 = vunpack.c.h.b16 %v3033
    %v3314 = vunpack.c.l.b16 %v3034
    %v3315 = vunpack.c.h.b16 %v3034
    %v3316 = vunpack.c.l.b16 %v3035
    %v3317 = vunpack.c.h.b16 %v3035
    %v3318 = vunpack.c.l.b16 %v3036
    %v3319 = vunpack.c.h.b16 %v3036
    %v3320 = vunpack.c.l.b16 %v3037
    %v3321 = vunpack.c.h.b16 %v3037
    %v3322 = vunpack.c.l.b16 %v3038
    %v3323 = vunpack.c.h.b16 %v3038
    %v3324 = vunpack.c.l.b16 %v3039
    %v3325 = vunpack.c.h.b16 %v3039
    %v3326 = vunpack.c.l.b16 %v3040
    %v3327 = vunpack.c.h.b16 %v3040
    %v3328 = vunpack.c.l.b16 %v3041
    %v3329 = vunpack.c.h.b16 %v3041
    %v3330 = vunpack.c.l.b16 %v3042
    %v3331 = vunpack.c.h.b16 %v3042
    %v3332 = vunpack.c.l.b16 %v3043
    %v3333 = vunpack.c.h.b16 %v3043
    %v3334 = vunpack.c.l.b16 %v3044
    %v3335 = vunpack.c.h.b16 %v3044
    %v3336 = vunpack.c.l.b16 %v3045
    %v3337 = vunpack.c.h.b16 %v3045
    %v3338 = vunpack.c.l.b16 %v3046
    %v3339 = vunpack.c.h.b16 %v3046
    %v3340 = vunpack.c.l.b16 %v3047
    %v3341 = vunpack.c.h.b16 %v3047
    %v3342 = vunpack.c.l.b16 %v3048
    %v3343 = vunpack.c.h.b16 %v3048
    %v3344 = vunpack.c.l.b16 %v3049
    %v3345 = vunpack.c.h.b16 %v3049
    %v3346 = vunpack.c.l.b16 %v3050
    %v3347 = vunpack.c.h.b16 %v3050
    %v3348 = vunpack.c.l.b16 %v3051
    %v3349 = vunpack.c.h.b16 %v3051
    %v3350 = vunpack.c.l.b16 %v3052
    %v3351 = vunpack.c.h.b16 %v3052
    %v3352 = vunpack.c.l.b16 %v3053
    %v3353 = vunpack.c.h.b16 %v3053
    %v3354 = vunpack.c.l.b16 %v3054
    %v3355 = vunpack.c.h.b16 %v3054
    %v3356 = vunpack.c.l.b16 %v3055
    %v3357 = vunpack.c.h.b16 %v3055
    %v3358 = vunpack.c.l.b16 %v3056
    %v3359 = vunpack.c.h.b16 %v3056
    %v3360 = vunpack.c.l.b16 %v3057
    %v3361 = vunpack.c.h.b16 %v3057
    %v3362 = vunpack.c.l.b16 %v3058
    %v3363 = vunpack.c.h.b16 %v3058
    %v3364 = vunpack.c.l.b16 %v3059
    %v3365 = vunpack.c.h.b16 %v3059
    %v3366 = vunpack.c.l.b16 %v3060
    %v3367 = vunpack.c.h.b16 %v3060
    %v3368 = vunpack.c.l.b16 %v3061
    %v3369 = vunpack.c.h.b16 %v3061
    %v3370 = vunpack.c.l.b16 %v3062
    %v3371 = vunpack.c.h.b16 %v3062
    %v3372 = vunpack.c.l.b16 %v3063
    %v3373 = vunpack.c.h.b16 %v3063
    %v3374 = vunpack.c.l.b16 %v3064
    %v3375 = vunpack.c.h.b16 %v3064
    %v3376 = vunpack.c.l.b16 %v3065
    %v3377 = vunpack.c.h.b16 %v3065
    %v3378 = vunpack.c.l.b16 %v3066
    %v3379 = vunpack.c.h.b16 %v3066
    %v3380 = vunpack.c.l.b16 %v3067
    %v3381 = vunpack.c.h.b16 %v3067
    %v3382 = vunpack.c.l.b16 %v3068
    %v3383 = vunpack.c.h.b16 %v3068
    %v3384 = vunpack.c.l.b16 %v3069
    %v3385 = vunpack.c.h.b16 %v3069
    %v3386 = vunpack.c.l.b16 %v3070
    %v3387 = vunpack.c.h.b16 %v3070
    %v3388 = vunpack.c.l.b16 %v3071
    %v3389 = vunpack.c.h.b16 %v3071
    %v3390 = vunpack.c.l.b16 %v3072
    %v3391 = vunpack.c.h.b16 %v3072
    %v3392 = vunpack.c.l.b16 %v3073
    %v3393 = vunpack.c.h.b16 %v3073
    %v3394 = vunpack.c.l.b16 %v3074
    %v3395 = vunpack.c.h.b16 %v3074
    %v3396 = vunpack.c.l.b16 %v3075
    %v3397 = vunpack.c.h.b16 %v3075
    %v3398 = vunpack.c.l.b16 %v3076
    %v3399 = vunpack.c.h.b16 %v3076
    %v3400 = vunpack.c.l.b16 %v3077
    %v3401 = vunpack.c.h.b16 %v3077
    %v3402 = vunpack.c.l.b16 %v3078
    %v3403 = vunpack.c.h.b16 %v3078
    %v3404 = vunpack.c.l.b16 %v3079
    %v3405 = vunpack.c.h.b16 %v3079
    %v3406 = vunpack.c.l.b16 %v3080
    %v3407 = vunpack.c.h.b16 %v3080
    %v3408 = vunpack.c.l.b16 %v3081
    %v3409 = vunpack.c.h.b16 %v3081
    %v3410 = vunpack.c.l.b16 %v3082
    %v3411 = vunpack.c.h.b16 %v3082
    %v3412 = vunpack.c.l.b16 %v3083
    %v3413 = vunpack.c.h.b16 %v3083
    %v3414 = vunpack.c.l.b16 %v3084
    %v3415 = vunpack.c.h.b16 %v3084
    %v3416 = vunpack.c.l.b16 %v3085
    %v3417 = vunpack.c.h.b16 %v3085
    %v3418 = vunpack.c.l.b16 %v3086
    %v3419 = vunpack.c.h.b16 %v3086
    %v3420 = vunpack.c.l.b16 %v3087
    %v3421 = vunpack.c.h.b16 %v3087
    %v3422 = vunpack.c.l.b16 %v3088
    %v3423 = vunpack.c.h.b16 %v3088
    %v3424 = vunpack.c.l.b16 %v3089
    %v3425 = vunpack.c.h.b16 %v3089
    %v3426 = vunpack.c.l.b16 %v3090
    %v3427 = vunpack.c.h.b16 %v3090
    %v3428 = vunpack.c.l.b16 %v3091
    %v3429 = vunpack.c.h.b16 %v3091
    %v3430 = vunpack.c.l.b16 %v3092
    %v3431 = vunpack.c.h.b16 %v3092
    %v3432 = vunpack.c.l.b16 %v3093
    %v3433 = vunpack.c.h.b16 %v3093
    %v3434 = vunpack.c.l.b16 %v3094
    %v3435 = vunpack.c.h.b16 %v3094
    %v3436 = vunpack.c.l.b16 %v3095
    %v3437 = vunpack.c.h.b16 %v3095
    %v3438 = vunpack.c.l.b16 %v3096
    %v3439 = vunpack.c.h.b16 %v3096
    %v3440 = vunpack.c.l.b16 %v3097
    %v3441 = vunpack.c.h.b16 %v3097
    %v3442 = vunpack.c.l.b16 %v3098
    %v3443 = vunpack.c.h.b16 %v3098
    %v3444 = vunpack.c.l.b16 %v3099
    %v3445 = vunpack.c.h.b16 %v3099
    %v3446 = vunpack.c.l.b16 %v3100
    %v3447 = vunpack.c.h.b16 %v3100
    %v3448 = vunpack.c.l.b16 %v3101
    %v3449 = vunpack.c.h.b16 %v3101
    %v3450 = vunpack.c.l.b16 %v3102
    %v3451 = vunpack.c.h.b16 %v3102
    %v3452 = vunpack.c.l.b16 %v3103
    %v3453 = vunpack.c.h.b16 %v3103
    %v3454 = vunpack.c.l.b16 %v3104
    %v3455 = vunpack.c.h.b16 %v3104
    %v3456 = vunpack.c.l.b16 %v3105
    %v3457 = vunpack.c.h.b16 %v3105
    %v3458 = vunpack.c.l.b16 %v3106
    %v3459 = vunpack.c.h.b16 %v3106
    %v3460 = vunpack.c.l.b16 %v3107
    %v3461 = vunpack.c.h.b16 %v3107
    %v3462 = vunpack.c.l.b16 %v3108
    %v3463 = vunpack.c.h.b16 %v3108
    %v3464 = vunpack.c.l.b16 %v3109
    %v3465 = vunpack.c.h.b16 %v3109
    %v3466 = vunpack.c.l.b16 %v3110
    %v3467 = vunpack.c.h.b16 %v3110
    %v3468 = vunpack.c.l.b16 %v3111
    %v3469 = vunpack.c.h.b16 %v3111
    %v3470 = vunpack.c.l.b16 %v3112
    %v3471 = vunpack.c.h.b16 %v3112
    %v3472 = vunpack.c.l.b16 %v3113
    %v3473 = vunpack.c.h.b16 %v3113
    %v3474 = vunpack.c.l.b16 %v3114
    %v3475 = vunpack.c.h.b16 %v3114
    %v3476 = vunpack.c.l.b16 %v3115
    %v3477 = vunpack.c.h.b16 %v3115
    %v3478 = vunpack.c.l.b16 %v3116
    %v3479 = vunpack.c.h.b16 %v3116
    %v3480 = vunpack.c.l.b16 %v3117
    %v3481 = vunpack.c.h.b16 %v3117
    %v3482 = vunpack.c.l.b16 %v3118
    %v3483 = vunpack.c.h.b16 %v3118
    %v3484 = vunpack.c.l.b16 %v3119
    %v3485 = vunpack.c.h.b16 %v3119
    %v3486 = vunpack.c.l.b16 %v3120
    %v3487 = vunpack.c.h.b16 %v3120
    %v3488 = vunpack.c.l.b16 %v3121
    %v3489 = vunpack.c.h.b16 %v3121
    %v3490 = vunpack.c.l.b16 %v3122
    %v3491 = vunpack.c.h.b16 %v3122
    %v3492 = vunpack.c.l.b16 %v3123
    %v3493 = vunpack.c.h.b16 %v3123
    %v3494 = vunpack.c.l.b16 %v3124
    %v3495 = vunpack.c.h.b16 %v3124
    %v3496 = vunpack.c.l.b16 %v3125
    %v3497 = vunpack.c.h.b16 %v3125
    %v3498 = vunpack.c.l.b16 %v3126
    %v3499 = vunpack.c.h.b16 %v3126
    %v3500 = vunpack.c.l.b16 %v3127
    %v3501 = vunpack.c.h.b16 %v3127
    %v3502 = vunpack.c.l.b16 %v3128
    %v3503 = vunpack.c.h.b16 %v3128
    %v3504 = vunpack.c.l.b16 %v3129
    %v3505 = vunpack.c.h.b16 %v3129
    %v3506 = vunpack.c.l.b16 %v3130
    %v3507 = vunpack.c.h.b16 %v3130
    %v3508 = vunpack.c.l.b16 %v3131
    %v3509 = vunpack.c.h.b16 %v3131
    %v3510 = vunpack.c.l.b16 %v3132
    %v3511 = vunpack.c.h.b16 %v3132
    %v3512 = vunpack.c.l.b16 %v3133
    %v3513 = vunpack.c.h.b16 %v3133
    %v3514 = vunpack.c.l.b16 %v3134
    %v3515 = vunpack.c.h.b16 %v3134
    %v3516 = vunpack.c.l.b16 %v3135
    %v3517 = vunpack.c.h.b16 %v3135
    %v3518 = vunpack.c.l.b16 %v3136
    %v3519 = vunpack.c.h.b16 %v3136
    %v3520 = vunpack.c.l.b16 %v3137
    %v3521 = vunpack.c.h.b16 %v3137
    %v3522 = vunpack.c.l.b16 %v3138
    %v3523 = vunpack.c.h.b16 %v3138
    %v3524 = vunpack.c.l.b16 %v3139
    %v3525 = vunpack.c.h.b16 %v3139
    %v3526 = vunpack.c.l.b16 %v3140
    %v3527 = vunpack.c.h.b16 %v3140
    %v3528 = vunpack.c.l.b16 %v3141
    %v3529 = vunpack.c.h.b16 %v3141
    %v3530 = vunpack.c.l.b16 %v3142
    %v3531 = vunpack.c.h.b16 %v3142
    %v3532 = vunpack.c.l.b16 %v3143
    %v3533 = vunpack.c.h.b16 %v3143
    %v3534 = vunpack.c.l.b16 %v3144
    %v3535 = vunpack.c.h.b16 %v3144
    %v3536 = vunpack.c.l.b16 %v3145
    %v3537 = vunpack.c.h.b16 %v3145
    %v3538 = vunpack.c.l.b16 %v3146
    %v3539 = vunpack.c.h.b16 %v3146
    %v3540 = vunpack.c.l.b16 %v3147
    %v3541 = vunpack.c.h.b16 %v3147
    %v3542 = vunpack.c.l.b16 %v3148
    %v3543 = vunpack.c.h.b16 %v3148
    %v3544 = vunpack.c.l.b16 %v3149
    %v3545 = vunpack.c.h.b16 %v3149
    %v3546 = vunpack.c.l.b16 %v3150
    %v3547 = vunpack.c.h.b16 %v3150
    %v3548 = vunpack.c.l.b16 %v3151
    %v3549 = vunpack.c.h.b16 %v3151
    %v3550 = vunpack.c.l.b16 %v3152
    %v3551 = vunpack.c.h.b16 %v3152
    %v3552 = vunpack.c.l.b16 %v3153
    %v3553 = vunpack.c.h.b16 %v3153
    %v3554 = vunpack.c.l.b16 %v3154
    %v3555 = vunpack.c.h.b16 %v3154
    %v3556 = vunpack.c.l.b16 %v3155
    %v3557 = vunpack.c.h.b16 %v3155
    %v3558 = vunpack.c.l.b16 %v3156
    %v3559 = vunpack.c.h.b16 %v3156
    %v3560 = vunpack.c.l.b16 %v3157
    %v3561 = vunpack.c.h.b16 %v3157
    %v3562 = vunpack.c.l.b16 %v3158
    %v3563 = vunpack.c.h.b16 %v3158
    %v3564 = vunpack.c.l.b16 %v3159
    %v3565 = vunpack.c.h.b16 %v3159
    %v3566 = vpack.c.b16 %v3314, %v3310
    %v3567 = vpack.c.b16 %v3315, %v3311
    %v3568 = vpack.c.b16 %v3316, %v3312
    %v3569 = vpack.c.b16 %v3317, %v3313
    %v3570 = vpack.c.b16 %v3322, %v3318
    %v3571 = vpack.c.b16 %v3323, %v3319
    %v3572 = vpack.c.b16 %v3324, %v3320
    %v3573 = vpack.c.b16 %v3325, %v3321
    %v3574 = vpack.c.b16 %v3330, %v3326
    %v3575 = vpack.c.b16 %v3331, %v3327
    %v3576 = vpack.c.b16 %v3332, %v3328
    %v3577 = vpack.c.b16 %v3333, %v3329
    %v3578 = vpack.c.b16 %v3338, %v3334
    %v3579 = vpack.c.b16 %v3339, %v3335
    %v3580 = vpack.c.b16 %v3340, %v3336
    %v3581 = vpack.c.b16 %v3341, %v3337
    %v3582 = vpack.c.b16 %v3346, %v3342
    %v3583 = vpack.c.b16 %v3347, %v3343
    %v3584 = vpack.c.b16 %v3348, %v3344
    %v3585 = vpack.c.b16 %v3349, %v3345
    %v3586 = vpack.c.b16 %v3354, %v3350
    %v3587 = vpack.c.b16 %v3355, %v3351
    %v3588 = vpack.c.b16 %v3356, %v3352
    %v3589 = vpack.c.b16 %v3357, %v3353
    %v3590 = vpack.c.b16 %v3362, %v3358
    %v3591 = vpack.c.b16 %v3363, %v3359
    %v3592 = vpack.c.b16 %v3364, %v3360
    %v3593 = vpack.c.b16 %v3365, %v3361
    %v3594 = vpack.c.b16 %v3370, %v3366
    %v3595 = vpack.c.b16 %v3371, %v3367
    %v3596 = vpack.c.b16 %v3372, %v3368
    %v3597 = vpack.c.b16 %v3373, %v3369
    %v3598 = vpack.c.b16 %v3378, %v3374
    %v3599 = vpack.c.b16 %v3379, %v3375
    %v3600 = vpack.c.b16 %v3380, %v3376
    %v3601 = vpack.c.b16 %v3381, %v3377
    %v3602 = vpack.c.b16 %v3386, %v3382
    %v3603 = vpack.c.b16 %v3387, %v3383
    %v3604 = vpack.c.b16 %v3388, %v3384
    %v3605 = vpack.c.b16 %v3389, %v3385
    %v3606 = vpack.c.b16 %v3394, %v3390
    %v3607 = vpack.c.b16 %v3395, %v3391
    %v3608 = vpack.c.b16 %v3396, %v3392
    %v3609 = vpack.c.b16 %v3397, %v3393
    %v3610 = vpack.c.b16 %v3402, %v3398
    %v3611 = vpack.c.b16 %v3403, %v3399
    %v3612 = vpack.c.b16 %v3404, %v3400
    %v3613 = vpack.c.b16 %v3405, %v3401
    %v3614 = vpack.c.b16 %v3410, %v3406
    %v3615 = vpack.c.b16 %v3411, %v3407
    %v3616 = vpack.c.b16 %v3412, %v3408
    %v3617 = vpack.c.b16 %v3413, %v3409
    %v3618 = vpack.c.b16 %v3418, %v3414
    %v3619 = vpack.c.b16 %v3419, %v3415
    %v3620 = vpack.c.b16 %v3420, %v3416
    %v3621 = vpack.c.b16 %v3421, %v3417
    %v3622 = vpack.c.b16 %v3426, %v3422
    %v3623 = vpack.c.b16 %v3427, %v3423
    %v3624 = vpack.c.b16 %v3428, %v3424
    %v3625 = vpack.c.b16 %v3429, %v3425
    %v3626 = vpack.c.b16 %v3434, %v3430
    %v3627 = vpack.c.b16 %v3435, %v3431
    %v3628 = vpack.c.b16 %v3436, %v3432
    %v3629 = vpack.c.b16 %v3437, %v3433
    %v3630 = vpack.c.b16 %v3442, %v3438
    %v3631 = vpack.c.b16 %v3443, %v3439
    %v3632 = vpack.c.b16 %v3444, %v3440
    %v3633 = vpack.c.b16 %v3445, %v3441
    %v3634 = vpack.c.b16 %v3450, %v3446
    %v3635 = vpack.c.b16 %v3451, %v3447
    %v3636 = vpack.c.b16 %v3452, %v3448
    %v3637 = vpack.c.b16 %v3453, %v3449
    %v3638 = vpack.c.b16 %v3458, %v3454
    %v3639 = vpack.c.b16 %v3459, %v3455
    %v3640 = vpack.c.b16 %v3460, %v3456
    %v3641 = vpack.c.b16 %v3461, %v3457
    %v3642 = vpack.c.b16 %v3466, %v3462
    %v3643 = vpack.c.b16 %v3467, %v3463
    %v3644 = vpack.c.b16 %v3468, %v3464
    %v3645 = vpack.c.b16 %v3469, %v3465
    %v3646 = vpack.c.b16 %v3474, %v3470
    %v3647 = vpack.c.b16 %v3475, %v3471
    %v3648 = vpack.c.b16 %v3476, %v3472
    %v3649 = vpack.c.b16 %v3477, %v3473
    %v3650 = vpack.c.b16 %v3482, %v3478
    %v3651 = vpack.c.b16 %v3483, %v3479
    %v3652 = vpack.c.b16 %v3484, %v3480
    %v3653 = vpack.c.b16 %v3485, %v3481
    %v3654 = vpack.c.b16 %v3490, %v3486
    %v3655 = vpack.c.b16 %v3491, %v3487
    %v3656 = vpack.c.b16 %v3492, %v3488
    %v3657 = vpack.c.b16 %v3493, %v3489
    %v3658 = vpack.c.b16 %v3498, %v3494
    %v3659 = vpack.c.b16 %v3499, %v3495
    %v3660 = vpack.c.b16 %v3500, %v3496
    %v3661 = vpack.c.b16 %v3501, %v3497
    %v3662 = vpack.c.b16 %v3506, %v3502
    %v3663 = vpack.c.b16 %v3507, %v3503
    %v3664 = vpack.c.b16 %v3508, %v3504
    %v3665 = vpack.c.b16 %v3509, %v3505
    %v3666 = vpack.c.b16 %v3514, %v3510
    %v3667 = vpack.c.b16 %v3515, %v3511
    %v3668 = vpack.c.b16 %v3516, %v3512
    %v3669 = vpack.c.b16 %v3517, %v3513
    %v3670 = vpack.c.b16 %v3522, %v3518
    %v3671 = vpack.c.b16 %v3523, %v3519
    %v3672 = vpack.c.b16 %v3524, %v3520
    %v3673 = vpack.c.b16 %v3525, %v3521
    %v3674 = vpack.c.b16 %v3530, %v3526
    %v3675 = vpack.c.b16 %v3531, %v3527
    %v3676 = vpack.c.b16 %v3532, %v3528
    %v3677 = vpack.c.b16 %v3533, %v3529
    %v3678 = vpack.c.b16 %v3538, %v3534
    %v3679 = vpack.c.b16 %v3539, %v3535
    %v3680 = vpack.c.b16 %v3540, %v3536
    %v3681 = vpack.c.b16 %v3541, %v3537
    %v3682 = vpack.c.b16 %v3546, %v3542
    %v3683 = vpack.c.b16 %v3547, %v3543
    %v3684 = vpack.c.b16 %v3548, %v3544
    %v3685 = vpack.c.b16 %v3549, %v3545
    %v3686 = vpack.c.b16 %v3554, %v3550
    %v3687 = vpack.c.b16 %v3555, %v3551
    %v3688 = vpack.c.b16 %v3556, %v3552
    %v3689 = vpack.c.b16 %v3557, %v3553
    %v3690 = vpack.c.b16 %v3562, %v3558
    %v3691 = vpack.c.b16 %v3563, %v3559
    %v3692 = vpack.c.b16 %v3564, %v3560
    %v3693 = vpack.c.b16 %v3565, %v3561
    %3822 = vmatprep.subr.bf16.mxu0 %v3567
    %3823 = vmatpush1.bf16.msra.mxu0 %v3566
    %3824 = vmatprep.subr.bf16.mxu0 %v3571
    %3825 = vmatpush1.bf16.msra.mxu0 %v3570
    %3826 = vmatprep.subr.bf16.mxu0 %v3575
    %3827 = vmatpush1.bf16.msra.mxu0 %v3574
    %3828 = vmatprep.subr.bf16.mxu0 %v3579
    %3829 = vmatpush1.bf16.msra.mxu0 %v3578
    %3830 = vmatprep.subr.bf16.mxu0 %v3583
    %3831 = vmatpush1.bf16.msra.mxu0 %v3582
    %3832 = vmatprep.subr.bf16.mxu0 %v3587
    %3833 = vmatpush1.bf16.msra.mxu0 %v3586
    %3834 = vmatprep.subr.bf16.mxu0 %v3591
    %3835 = vmatpush1.bf16.msra.mxu0 %v3590
    %3836 = vmatprep.subr.bf16.mxu0 %v3595
    %3837 = vmatpush1.bf16.msra.mxu0 %v3594
    %3838 = vmatprep.subr.bf16.mxu0 %v3599
    %3839 = vmatpush1.bf16.msra.mxu0 %v3598
    %3840 = vmatprep.subr.bf16.mxu0 %v3603
    %3841 = vmatpush1.bf16.msra.mxu0 %v3602
    %3842 = vmatprep.subr.bf16.mxu0 %v3607
    %3843 = vmatpush1.bf16.msra.mxu0 %v3606
    %3844 = vmatprep.subr.bf16.mxu0 %v3611
    %3845 = vmatpush1.bf16.msra.mxu0 %v3610
    %3846 = vmatprep.subr.bf16.mxu0 %v3615
    %3847 = vmatpush1.bf16.msra.mxu0 %v3614
    %3848 = vmatprep.subr.bf16.mxu0 %v3619
    %3849 = vmatpush1.bf16.msra.mxu0 %v3618
    %3850 = vmatprep.subr.bf16.mxu0 %v3623
    %3851 = vmatpush1.bf16.msra.mxu0 %v3622
    %3852 = vmatprep.subr.bf16.mxu0 %v3627
    %3853 = vmatpush1.bf16.msra.mxu0 %v3626
    %3854 = vmatprep.mubr.bf16.mxu0 %v3029
    %3855 = vmatmul.mubr.bf16.gmra.mrb[0].mxu0 %v3028
    %v3856 = vpop.f32.mrb[0].mxu0
    %v3857 = vadd.f32 %v3165, %v3856
    %v3858 = vpop.f32.mrb[0].mxu0
    %v3859 = vadd.f32 %v3169, %v3858
    %v3860 = vpop.f32.mrb[0].mxu0
    %v3861 = vadd.f32 %v3165, %v3860
    %v3862 = vpop.f32.mrb[0].mxu0
    %v3863 = vadd.f32 %v3169, %v3862
    %3864 = vdwg.mxu0
    %3865 = vmatprep.subr.bf16.mxu0 %v3631
    %3866 = vmatpush1.bf16.msra.mxu0 %v3630
    %3867 = vmatprep.subr.bf16.mxu0 %v3635
    %3868 = vmatpush1.bf16.msra.mxu0 %v3634
    %3869 = vmatprep.subr.bf16.mxu0 %v3639
    %3870 = vmatpush1.bf16.msra.mxu0 %v3638
    %3871 = vmatprep.subr.bf16.mxu0 %v3643
    %3872 = vmatpush1.bf16.msra.mxu0 %v3642
    %3873 = vmatprep.subr.bf16.mxu0 %v3647
    %3874 = vmatpush1.bf16.msra.mxu0 %v3646
    %3875 = vmatprep.subr.bf16.mxu0 %v3651
    %3876 = vmatpush1.bf16.msra.mxu0 %v3650
    %3877 = vmatprep.subr.bf16.mxu0 %v3655
    %3878 = vmatpush1.bf16.msra.mxu0 %v3654
    %3879 = vmatprep.subr.bf16.mxu0 %v3659
    %3880 = vmatpush1.bf16.msra.mxu0 %v3658
    %3881 = vmatprep.subr.bf16.mxu0 %v3663
    %3882 = vmatpush1.bf16.msra.mxu0 %v3662
    %3883 = vmatprep.subr.bf16.mxu0 %v3667
    %3884 = vmatpush1.bf16.msra.mxu0 %v3666
    %3885 = vmatprep.subr.bf16.mxu0 %v3671
    %3886 = vmatpush1.bf16.msra.mxu0 %v3670
    %3887 = vmatprep.subr.bf16.mxu0 %v3675
    %3888 = vmatpush1.bf16.msra.mxu0 %v3674
    %3889 = vmatprep.subr.bf16.mxu0 %v3679
    %3890 = vmatpush1.bf16.msra.mxu0 %v3678
    %3891 = vmatprep.subr.bf16.mxu0 %v3683
    %3892 = vmatpush1.bf16.msra.mxu0 %v3682
    %3893 = vmatprep.subr.bf16.mxu0 %v3687
    %3894 = vmatpush1.bf16.msra.mxu0 %v3686
    %3895 = vmatprep.subr.bf16.mxu0 %v3691
    %3896 = vmatpush1.bf16.msra.mxu0 %v3690
    %3897 = vmatprep.mubr.bf16.mxu0 %v3031
    %3898 = vmatmul.mubr.bf16.gmra.mrb[0].mxu0 %v3030
    %v3899 = vpop.f32.mrb[0].mxu0
    %v3900 = vadd.f32 %v3857, %v3899
    %v3901 = vpop.f32.mrb[0].mxu0
    %v3902 = vadd.f32 %v3859, %v3901
    %v3903 = vpop.f32.mrb[0].mxu0
    %v3904 = vadd.f32 %v3861, %v3903
    %v3905 = vpop.f32.mrb[0].mxu0
    %v3906 = vadd.f32 %v3863, %v3905
    %3907 = vdwg.mxu0
    %3908 = vmatprep.subr.bf16.mxu0 %v3569
    %3909 = vmatpush1.bf16.msra.mxu0 %v3568
    %3910 = vmatprep.subr.bf16.mxu0 %v3573
    %3911 = vmatpush1.bf16.msra.mxu0 %v3572
    %3912 = vmatprep.subr.bf16.mxu0 %v3577
    %3913 = vmatpush1.bf16.msra.mxu0 %v3576
    %3914 = vmatprep.subr.bf16.mxu0 %v3581
    %3915 = vmatpush1.bf16.msra.mxu0 %v3580
    %3916 = vmatprep.subr.bf16.mxu0 %v3585
    %3917 = vmatpush1.bf16.msra.mxu0 %v3584
    %3918 = vmatprep.subr.bf16.mxu0 %v3589
    %3919 = vmatpush1.bf16.msra.mxu0 %v3588
    %3920 = vmatprep.subr.bf16.mxu0 %v3593
    %3921 = vmatpush1.bf16.msra.mxu0 %v3592
    %3922 = vmatprep.subr.bf16.mxu0 %v3597
    %3923 = vmatpush1.bf16.msra.mxu0 %v3596
    %3924 = vmatprep.subr.bf16.mxu0 %v3601
    %3925 = vmatpush1.bf16.msra.mxu0 %v3600
    %3926 = vmatprep.subr.bf16.mxu0 %v3605
    %3927 = vmatpush1.bf16.msra.mxu0 %v3604
    %3928 = vmatprep.subr.bf16.mxu0 %v3609
    %3929 = vmatpush1.bf16.msra.mxu0 %v3608
    %3930 = vmatprep.subr.bf16.mxu0 %v3613
    %3931 = vmatpush1.bf16.msra.mxu0 %v3612
    %3932 = vmatprep.subr.bf16.mxu0 %v3617
    %3933 = vmatpush1.bf16.msra.mxu0 %v3616
    %3934 = vmatprep.subr.bf16.mxu0 %v3621
    %3935 = vmatpush1.bf16.msra.mxu0 %v3620
    %3936 = vmatprep.subr.bf16.mxu0 %v3625
    %3937 = vmatpush1.bf16.msra.mxu0 %v3624
    %3938 = vmatprep.subr.bf16.mxu0 %v3629
    %3939 = vmatpush1.bf16.msra.mxu0 %v3628
    %3940 = vmatprep.mubr.bf16.mxu0 %v3029
    %3941 = vmatmul.mubr.bf16.gmra.mrb[0].mxu0 %v3028
    %v3942 = vpop.f32.mrb[0].mxu0
    %v3943 = vadd.f32 %v3173, %v3942
    %v3944 = vpop.f32.mrb[0].mxu0
    %v3945 = vadd.f32 %v3177, %v3944
    %v3946 = vpop.f32.mrb[0].mxu0
    %v3947 = vadd.f32 %v3173, %v3946
    %v3948 = vpop.f32.mrb[0].mxu0
    %v3949 = vadd.f32 %v3177, %v3948
    %3950 = vdwg.mxu0
    %3951 = vmatprep.subr.bf16.mxu0 %v3633
    %3952 = vmatpush1.bf16.msra.mxu0 %v3632
    %3953 = vmatprep.subr.bf16.mxu0 %v3637
    %3954 = vmatpush1.bf16.msra.mxu0 %v3636
    %3955 = vmatprep.subr.bf16.mxu0 %v3641
    %3956 = vmatpush1.bf16.msra.mxu0 %v3640
    %3957 = vmatprep.subr.bf16.mxu0 %v3645
    %3958 = vmatpush1.bf16.msra.mxu0 %v3644
    %3959 = vmatprep.subr.bf16.mxu0 %v3649
    %3960 = vmatpush1.bf16.msra.mxu0 %v3648
    %3961 = vmatprep.subr.bf16.mxu0 %v3653
    %3962 = vmatpush1.bf16.msra.mxu0 %v3652
    %3963 = vmatprep.subr.bf16.mxu0 %v3657
    %3964 = vmatpush1.bf16.msra.mxu0 %v3656
    %3965 = vmatprep.subr.bf16.mxu0 %v3661
    %3966 = vmatpush1.bf16.msra.mxu0 %v3660
    %3967 = vmatprep.subr.bf16.mxu0 %v3665
    %3968 = vmatpush1.bf16.msra.mxu0 %v3664
    %3969 = vmatprep.subr.bf16.mxu0 %v3669
    %3970 = vmatpush1.bf16.msra.mxu0 %v3668
    %3971 = vmatprep.subr.bf16.mxu0 %v3673
    %3972 = vmatpush1.bf16.msra.mxu0 %v3672
    %3973 = vmatprep.subr.bf16.mxu0 %v3677
    %3974 = vmatpush1.bf16.msra.mxu0 %v3676
    %3975 = vmatprep.subr.bf16.mxu0 %v3681
    %3976 = vmatpush1.bf16.msra.mxu0 %v3680
    %3977 = vmatprep.subr.bf16.mxu0 %v3685
    %3978 = vmatpush1.bf16.msra.mxu0 %v3684
    %3979 = vmatprep.subr.bf16.mxu0 %v3689
    %3980 = vmatpush1.bf16.msra.mxu0 %v3688
    %3981 = vmatprep.subr.bf16.mxu0 %v3693
    %3982 = vmatpush1.bf16.msra.mxu0 %v3692
    %3983 = vmatprep.mubr.bf16.mxu0 %v3031
    %3984 = vmatmul.mubr.bf16.gmra.mrb[0].mxu0 %v3030
    %v3985 = vpop.f32.mrb[0].mxu0
    %v3986 = vadd.f32 %v3943, %v3985
    %v3987 = vpop.f32.mrb[0].mxu0
    %v3988 = vadd.f32 %v3945, %v3987
    %v3989 = vpop.f32.mrb[0].mxu0
    %v3990 = vadd.f32 %v3947, %v3989
    %v3991 = vpop.f32.mrb[0].mxu0
    %v3992 = vadd.f32 %v3949, %v3991
    %3993 = vdwg.mxu0
    %v3994 = vmax.f32 %v3900, 0.0
    %v3995 = vmax.f32 %v3902, 0.0
    %v3996 = vmax.f32 %v3986, 0.0
    %v3997 = vmax.f32 %v3988, 0.0
    %v3998 = vmax.f32 %v3904, 0.0
    %v3999 = vmax.f32 %v3906, 0.0
    %v4000 = vmax.f32 %v3990, 0.0
    %v4001 = vmax.f32 %v3992, 0.0
    %v4002 = vpack.c.bf16 %v3998, %v3994
    %v4003 = vpack.c.bf16 %v3999, %v3995
    %v4004 = vpack.c.bf16 %v4000, %v3996
    %v4005 = vpack.c.bf16 %v4001, %v3997
    %v4006 = vld [vmem:[#allocation7] sm:$0xff]
    %v4007 = vld [vmem:[#allocation7 + $0x8] sm:$0xff]
    %v4008 = vld [vmem:[#allocation7 + $0x10] sm:$0xff]
    %v4009 = vld [vmem:[#allocation7 + $0x18] sm:$0xff]
    %v4010 = vld [vmem:[#allocation7 + $0x20] sm:$0xff]
    %v4011 = vld [vmem:[#allocation7 + $0x28] sm:$0xff]
    %v4012 = vld [vmem:[#allocation7 + $0x30] sm:$0xff]
    %v4013 = vld [vmem:[#allocation7 + $0x38] sm:$0xff]
    %v4014 = vld [vmem:[#allocation7 + $0x40] sm:$0xff]
    %v4015 = vld [vmem:[#allocation7 + $0x48] sm:$0xff]
    %v4016 = vld [vmem:[#allocation7 + $0x50] sm:$0xff]
    %v4017 = vld [vmem:[#allocation7 + $0x58] sm:$0xff]
    %v4018 = vld [vmem:[#allocation7 + $0x60] sm:$0xff]
    %v4019 = vld [vmem:[#allocation7 + $0x68] sm:$0xff]
    %v4020 = vld [vmem:[#allocation7 + $0x70] sm:$0xff]
    %v4021 = vld [vmem:[#allocation7 + $0x78] sm:$0xff]
    %v4022 = vld [vmem:[#allocation7 + $0x80] sm:$0xff]
    %v4023 = vld [vmem:[#allocation7 + $0x88] sm:$0xff]
    %v4024 = vld [vmem:[#allocation7 + $0x90] sm:$0xff]
    %v4025 = vld [vmem:[#allocation7 + $0x98] sm:$0xff]
    %v4026 = vld [vmem:[#allocation7 + $0xa0] sm:$0xff]
    %v4027 = vld [vmem:[#allocation7 + $0xa8] sm:$0xff]
    %v4028 = vld [vmem:[#allocation7 + $0xb0] sm:$0xff]
    %v4029 = vld [vmem:[#allocation7 + $0xb8] sm:$0xff]
    %v4030 = vld [vmem:[#allocation7 + $0xc0] sm:$0xff]
    %v4031 = vld [vmem:[#allocation7 + $0xc8] sm:$0xff]
    %v4032 = vld [vmem:[#allocation7 + $0xd0] sm:$0xff]
    %v4033 = vld [vmem:[#allocation7 + $0xd8] sm:$0xff]
    %v4034 = vld [vmem:[#allocation7 + $0xe0] sm:$0xff]
    %v4035 = vld [vmem:[#allocation7 + $0xe8] sm:$0xff]
    %v4036 = vld [vmem:[#allocation7 + $0xf0] sm:$0xff]
    %v4037 = vld [vmem:[#allocation7 + $0xf8] sm:$0xff]
    %v4038 = vld [vmem:[#allocation7 + $0x100] sm:$0xff]
    %v4039 = vld [vmem:[#allocation7 + $0x108] sm:$0xff]
    %v4040 = vld [vmem:[#allocation7 + $0x110] sm:$0xff]
    %v4041 = vld [vmem:[#allocation7 + $0x118] sm:$0xff]
    %v4042 = vld [vmem:[#allocation7 + $0x120] sm:$0xff]
    %v4043 = vld [vmem:[#allocation7 + $0x128] sm:$0xff]
    %v4044 = vld [vmem:[#allocation7 + $0x130] sm:$0xff]
    %v4045 = vld [vmem:[#allocation7 + $0x138] sm:$0xff]
    %v4046 = vld [vmem:[#allocation7 + $0x140] sm:$0xff]
    %v4047 = vld [vmem:[#allocation7 + $0x148] sm:$0xff]
    %v4048 = vld [vmem:[#allocation7 + $0x150] sm:$0xff]
    %v4049 = vld [vmem:[#allocation7 + $0x158] sm:$0xff]
    %v4050 = vld [vmem:[#allocation7 + $0x160] sm:$0xff]
    %v4051 = vld [vmem:[#allocation7 + $0x168] sm:$0xff]
    %v4052 = vld [vmem:[#allocation7 + $0x170] sm:$0xff]
    %v4053 = vld [vmem:[#allocation7 + $0x178] sm:$0xff]
    %v4054 = vld [vmem:[#allocation7 + $0x180] sm:$0xff]
    %v4055 = vld [vmem:[#allocation7 + $0x188] sm:$0xff]
    %v4056 = vld [vmem:[#allocation7 + $0x190] sm:$0xff]
    %v4057 = vld [vmem:[#allocation7 + $0x198] sm:$0xff]
    %v4058 = vld [vmem:[#allocation7 + $0x1a0] sm:$0xff]
    %v4059 = vld [vmem:[#allocation7 + $0x1a8] sm:$0xff]
    %v4060 = vld [vmem:[#allocation7 + $0x1b0] sm:$0xff]
    %v4061 = vld [vmem:[#allocation7 + $0x1b8] sm:$0xff]
    %v4062 = vld [vmem:[#allocation7 + $0x1c0] sm:$0xff]
    %v4063 = vld [vmem:[#allocation7 + $0x1c8] sm:$0xff]
    %v4064 = vld [vmem:[#allocation7 + $0x1d0] sm:$0xff]
    %v4065 = vld [vmem:[#allocation7 + $0x1d8] sm:$0xff]
    %v4066 = vld [vmem:[#allocation7 + $0x1e0] sm:$0xff]
    %v4067 = vld [vmem:[#allocation7 + $0x1e8] sm:$0xff]
    %v4068 = vld [vmem:[#allocation7 + $0x1f0] sm:$0xff]
    %v4069 = vld [vmem:[#allocation7 + $0x1f8] sm:$0xff]
    %v4070 = vld [vmem:[#allocation7 + $0x200] sm:$0xff]
    %v4071 = vld [vmem:[#allocation7 + $0x208] sm:$0xff]
    %v4072 = vld [vmem:[#allocation7 + $0x210] sm:$0xff]
    %v4073 = vld [vmem:[#allocation7 + $0x218] sm:$0xff]
    %v4074 = vld [vmem:[#allocation7 + $0x220] sm:$0xff]
    %v4075 = vld [vmem:[#allocation7 + $0x228] sm:$0xff]
    %v4076 = vld [vmem:[#allocation7 + $0x230] sm:$0xff]
    %v4077 = vld [vmem:[#allocation7 + $0x238] sm:$0xff]
    %v4078 = vld [vmem:[#allocation7 + $0x240] sm:$0xff]
    %v4079 = vld [vmem:[#allocation7 + $0x248] sm:$0xff]
    %v4080 = vld [vmem:[#allocation7 + $0x250] sm:$0xff]
    %v4081 = vld [vmem:[#allocation7 + $0x258] sm:$0xff]
    %v4082 = vld [vmem:[#allocation7 + $0x260] sm:$0xff]
    %v4083 = vld [vmem:[#allocation7 + $0x268] sm:$0xff]
    %v4084 = vld [vmem:[#allocation7 + $0x270] sm:$0xff]
    %v4085 = vld [vmem:[#allocation7 + $0x278] sm:$0xff]
    %v4086 = vld [vmem:[#allocation7 + $0x280] sm:$0xff]
    %v4087 = vld [vmem:[#allocation7 + $0x288] sm:$0xff]
    %v4088 = vld [vmem:[#allocation7 + $0x290] sm:$0xff]
    %v4089 = vld [vmem:[#allocation7 + $0x298] sm:$0xff]
    %v4090 = vld [vmem:[#allocation7 + $0x2a0] sm:$0xff]
    %v4091 = vld [vmem:[#allocation7 + $0x2a8] sm:$0xff]
    %v4092 = vld [vmem:[#allocation7 + $0x2b0] sm:$0xff]
    %v4093 = vld [vmem:[#allocation7 + $0x2b8] sm:$0xff]
    %v4094 = vld [vmem:[#allocation7 + $0x2c0] sm:$0xff]
    %v4095 = vld [vmem:[#allocation7 + $0x2c8] sm:$0xff]
    %v4096 = vld [vmem:[#allocation7 + $0x2d0] sm:$0xff]
    %v4097 = vld [vmem:[#allocation7 + $0x2d8] sm:$0xff]
    %v4098 = vld [vmem:[#allocation7 + $0x2e0] sm:$0xff]
    %v4099 = vld [vmem:[#allocation7 + $0x2e8] sm:$0xff]
    %v4100 = vld [vmem:[#allocation7 + $0x2f0] sm:$0xff]
    %v4101 = vld [vmem:[#allocation7 + $0x2f8] sm:$0xff]
    %v4102 = vld [vmem:[#allocation7 + $0x300] sm:$0xff]
    %v4103 = vld [vmem:[#allocation7 + $0x308] sm:$0xff]
    %v4104 = vld [vmem:[#allocation7 + $0x310] sm:$0xff]
    %v4105 = vld [vmem:[#allocation7 + $0x318] sm:$0xff]
    %v4106 = vld [vmem:[#allocation7 + $0x320] sm:$0xff]
    %v4107 = vld [vmem:[#allocation7 + $0x328] sm:$0xff]
    %v4108 = vld [vmem:[#allocation7 + $0x330] sm:$0xff]
    %v4109 = vld [vmem:[#allocation7 + $0x338] sm:$0xff]
    %v4110 = vld [vmem:[#allocation7 + $0x340] sm:$0xff]
    %v4111 = vld [vmem:[#allocation7 + $0x348] sm:$0xff]
    %v4112 = vld [vmem:[#allocation7 + $0x350] sm:$0xff]
    %v4113 = vld [vmem:[#allocation7 + $0x358] sm:$0xff]
    %v4114 = vld [vmem:[#allocation7 + $0x360] sm:$0xff]
    %v4115 = vld [vmem:[#allocation7 + $0x368] sm:$0xff]
    %v4116 = vld [vmem:[#allocation7 + $0x370] sm:$0xff]
    %v4117 = vld [vmem:[#allocation7 + $0x378] sm:$0xff]
    %v4118 = vld [vmem:[#allocation7 + $0x380] sm:$0xff]
    %v4119 = vld [vmem:[#allocation7 + $0x388] sm:$0xff]
    %v4120 = vld [vmem:[#allocation7 + $0x390] sm:$0xff]
    %v4121 = vld [vmem:[#allocation7 + $0x398] sm:$0xff]
    %v4122 = vld [vmem:[#allocation7 + $0x3a0] sm:$0xff]
    %v4123 = vld [vmem:[#allocation7 + $0x3a8] sm:$0xff]
    %v4124 = vld [vmem:[#allocation7 + $0x3b0] sm:$0xff]
    %v4125 = vld [vmem:[#allocation7 + $0x3b8] sm:$0xff]
    %v4126 = vld [vmem:[#allocation7 + $0x3c0] sm:$0xff]
    %v4127 = vld [vmem:[#allocation7 + $0x3c8] sm:$0xff]
    %v4128 = vld [vmem:[#allocation7 + $0x3d0] sm:$0xff]
    %v4129 = vld [vmem:[#allocation7 + $0x3d8] sm:$0xff]
    %v4130 = vld [vmem:[#allocation7 + $0x3e0] sm:$0xff]
    %v4131 = vld [vmem:[#allocation7 + $0x3e8] sm:$0xff]
    %v4132 = vld [vmem:[#allocation7 + $0x3f0] sm:$0xff]
    %v4133 = vld [vmem:[#allocation7 + $0x3f8] sm:$0xff]
    %v4134 = vld [vmem:[%s6] sm:$0xf]
    %v4136 = vlaneseq
    %v4137 = vshrl.u32 %v4136, 7
    %v4138 = vsub.s32 0, %v4137
    %v4139 = vrot.slane %v4134, %v4138
    %v4140 = vlaneseq
    %v4141 = vshrl.u32 %v4140, 7
    %v4142 = vsub.s32 1, %v4141
    %v4143 = vrot.slane %v4134, %v4142
    %v4144 = vlaneseq
    %v4145 = vshrl.u32 %v4144, 7
    %v4146 = vsub.s32 2, %v4145
    %v4147 = vrot.slane %v4134, %v4146
    %v4148 = vlaneseq
    %v4149 = vshrl.u32 %v4148, 7
    %v4150 = vsub.s32 3, %v4149
    %v4151 = vrot.slane %v4134, %v4150
    %v4284 = vunpack.c.l.b16 %v4006
    %v4285 = vunpack.c.h.b16 %v4006
    %v4286 = vunpack.c.l.b16 %v4007
    %v4287 = vunpack.c.h.b16 %v4007
    %v4288 = vunpack.c.l.b16 %v4008
    %v4289 = vunpack.c.h.b16 %v4008
    %v4290 = vunpack.c.l.b16 %v4009
    %v4291 = vunpack.c.h.b16 %v4009
    %v4292 = vunpack.c.l.b16 %v4010
    %v4293 = vunpack.c.h.b16 %v4010
    %v4294 = vunpack.c.l.b16 %v4011
    %v4295 = vunpack.c.h.b16 %v4011
    %v4296 = vunpack.c.l.b16 %v4012
    %v4297 = vunpack.c.h.b16 %v4012
    %v4298 = vunpack.c.l.b16 %v4013
    %v4299 = vunpack.c.h.b16 %v4013
    %v4300 = vunpack.c.l.b16 %v4014
    %v4301 = vunpack.c.h.b16 %v4014
    %v4302 = vunpack.c.l.b16 %v4015
    %v4303 = vunpack.c.h.b16 %v4015
    %v4304 = vunpack.c.l.b16 %v4016
    %v4305 = vunpack.c.h.b16 %v4016
    %v4306 = vunpack.c.l.b16 %v4017
    %v4307 = vunpack.c.h.b16 %v4017
    %v4308 = vunpack.c.l.b16 %v4018
    %v4309 = vunpack.c.h.b16 %v4018
    %v4310 = vunpack.c.l.b16 %v4019
    %v4311 = vunpack.c.h.b16 %v4019
    %v4312 = vunpack.c.l.b16 %v4020
    %v4313 = vunpack.c.h.b16 %v4020
    %v4314 = vunpack.c.l.b16 %v4021
    %v4315 = vunpack.c.h.b16 %v4021
    %v4316 = vunpack.c.l.b16 %v4022
    %v4317 = vunpack.c.h.b16 %v4022
    %v4318 = vunpack.c.l.b16 %v4023
    %v4319 = vunpack.c.h.b16 %v4023
    %v4320 = vunpack.c.l.b16 %v4024
    %v4321 = vunpack.c.h.b16 %v4024
    %v4322 = vunpack.c.l.b16 %v4025
    %v4323 = vunpack.c.h.b16 %v4025
    %v4324 = vunpack.c.l.b16 %v4026
    %v4325 = vunpack.c.h.b16 %v4026
    %v4326 = vunpack.c.l.b16 %v4027
    %v4327 = vunpack.c.h.b16 %v4027
    %v4328 = vunpack.c.l.b16 %v4028
    %v4329 = vunpack.c.h.b16 %v4028
    %v4330 = vunpack.c.l.b16 %v4029
    %v4331 = vunpack.c.h.b16 %v4029
    %v4332 = vunpack.c.l.b16 %v4030
    %v4333 = vunpack.c.h.b16 %v4030
    %v4334 = vunpack.c.l.b16 %v4031
    %v4335 = vunpack.c.h.b16 %v4031
    %v4336 = vunpack.c.l.b16 %v4032
    %v4337 = vunpack.c.h.b16 %v4032
    %v4338 = vunpack.c.l.b16 %v4033
    %v4339 = vunpack.c.h.b16 %v4033
    %v4340 = vunpack.c.l.b16 %v4034
    %v4341 = vunpack.c.h.b16 %v4034
    %v4342 = vunpack.c.l.b16 %v4035
    %v4343 = vunpack.c.h.b16 %v4035
    %v4344 = vunpack.c.l.b16 %v4036
    %v4345 = vunpack.c.h.b16 %v4036
    %v4346 = vunpack.c.l.b16 %v4037
    %v4347 = vunpack.c.h.b16 %v4037
    %v4348 = vunpack.c.l.b16 %v4038
    %v4349 = vunpack.c.h.b16 %v4038
    %v4350 = vunpack.c.l.b16 %v4039
    %v4351 = vunpack.c.h.b16 %v4039
    %v4352 = vunpack.c.l.b16 %v4040
    %v4353 = vunpack.c.h.b16 %v4040
    %v4354 = vunpack.c.l.b16 %v4041
    %v4355 = vunpack.c.h.b16 %v4041
    %v4356 = vunpack.c.l.b16 %v4042
    %v4357 = vunpack.c.h.b16 %v4042
    %v4358 = vunpack.c.l.b16 %v4043
    %v4359 = vunpack.c.h.b16 %v4043
    %v4360 = vunpack.c.l.b16 %v4044
    %v4361 = vunpack.c.h.b16 %v4044
    %v4362 = vunpack.c.l.b16 %v4045
    %v4363 = vunpack.c.h.b16 %v4045
    %v4364 = vunpack.c.l.b16 %v4046
    %v4365 = vunpack.c.h.b16 %v4046
    %v4366 = vunpack.c.l.b16 %v4047
    %v4367 = vunpack.c.h.b16 %v4047
    %v4368 = vunpack.c.l.b16 %v4048
    %v4369 = vunpack.c.h.b16 %v4048
    %v4370 = vunpack.c.l.b16 %v4049
    %v4371 = vunpack.c.h.b16 %v4049
    %v4372 = vunpack.c.l.b16 %v4050
    %v4373 = vunpack.c.h.b16 %v4050
    %v4374 = vunpack.c.l.b16 %v4051
    %v4375 = vunpack.c.h.b16 %v4051
    %v4376 = vunpack.c.l.b16 %v4052
    %v4377 = vunpack.c.h.b16 %v4052
    %v4378 = vunpack.c.l.b16 %v4053
    %v4379 = vunpack.c.h.b16 %v4053
    %v4380 = vunpack.c.l.b16 %v4054
    %v4381 = vunpack.c.h.b16 %v4054
    %v4382 = vunpack.c.l.b16 %v4055
    %v4383 = vunpack.c.h.b16 %v4055
    %v4384 = vunpack.c.l.b16 %v4056
    %v4385 = vunpack.c.h.b16 %v4056
    %v4386 = vunpack.c.l.b16 %v4057
    %v4387 = vunpack.c.h.b16 %v4057
    %v4388 = vunpack.c.l.b16 %v4058
    %v4389 = vunpack.c.h.b16 %v4058
    %v4390 = vunpack.c.l.b16 %v4059
    %v4391 = vunpack.c.h.b16 %v4059
    %v4392 = vunpack.c.l.b16 %v4060
    %v4393 = vunpack.c.h.b16 %v4060
    %v4394 = vunpack.c.l.b16 %v4061
    %v4395 = vunpack.c.h.b16 %v4061
    %v4396 = vunpack.c.l.b16 %v4062
    %v4397 = vunpack.c.h.b16 %v4062
    %v4398 = vunpack.c.l.b16 %v4063
    %v4399 = vunpack.c.h.b16 %v4063
    %v4400 = vunpack.c.l.b16 %v4064
    %v4401 = vunpack.c.h.b16 %v4064
    %v4402 = vunpack.c.l.b16 %v4065
    %v4403 = vunpack.c.h.b16 %v4065
    %v4404 = vunpack.c.l.b16 %v4066
    %v4405 = vunpack.c.h.b16 %v4066
    %v4406 = vunpack.c.l.b16 %v4067
    %v4407 = vunpack.c.h.b16 %v4067
    %v4408 = vunpack.c.l.b16 %v4068
    %v4409 = vunpack.c.h.b16 %v4068
    %v4410 = vunpack.c.l.b16 %v4069
    %v4411 = vunpack.c.h.b16 %v4069
    %v4412 = vunpack.c.l.b16 %v4070
    %v4413 = vunpack.c.h.b16 %v4070
    %v4414 = vunpack.c.l.b16 %v4071
    %v4415 = vunpack.c.h.b16 %v4071
    %v4416 = vunpack.c.l.b16 %v4072
    %v4417 = vunpack.c.h.b16 %v4072
    %v4418 = vunpack.c.l.b16 %v4073
    %v4419 = vunpack.c.h.b16 %v4073
    %v4420 = vunpack.c.l.b16 %v4074
    %v4421 = vunpack.c.h.b16 %v4074
    %v4422 = vunpack.c.l.b16 %v4075
    %v4423 = vunpack.c.h.b16 %v4075
    %v4424 = vunpack.c.l.b16 %v4076
    %v4425 = vunpack.c.h.b16 %v4076
    %v4426 = vunpack.c.l.b16 %v4077
    %v4427 = vunpack.c.h.b16 %v4077
    %v4428 = vunpack.c.l.b16 %v4078
    %v4429 = vunpack.c.h.b16 %v4078
    %v4430 = vunpack.c.l.b16 %v4079
    %v4431 = vunpack.c.h.b16 %v4079
    %v4432 = vunpack.c.l.b16 %v4080
    %v4433 = vunpack.c.h.b16 %v4080
    %v4434 = vunpack.c.l.b16 %v4081
    %v4435 = vunpack.c.h.b16 %v4081
    %v4436 = vunpack.c.l.b16 %v4082
    %v4437 = vunpack.c.h.b16 %v4082
    %v4438 = vunpack.c.l.b16 %v4083
    %v4439 = vunpack.c.h.b16 %v4083
    %v4440 = vunpack.c.l.b16 %v4084
    %v4441 = vunpack.c.h.b16 %v4084
    %v4442 = vunpack.c.l.b16 %v4085
    %v4443 = vunpack.c.h.b16 %v4085
    %v4444 = vunpack.c.l.b16 %v4086
    %v4445 = vunpack.c.h.b16 %v4086
    %v4446 = vunpack.c.l.b16 %v4087
    %v4447 = vunpack.c.h.b16 %v4087
    %v4448 = vunpack.c.l.b16 %v4088
    %v4449 = vunpack.c.h.b16 %v4088
    %v4450 = vunpack.c.l.b16 %v4089
    %v4451 = vunpack.c.h.b16 %v4089
    %v4452 = vunpack.c.l.b16 %v4090
    %v4453 = vunpack.c.h.b16 %v4090
    %v4454 = vunpack.c.l.b16 %v4091
    %v4455 = vunpack.c.h.b16 %v4091
    %v4456 = vunpack.c.l.b16 %v4092
    %v4457 = vunpack.c.h.b16 %v4092
    %v4458 = vunpack.c.l.b16 %v4093
    %v4459 = vunpack.c.h.b16 %v4093
    %v4460 = vunpack.c.l.b16 %v4094
    %v4461 = vunpack.c.h.b16 %v4094
    %v4462 = vunpack.c.l.b16 %v4095
    %v4463 = vunpack.c.h.b16 %v4095
    %v4464 = vunpack.c.l.b16 %v4096
    %v4465 = vunpack.c.h.b16 %v4096
    %v4466 = vunpack.c.l.b16 %v4097
    %v4467 = vunpack.c.h.b16 %v4097
    %v4468 = vunpack.c.l.b16 %v4098
    %v4469 = vunpack.c.h.b16 %v4098
    %v4470 = vunpack.c.l.b16 %v4099
    %v4471 = vunpack.c.h.b16 %v4099
    %v4472 = vunpack.c.l.b16 %v4100
    %v4473 = vunpack.c.h.b16 %v4100
    %v4474 = vunpack.c.l.b16 %v4101
    %v4475 = vunpack.c.h.b16 %v4101
    %v4476 = vunpack.c.l.b16 %v4102
    %v4477 = vunpack.c.h.b16 %v4102
    %v4478 = vunpack.c.l.b16 %v4103
    %v4479 = vunpack.c.h.b16 %v4103
    %v4480 = vunpack.c.l.b16 %v4104
    %v4481 = vunpack.c.h.b16 %v4104
    %v4482 = vunpack.c.l.b16 %v4105
    %v4483 = vunpack.c.h.b16 %v4105
    %v4484 = vunpack.c.l.b16 %v4106
    %v4485 = vunpack.c.h.b16 %v4106
    %v4486 = vunpack.c.l.b16 %v4107
    %v4487 = vunpack.c.h.b16 %v4107
    %v4488 = vunpack.c.l.b16 %v4108
    %v4489 = vunpack.c.h.b16 %v4108
    %v4490 = vunpack.c.l.b16 %v4109
    %v4491 = vunpack.c.h.b16 %v4109
    %v4492 = vunpack.c.l.b16 %v4110
    %v4493 = vunpack.c.h.b16 %v4110
    %v4494 = vunpack.c.l.b16 %v4111
    %v4495 = vunpack.c.h.b16 %v4111
    %v4496 = vunpack.c.l.b16 %v4112
    %v4497 = vunpack.c.h.b16 %v4112
    %v4498 = vunpack.c.l.b16 %v4113
    %v4499 = vunpack.c.h.b16 %v4113
    %v4500 = vunpack.c.l.b16 %v4114
    %v4501 = vunpack.c.h.b16 %v4114
    %v4502 = vunpack.c.l.b16 %v4115
    %v4503 = vunpack.c.h.b16 %v4115
    %v4504 = vunpack.c.l.b16 %v4116
    %v4505 = vunpack.c.h.b16 %v4116
    %v4506 = vunpack.c.l.b16 %v4117
    %v4507 = vunpack.c.h.b16 %v4117
    %v4508 = vunpack.c.l.b16 %v4118
    %v4509 = vunpack.c.h.b16 %v4118
    %v4510 = vunpack.c.l.b16 %v4119
    %v4511 = vunpack.c.h.b16 %v4119
    %v4512 = vunpack.c.l.b16 %v4120
    %v4513 = vunpack.c.h.b16 %v4120
    %v4514 = vunpack.c.l.b16 %v4121
    %v4515 = vunpack.c.h.b16 %v4121
    %v4516 = vunpack.c.l.b16 %v4122
    %v4517 = vunpack.c.h.b16 %v4122
    %v4518 = vunpack.c.l.b16 %v4123
    %v4519 = vunpack.c.h.b16 %v4123
    %v4520 = vunpack.c.l.b16 %v4124
    %v4521 = vunpack.c.h.b16 %v4124
    %v4522 = vunpack.c.l.b16 %v4125
    %v4523 = vunpack.c.h.b16 %v4125
    %v4524 = vunpack.c.l.b16 %v4126
    %v4525 = vunpack.c.h.b16 %v4126
    %v4526 = vunpack.c.l.b16 %v4127
    %v4527 = vunpack.c.h.b16 %v4127
    %v4528 = vunpack.c.l.b16 %v4128
    %v4529 = vunpack.c.h.b16 %v4128
    %v4530 = vunpack.c.l.b16 %v4129
    %v4531 = vunpack.c.h.b16 %v4129
    %v4532 = vunpack.c.l.b16 %v4130
    %v4533 = vunpack.c.h.b16 %v4130
    %v4534 = vunpack.c.l.b16 %v4131
    %v4535 = vunpack.c.h.b16 %v4131
    %v4536 = vunpack.c.l.b16 %v4132
    %v4537 = vunpack.c.h.b16 %v4132
    %v4538 = vunpack.c.l.b16 %v4133
    %v4539 = vunpack.c.h.b16 %v4133
    %v4540 = vpack.c.b16 %v4288, %v4284
    %v4541 = vpack.c.b16 %v4289, %v4285
    %v4542 = vpack.c.b16 %v4290, %v4286
    %v4543 = vpack.c.b16 %v4291, %v4287
    %v4544 = vpack.c.b16 %v4296, %v4292
    %v4545 = vpack.c.b16 %v4297, %v4293
    %v4546 = vpack.c.b16 %v4298, %v4294
    %v4547 = vpack.c.b16 %v4299, %v4295
    %v4548 = vpack.c.b16 %v4304, %v4300
    %v4549 = vpack.c.b16 %v4305, %v4301
    %v4550 = vpack.c.b16 %v4306, %v4302
    %v4551 = vpack.c.b16 %v4307, %v4303
    %v4552 = vpack.c.b16 %v4312, %v4308
    %v4553 = vpack.c.b16 %v4313, %v4309
    %v4554 = vpack.c.b16 %v4314, %v4310
    %v4555 = vpack.c.b16 %v4315, %v4311
    %v4556 = vpack.c.b16 %v4320, %v4316
    %v4557 = vpack.c.b16 %v4321, %v4317
    %v4558 = vpack.c.b16 %v4322, %v4318
    %v4559 = vpack.c.b16 %v4323, %v4319
    %v4560 = vpack.c.b16 %v4328, %v4324
    %v4561 = vpack.c.b16 %v4329, %v4325
    %v4562 = vpack.c.b16 %v4330, %v4326
    %v4563 = vpack.c.b16 %v4331, %v4327
    %v4564 = vpack.c.b16 %v4336, %v4332
    %v4565 = vpack.c.b16 %v4337, %v4333
    %v4566 = vpack.c.b16 %v4338, %v4334
    %v4567 = vpack.c.b16 %v4339, %v4335
    %v4568 = vpack.c.b16 %v4344, %v4340
    %v4569 = vpack.c.b16 %v4345, %v4341
    %v4570 = vpack.c.b16 %v4346, %v4342
    %v4571 = vpack.c.b16 %v4347, %v4343
    %v4572 = vpack.c.b16 %v4352, %v4348
    %v4573 = vpack.c.b16 %v4353, %v4349
    %v4574 = vpack.c.b16 %v4354, %v4350
    %v4575 = vpack.c.b16 %v4355, %v4351
    %v4576 = vpack.c.b16 %v4360, %v4356
    %v4577 = vpack.c.b16 %v4361, %v4357
    %v4578 = vpack.c.b16 %v4362, %v4358
    %v4579 = vpack.c.b16 %v4363, %v4359
    %v4580 = vpack.c.b16 %v4368, %v4364
    %v4581 = vpack.c.b16 %v4369, %v4365
    %v4582 = vpack.c.b16 %v4370, %v4366
    %v4583 = vpack.c.b16 %v4371, %v4367
    %v4584 = vpack.c.b16 %v4376, %v4372
    %v4585 = vpack.c.b16 %v4377, %v4373
    %v4586 = vpack.c.b16 %v4378, %v4374
    %v4587 = vpack.c.b16 %v4379, %v4375
    %v4588 = vpack.c.b16 %v4384, %v4380
    %v4589 = vpack.c.b16 %v4385, %v4381
    %v4590 = vpack.c.b16 %v4386, %v4382
    %v4591 = vpack.c.b16 %v4387, %v4383
    %v4592 = vpack.c.b16 %v4392, %v4388
    %v4593 = vpack.c.b16 %v4393, %v4389
    %v4594 = vpack.c.b16 %v4394, %v4390
    %v4595 = vpack.c.b16 %v4395, %v4391
    %v4596 = vpack.c.b16 %v4400, %v4396
    %v4597 = vpack.c.b16 %v4401, %v4397
    %v4598 = vpack.c.b16 %v4402, %v4398
    %v4599 = vpack.c.b16 %v4403, %v4399
    %v4600 = vpack.c.b16 %v4408, %v4404
    %v4601 = vpack.c.b16 %v4409, %v4405
    %v4602 = vpack.c.b16 %v4410, %v4406
    %v4603 = vpack.c.b16 %v4411, %v4407
    %v4604 = vpack.c.b16 %v4416, %v4412
    %v4605 = vpack.c.b16 %v4417, %v4413
    %v4606 = vpack.c.b16 %v4418, %v4414
    %v4607 = vpack.c.b16 %v4419, %v4415
    %v4608 = vpack.c.b16 %v4424, %v4420
    %v4609 = vpack.c.b16 %v4425, %v4421
    %v4610 = vpack.c.b16 %v4426, %v4422
    %v4611 = vpack.c.b16 %v4427, %v4423
    %v4612 = vpack.c.b16 %v4432, %v4428
    %v4613 = vpack.c.b16 %v4433, %v4429
    %v4614 = vpack.c.b16 %v4434, %v4430
    %v4615 = vpack.c.b16 %v4435, %v4431
    %v4616 = vpack.c.b16 %v4440, %v4436
    %v4617 = vpack.c.b16 %v4441, %v4437
    %v4618 = vpack.c.b16 %v4442, %v4438
    %v4619 = vpack.c.b16 %v4443, %v4439
    %v4620 = vpack.c.b16 %v4448, %v4444
    %v4621 = vpack.c.b16 %v4449, %v4445
    %v4622 = vpack.c.b16 %v4450, %v4446
    %v4623 = vpack.c.b16 %v4451, %v4447
    %v4624 = vpack.c.b16 %v4456, %v4452
    %v4625 = vpack.c.b16 %v4457, %v4453
    %v4626 = vpack.c.b16 %v4458, %v4454
    %v4627 = vpack.c.b16 %v4459, %v4455
    %v4628 = vpack.c.b16 %v4464, %v4460
    %v4629 = vpack.c.b16 %v4465, %v4461
    %v4630 = vpack.c.b16 %v4466, %v4462
    %v4631 = vpack.c.b16 %v4467, %v4463
    %v4632 = vpack.c.b16 %v4472, %v4468
    %v4633 = vpack.c.b16 %v4473, %v4469
    %v4634 = vpack.c.b16 %v4474, %v4470
    %v4635 = vpack.c.b16 %v4475, %v4471
    %v4636 = vpack.c.b16 %v4480, %v4476
    %v4637 = vpack.c.b16 %v4481, %v4477
    %v4638 = vpack.c.b16 %v4482, %v4478
    %v4639 = vpack.c.b16 %v4483, %v4479
    %v4640 = vpack.c.b16 %v4488, %v4484
    %v4641 = vpack.c.b16 %v4489, %v4485
    %v4642 = vpack.c.b16 %v4490, %v4486
    %v4643 = vpack.c.b16 %v4491, %v4487
    %v4644 = vpack.c.b16 %v4496, %v4492
    %v4645 = vpack.c.b16 %v4497, %v4493
    %v4646 = vpack.c.b16 %v4498, %v4494
    %v4647 = vpack.c.b16 %v4499, %v4495
    %v4648 = vpack.c.b16 %v4504, %v4500
    %v4649 = vpack.c.b16 %v4505, %v4501
    %v4650 = vpack.c.b16 %v4506, %v4502
    %v4651 = vpack.c.b16 %v4507, %v4503
    %v4652 = vpack.c.b16 %v4512, %v4508
    %v4653 = vpack.c.b16 %v4513, %v4509
    %v4654 = vpack.c.b16 %v4514, %v4510
    %v4655 = vpack.c.b16 %v4515, %v4511
    %v4656 = vpack.c.b16 %v4520, %v4516
    %v4657 = vpack.c.b16 %v4521, %v4517
    %v4658 = vpack.c.b16 %v4522, %v4518
    %v4659 = vpack.c.b16 %v4523, %v4519
    %v4660 = vpack.c.b16 %v4528, %v4524
    %v4661 = vpack.c.b16 %v4529, %v4525
    %v4662 = vpack.c.b16 %v4530, %v4526
    %v4663 = vpack.c.b16 %v4531, %v4527
    %v4664 = vpack.c.b16 %v4536, %v4532
    %v4665 = vpack.c.b16 %v4537, %v4533
    %v4666 = vpack.c.b16 %v4538, %v4534
    %v4667 = vpack.c.b16 %v4539, %v4535
    %4796 = vmatprep.subr.bf16.mxu0 %v4541
    %4797 = vmatpush1.bf16.msra.mxu0 %v4540
    %4798 = vmatprep.subr.bf16.mxu0 %v4545
    %4799 = vmatpush1.bf16.msra.mxu0 %v4544
    %4800 = vmatprep.subr.bf16.mxu0 %v4549
    %4801 = vmatpush1.bf16.msra.mxu0 %v4548
    %4802 = vmatprep.subr.bf16.mxu0 %v4553
    %4803 = vmatpush1.bf16.msra.mxu0 %v4552
    %4804 = vmatprep.subr.bf16.mxu0 %v4557
    %4805 = vmatpush1.bf16.msra.mxu0 %v4556
    %4806 = vmatprep.subr.bf16.mxu0 %v4561
    %4807 = vmatpush1.bf16.msra.mxu0 %v4560
    %4808 = vmatprep.subr.bf16.mxu0 %v4565
    %4809 = vmatpush1.bf16.msra.mxu0 %v4564
    %4810 = vmatprep.subr.bf16.mxu0 %v4569
    %4811 = vmatpush1.bf16.msra.mxu0 %v4568
    %4812 = vmatprep.subr.bf16.mxu0 %v4573
    %4813 = vmatpush1.bf16.msra.mxu0 %v4572
    %4814 = vmatprep.subr.bf16.mxu0 %v4577
    %4815 = vmatpush1.bf16.msra.mxu0 %v4576
    %4816 = vmatprep.subr.bf16.mxu0 %v4581
    %4817 = vmatpush1.bf16.msra.mxu0 %v4580
    %4818 = vmatprep.subr.bf16.mxu0 %v4585
    %4819 = vmatpush1.bf16.msra.mxu0 %v4584
    %4820 = vmatprep.subr.bf16.mxu0 %v4589
    %4821 = vmatpush1.bf16.msra.mxu0 %v4588
    %4822 = vmatprep.subr.bf16.mxu0 %v4593
    %4823 = vmatpush1.bf16.msra.mxu0 %v4592
    %4824 = vmatprep.subr.bf16.mxu0 %v4597
    %4825 = vmatpush1.bf16.msra.mxu0 %v4596
    %4826 = vmatprep.subr.bf16.mxu0 %v4601
    %4827 = vmatpush1.bf16.msra.mxu0 %v4600
    %4828 = vmatprep.mubr.bf16.mxu0 %v4003
    %4829 = vmatmul.mubr.bf16.gmra.mrb[0].mxu0 %v4002
    %v4830 = vpop.f32.mrb[0].mxu0
    %v4831 = vadd.f32 %v4139, %v4830
    %v4832 = vpop.f32.mrb[0].mxu0
    %v4833 = vadd.f32 %v4143, %v4832
    %v4834 = vpop.f32.mrb[0].mxu0
    %v4835 = vadd.f32 %v4139, %v4834
    %v4836 = vpop.f32.mrb[0].mxu0
    %v4837 = vadd.f32 %v4143, %v4836
    %4838 = vdwg.mxu0
    %4839 = vmatprep.subr.bf16.mxu0 %v4605
    %4840 = vmatpush1.bf16.msra.mxu0 %v4604
    %4841 = vmatprep.subr.bf16.mxu0 %v4609
    %4842 = vmatpush1.bf16.msra.mxu0 %v4608
    %4843 = vmatprep.subr.bf16.mxu0 %v4613
    %4844 = vmatpush1.bf16.msra.mxu0 %v4612
    %4845 = vmatprep.subr.bf16.mxu0 %v4617
    %4846 = vmatpush1.bf16.msra.mxu0 %v4616
    %4847 = vmatprep.subr.bf16.mxu0 %v4621
    %4848 = vmatpush1.bf16.msra.mxu0 %v4620
    %4849 = vmatprep.subr.bf16.mxu0 %v4625
    %4850 = vmatpush1.bf16.msra.mxu0 %v4624
    %4851 = vmatprep.subr.bf16.mxu0 %v4629
    %4852 = vmatpush1.bf16.msra.mxu0 %v4628
    %4853 = vmatprep.subr.bf16.mxu0 %v4633
    %4854 = vmatpush1.bf16.msra.mxu0 %v4632
    %4855 = vmatprep.subr.bf16.mxu0 %v4637
    %4856 = vmatpush1.bf16.msra.mxu0 %v4636
    %4857 = vmatprep.subr.bf16.mxu0 %v4641
    %4858 = vmatpush1.bf16.msra.mxu0 %v4640
    %4859 = vmatprep.subr.bf16.mxu0 %v4645
    %4860 = vmatpush1.bf16.msra.mxu0 %v4644
    %4861 = vmatprep.subr.bf16.mxu0 %v4649
    %4862 = vmatpush1.bf16.msra.mxu0 %v4648
    %4863 = vmatprep.subr.bf16.mxu0 %v4653
    %4864 = vmatpush1.bf16.msra.mxu0 %v4652
    %4865 = vmatprep.subr.bf16.mxu0 %v4657
    %4866 = vmatpush1.bf16.msra.mxu0 %v4656
    %4867 = vmatprep.subr.bf16.mxu0 %v4661
    %4868 = vmatpush1.bf16.msra.mxu0 %v4660
    %4869 = vmatprep.subr.bf16.mxu0 %v4665
    %4870 = vmatpush1.bf16.msra.mxu0 %v4664
    %4871 = vmatprep.mubr.bf16.mxu0 %v4005
    %4872 = vmatmul.mubr.bf16.gmra.mrb[0].mxu0 %v4004
    %v4873 = vpop.f32.mrb[0].mxu0
    %v4874 = vadd.f32 %v4831, %v4873
    %v4875 = vpop.f32.mrb[0].mxu0
    %v4876 = vadd.f32 %v4833, %v4875
    %v4877 = vpop.f32.mrb[0].mxu0
    %v4878 = vadd.f32 %v4835, %v4877
    %v4879 = vpop.f32.mrb[0].mxu0
    %v4880 = vadd.f32 %v4837, %v4879
    %4881 = vdwg.mxu0
    %4882 = vmatprep.subr.bf16.mxu0 %v4543
    %4883 = vmatpush1.bf16.msra.mxu0 %v4542
    %4884 = vmatprep.subr.bf16.mxu0 %v4547
    %4885 = vmatpush1.bf16.msra.mxu0 %v4546
    %4886 = vmatprep.subr.bf16.mxu0 %v4551
    %4887 = vmatpush1.bf16.msra.mxu0 %v4550
    %4888 = vmatprep.subr.bf16.mxu0 %v4555
    %4889 = vmatpush1.bf16.msra.mxu0 %v4554
    %4890 = vmatprep.subr.bf16.mxu0 %v4559
    %4891 = vmatpush1.bf16.msra.mxu0 %v4558
    %4892 = vmatprep.subr.bf16.mxu0 %v4563
    %4893 = vmatpush1.bf16.msra.mxu0 %v4562
    %4894 = vmatprep.subr.bf16.mxu0 %v4567
    %4895 = vmatpush1.bf16.msra.mxu0 %v4566
    %4896 = vmatprep.subr.bf16.mxu0 %v4571
    %4897 = vmatpush1.bf16.msra.mxu0 %v4570
    %4898 = vmatprep.subr.bf16.mxu0 %v4575
    %4899 = vmatpush1.bf16.msra.mxu0 %v4574
    %4900 = vmatprep.subr.bf16.mxu0 %v4579
    %4901 = vmatpush1.bf16.msra.mxu0 %v4578
    %4902 = vmatprep.subr.bf16.mxu0 %v4583
    %4903 = vmatpush1.bf16.msra.mxu0 %v4582
    %4904 = vmatprep.subr.bf16.mxu0 %v4587
    %4905 = vmatpush1.bf16.msra.mxu0 %v4586
    %4906 = vmatprep.subr.bf16.mxu0 %v4591
    %4907 = vmatpush1.bf16.msra.mxu0 %v4590
    %4908 = vmatprep.subr.bf16.mxu0 %v4595
    %4909 = vmatpush1.bf16.msra.mxu0 %v4594
    %4910 = vmatprep.subr.bf16.mxu0 %v4599
    %4911 = vmatpush1.bf16.msra.mxu0 %v4598
    %4912 = vmatprep.subr.bf16.mxu0 %v4603
    %4913 = vmatpush1.bf16.msra.mxu0 %v4602
    %4914 = vmatprep.mubr.bf16.mxu0 %v4003
    %4915 = vmatmul.mubr.bf16.gmra.mrb[0].mxu0 %v4002
    %v4916 = vpop.f32.mrb[0].mxu0
    %v4917 = vadd.f32 %v4147, %v4916
    %v4918 = vpop.f32.mrb[0].mxu0
    %v4919 = vadd.f32 %v4151, %v4918
    %v4920 = vpop.f32.mrb[0].mxu0
    %v4921 = vadd.f32 %v4147, %v4920
    %v4922 = vpop.f32.mrb[0].mxu0
    %v4923 = vadd.f32 %v4151, %v4922
    %4924 = vdwg.mxu0
    %4925 = vmatprep.subr.bf16.mxu0 %v4607
    %4926 = vmatpush1.bf16.msra.mxu0 %v4606
    %4927 = vmatprep.subr.bf16.mxu0 %v4611
    %4928 = vmatpush1.bf16.msra.mxu0 %v4610
    %4929 = vmatprep.subr.bf16.mxu0 %v4615
    %4930 = vmatpush1.bf16.msra.mxu0 %v4614
    %4931 = vmatprep.subr.bf16.mxu0 %v4619
    %4932 = vmatpush1.bf16.msra.mxu0 %v4618
    %4933 = vmatprep.subr.bf16.mxu0 %v4623
    %4934 = vmatpush1.bf16.msra.mxu0 %v4622
    %4935 = vmatprep.subr.bf16.mxu0 %v4627
    %4936 = vmatpush1.bf16.msra.mxu0 %v4626
    %4937 = vmatprep.subr.bf16.mxu0 %v4631
    %4938 = vmatpush1.bf16.msra.mxu0 %v4630
    %4939 = vmatprep.subr.bf16.mxu0 %v4635
    %4940 = vmatpush1.bf16.msra.mxu0 %v4634
    %4941 = vmatprep.subr.bf16.mxu0 %v4639
    %4942 = vmatpush1.bf16.msra.mxu0 %v4638
    %4943 = vmatprep.subr.bf16.mxu0 %v4643
    %4944 = vmatpush1.bf16.msra.mxu0 %v4642
    %4945 = vmatprep.subr.bf16.mxu0 %v4647
    %4946 = vmatpush1.bf16.msra.mxu0 %v4646
    %4947 = vmatprep.subr.bf16.mxu0 %v4651
    %4948 = vmatpush1.bf16.msra.mxu0 %v4650
    %4949 = vmatprep.subr.bf16.mxu0 %v4655
    %4950 = vmatpush1.bf16.msra.mxu0 %v4654
    %4951 = vmatprep.subr.bf16.mxu0 %v4659
    %4952 = vmatpush1.bf16.msra.mxu0 %v4658
    %4953 = vmatprep.subr.bf16.mxu0 %v4663
    %4954 = vmatpush1.bf16.msra.mxu0 %v4662
    %4955 = vmatprep.subr.bf16.mxu0 %v4667
    %4956 = vmatpush1.bf16.msra.mxu0 %v4666
    %4957 = vmatprep.mubr.bf16.mxu0 %v4005
    %4958 = vmatmul.mubr.bf16.gmra.mrb[0].mxu0 %v4004
    %v4959 = vpop.f32.mrb[0].mxu0
    %v4960 = vadd.f32 %v4917, %v4959
    %v4961 = vpop.f32.mrb[0].mxu0
    %v4962 = vadd.f32 %v4919, %v4961
    %v4963 = vpop.f32.mrb[0].mxu0
    %v4964 = vadd.f32 %v4921, %v4963
    %v4965 = vpop.f32.mrb[0].mxu0
    %v4966 = vadd.f32 %v4923, %v4965
    %4967 = vdwg.mxu0
    %v4968 = vmax.f32 %v4874, 0.0
    %v4969 = vmax.f32 %v4876, 0.0
    %v4970 = vmax.f32 %v4960, 0.0
    %v4971 = vmax.f32 %v4962, 0.0
    %v4972 = vmax.f32 %v4878, 0.0
    %v4973 = vmax.f32 %v4880, 0.0
    %v4974 = vmax.f32 %v4964, 0.0
    %v4975 = vmax.f32 %v4966, 0.0
    %v4976 = vpack.c.bf16 %v4972, %v4968
    %v4977 = vpack.c.bf16 %v4973, %v4969
    %v4978 = vpack.c.bf16 %v4974, %v4970
    %v4979 = vpack.c.bf16 %v4975, %v4971
    %v4980 = vld [vmem:[#allocation8] sm:$0xf]
    %v4981 = vld [vmem:[#allocation8 + $0x4] sm:$0xf]
    %v4982 = vld [vmem:[#allocation8 + $0x8] sm:$0xf]
    %v4983 = vld [vmem:[#allocation8 + $0xc] sm:$0xf]
    %v4984 = vld [vmem:[#allocation8 + $0x10] sm:$0xf]
    %v4985 = vld [vmem:[#allocation8 + $0x14] sm:$0xf]
    %v4986 = vld [vmem:[#allocation8 + $0x18] sm:$0xf]
    %v4987 = vld [vmem:[#allocation8 + $0x1c] sm:$0xf]
    %v4988 = vld [vmem:[#allocation8 + $0x20] sm:$0xf]
    %v4989 = vld [vmem:[#allocation8 + $0x24] sm:$0xf]
    %v4990 = vld [vmem:[#allocation8 + $0x28] sm:$0xf]
    %v4991 = vld [vmem:[#allocation8 + $0x2c] sm:$0xf]
    %v4992 = vld [vmem:[#allocation8 + $0x30] sm:$0xf]
    %v4993 = vld [vmem:[#allocation8 + $0x34] sm:$0xf]
    %v4994 = vld [vmem:[#allocation8 + $0x38] sm:$0xf]
    %v4995 = vld [vmem:[#allocation8 + $0x3c] sm:$0xf]
    %v4996 = vld [vmem:[#allocation8 + $0x40] sm:$0xf]
    %v4997 = vld [vmem:[#allocation8 + $0x44] sm:$0xf]
    %v4998 = vld [vmem:[#allocation8 + $0x48] sm:$0xf]
    %v4999 = vld [vmem:[#allocation8 + $0x4c] sm:$0xf]
    %v5000 = vld [vmem:[#allocation8 + $0x50] sm:$0xf]
    %v5001 = vld [vmem:[#allocation8 + $0x54] sm:$0xf]
    %v5002 = vld [vmem:[#allocation8 + $0x58] sm:$0xf]
    %v5003 = vld [vmem:[#allocation8 + $0x5c] sm:$0xf]
    %v5004 = vld [vmem:[#allocation8 + $0x60] sm:$0xf]
    %v5005 = vld [vmem:[#allocation8 + $0x64] sm:$0xf]
    %v5006 = vld [vmem:[#allocation8 + $0x68] sm:$0xf]
    %v5007 = vld [vmem:[#allocation8 + $0x6c] sm:$0xf]
    %v5008 = vld [vmem:[#allocation8 + $0x70] sm:$0xf]
    %v5009 = vld [vmem:[#allocation8 + $0x74] sm:$0xf]
    %v5010 = vld [vmem:[#allocation8 + $0x78] sm:$0xf]
    %v5011 = vld [vmem:[#allocation8 + $0x7c] sm:$0xf]
    %v5012 = vld [vmem:[#allocation8 + $0x80] sm:$0xf]
    %v5013 = vld [vmem:[#allocation8 + $0x84] sm:$0xf]
    %v5014 = vld [vmem:[#allocation8 + $0x88] sm:$0xf]
    %v5015 = vld [vmem:[#allocation8 + $0x8c] sm:$0xf]
    %v5016 = vld [vmem:[#allocation8 + $0x90] sm:$0xf]
    %v5017 = vld [vmem:[#allocation8 + $0x94] sm:$0xf]
    %v5018 = vld [vmem:[#allocation8 + $0x98] sm:$0xf]
    %v5019 = vld [vmem:[#allocation8 + $0x9c] sm:$0xf]
    %v5020 = vld [vmem:[#allocation8 + $0xa0] sm:$0xf]
    %v5021 = vld [vmem:[#allocation8 + $0xa4] sm:$0xf]
    %v5022 = vld [vmem:[#allocation8 + $0xa8] sm:$0xf]
    %v5023 = vld [vmem:[#allocation8 + $0xac] sm:$0xf]
    %v5024 = vld [vmem:[#allocation8 + $0xb0] sm:$0xf]
    %v5025 = vld [vmem:[#allocation8 + $0xb4] sm:$0xf]
    %v5026 = vld [vmem:[#allocation8 + $0xb8] sm:$0xf]
    %v5027 = vld [vmem:[#allocation8 + $0xbc] sm:$0xf]
    %v5028 = vld [vmem:[#allocation8 + $0xc0] sm:$0xf]
    %v5029 = vld [vmem:[#allocation8 + $0xc4] sm:$0xf]
    %v5030 = vld [vmem:[#allocation8 + $0xc8] sm:$0xf]
    %v5031 = vld [vmem:[#allocation8 + $0xcc] sm:$0xf]
    %v5032 = vld [vmem:[#allocation8 + $0xd0] sm:$0xf]
    %v5033 = vld [vmem:[#allocation8 + $0xd4] sm:$0xf]
    %v5034 = vld [vmem:[#allocation8 + $0xd8] sm:$0xf]
    %v5035 = vld [vmem:[#allocation8 + $0xdc] sm:$0xf]
    %v5036 = vld [vmem:[#allocation8 + $0xe0] sm:$0xf]
    %v5037 = vld [vmem:[#allocation8 + $0xe4] sm:$0xf]
    %v5038 = vld [vmem:[#allocation8 + $0xe8] sm:$0xf]
    %v5039 = vld [vmem:[#allocation8 + $0xec] sm:$0xf]
    %v5040 = vld [vmem:[#allocation8 + $0xf0] sm:$0xf]
    %v5041 = vld [vmem:[#allocation8 + $0xf4] sm:$0xf]
    %v5042 = vld [vmem:[#allocation8 + $0xf8] sm:$0xf]
    %v5043 = vld [vmem:[#allocation8 + $0xfc] sm:$0xf]
    %v5044 = vld [vmem:[%s8] sm:$0x1]
    %v5046 = vlaneseq
    %v5047 = vshrl.u32 %v5046, 7
    %v5048 = vsub.s32 0, %v5047
    %v5049 = vrot.slane %v5044, %v5048
    %v5115 = vunpack.c.l.b16 %v4980
    %v5116 = vunpack.c.l.b16 %v4981
    %v5117 = vunpack.c.l.b16 %v4982
    %v5118 = vunpack.c.l.b16 %v4983
    %v5119 = vunpack.c.l.b16 %v4984
    %v5120 = vunpack.c.l.b16 %v4985
    %v5121 = vunpack.c.l.b16 %v4986
    %v5122 = vunpack.c.l.b16 %v4987
    %v5123 = vunpack.c.l.b16 %v4988
    %v5124 = vunpack.c.l.b16 %v4989
    %v5125 = vunpack.c.l.b16 %v4990
    %v5126 = vunpack.c.l.b16 %v4991
    %v5127 = vunpack.c.l.b16 %v4992
    %v5128 = vunpack.c.l.b16 %v4993
    %v5129 = vunpack.c.l.b16 %v4994
    %v5130 = vunpack.c.l.b16 %v4995
    %v5131 = vunpack.c.l.b16 %v4996
    %v5132 = vunpack.c.l.b16 %v4997
    %v5133 = vunpack.c.l.b16 %v4998
    %v5134 = vunpack.c.l.b16 %v4999
    %v5135 = vunpack.c.l.b16 %v5000
    %v5136 = vunpack.c.l.b16 %v5001
    %v5137 = vunpack.c.l.b16 %v5002
    %v5138 = vunpack.c.l.b16 %v5003
    %v5139 = vunpack.c.l.b16 %v5004
    %v5140 = vunpack.c.l.b16 %v5005
    %v5141 = vunpack.c.l.b16 %v5006
    %v5142 = vunpack.c.l.b16 %v5007
    %v5143 = vunpack.c.l.b16 %v5008
    %v5144 = vunpack.c.l.b16 %v5009
    %v5145 = vunpack.c.l.b16 %v5010
    %v5146 = vunpack.c.l.b16 %v5011
    %v5147 = vunpack.c.l.b16 %v5012
    %v5148 = vunpack.c.l.b16 %v5013
    %v5149 = vunpack.c.l.b16 %v5014
    %v5150 = vunpack.c.l.b16 %v5015
    %v5151 = vunpack.c.l.b16 %v5016
    %v5152 = vunpack.c.l.b16 %v5017
    %v5153 = vunpack.c.l.b16 %v5018
    %v5154 = vunpack.c.l.b16 %v5019
    %v5155 = vunpack.c.l.b16 %v5020
    %v5156 = vunpack.c.l.b16 %v5021
    %v5157 = vunpack.c.l.b16 %v5022
    %v5158 = vunpack.c.l.b16 %v5023
    %v5159 = vunpack.c.l.b16 %v5024
    %v5160 = vunpack.c.l.b16 %v5025
    %v5161 = vunpack.c.l.b16 %v5026
    %v5162 = vunpack.c.l.b16 %v5027
    %v5163 = vunpack.c.l.b16 %v5028
    %v5164 = vunpack.c.l.b16 %v5029
    %v5165 = vunpack.c.l.b16 %v5030
    %v5166 = vunpack.c.l.b16 %v5031
    %v5167 = vunpack.c.l.b16 %v5032
    %v5168 = vunpack.c.l.b16 %v5033
    %v5169 = vunpack.c.l.b16 %v5034
    %v5170 = vunpack.c.l.b16 %v5035
    %v5171 = vunpack.c.l.b16 %v5036
    %v5172 = vunpack.c.l.b16 %v5037
    %v5173 = vunpack.c.l.b16 %v5038
    %v5174 = vunpack.c.l.b16 %v5039
    %v5175 = vunpack.c.l.b16 %v5040
    %v5176 = vunpack.c.l.b16 %v5041
    %v5177 = vunpack.c.l.b16 %v5042
    %v5178 = vunpack.c.l.b16 %v5043
    %v5179 = vpack.c.b16 %v5116, %v5115
    %v5180 = vpack.c.b16 %v5118, %v5117
    %v5181 = vpack.c.b16 %v5120, %v5119
    %v5182 = vpack.c.b16 %v5122, %v5121
    %v5183 = vpack.c.b16 %v5124, %v5123
    %v5184 = vpack.c.b16 %v5126, %v5125
    %v5185 = vpack.c.b16 %v5128, %v5127
    %v5186 = vpack.c.b16 %v5130, %v5129
    %v5187 = vpack.c.b16 %v5132, %v5131
    %v5188 = vpack.c.b16 %v5134, %v5133
    %v5189 = vpack.c.b16 %v5136, %v5135
    %v5190 = vpack.c.b16 %v5138, %v5137
    %v5191 = vpack.c.b16 %v5140, %v5139
    %v5192 = vpack.c.b16 %v5142, %v5141
    %v5193 = vpack.c.b16 %v5144, %v5143
    %v5194 = vpack.c.b16 %v5146, %v5145
    %v5195 = vpack.c.b16 %v5148, %v5147
    %v5196 = vpack.c.b16 %v5150, %v5149
    %v5197 = vpack.c.b16 %v5152, %v5151
    %v5198 = vpack.c.b16 %v5154, %v5153
    %v5199 = vpack.c.b16 %v5156, %v5155
    %v5200 = vpack.c.b16 %v5158, %v5157
    %v5201 = vpack.c.b16 %v5160, %v5159
    %v5202 = vpack.c.b16 %v5162, %v5161
    %v5203 = vpack.c.b16 %v5164, %v5163
    %v5204 = vpack.c.b16 %v5166, %v5165
    %v5205 = vpack.c.b16 %v5168, %v5167
    %v5206 = vpack.c.b16 %v5170, %v5169
    %v5207 = vpack.c.b16 %v5172, %v5171
    %v5208 = vpack.c.b16 %v5174, %v5173
    %v5209 = vpack.c.b16 %v5176, %v5175
    %v5210 = vpack.c.b16 %v5178, %v5177
    %5243 = vmatprep.subr.bf16.mxu0 0
    %5244 = vmatpush1.bf16.msra.mxu0 %v5179
    %5245 = vmatprep.subr.bf16.mxu0 0
    %5246 = vmatpush1.bf16.msra.mxu0 %v5180
    %5247 = vmatprep.subr.bf16.mxu0 0
    %5248 = vmatpush1.bf16.msra.mxu0 %v5181
    %5249 = vmatprep.subr.bf16.mxu0 0
    %5250 = vmatpush1.bf16.msra.mxu0 %v5182
    %5251 = vmatprep.subr.bf16.mxu0 0
    %5252 = vmatpush1.bf16.msra.mxu0 %v5183
    %5253 = vmatprep.subr.bf16.mxu0 0
    %5254 = vmatpush1.bf16.msra.mxu0 %v5184
    %5255 = vmatprep.subr.bf16.mxu0 0
    %5256 = vmatpush1.bf16.msra.mxu0 %v5185
    %5257 = vmatprep.subr.bf16.mxu0 0
    %5258 = vmatpush1.bf16.msra.mxu0 %v5186
    %5259 = vmatprep.subr.bf16.mxu0 0
    %5260 = vmatpush1.bf16.msra.mxu0 %v5187
    %5261 = vmatprep.subr.bf16.mxu0 0
    %5262 = vmatpush1.bf16.msra.mxu0 %v5188
    %5263 = vmatprep.subr.bf16.mxu0 0
    %5264 = vmatpush1.bf16.msra.mxu0 %v5189
    %5265 = vmatprep.subr.bf16.mxu0 0
    %5266 = vmatpush1.bf16.msra.mxu0 %v5190
    %5267 = vmatprep.subr.bf16.mxu0 0
    %5268 = vmatpush1.bf16.msra.mxu0 %v5191
    %5269 = vmatprep.subr.bf16.mxu0 0
    %5270 = vmatpush1.bf16.msra.mxu0 %v5192
    %5271 = vmatprep.subr.bf16.mxu0 0
    %5272 = vmatpush1.bf16.msra.mxu0 %v5193
    %5273 = vmatprep.subr.bf16.mxu0 0
    %5274 = vmatpush1.bf16.msra.mxu0 %v5194
    %5275 = vmatprep.mubr.bf16.mxu0 %v4977
    %5276 = vmatmul.mubr.bf16.gmra.mrb[0].mxu0 %v4976
    %v5277 = vpop.f32.mrb[0].mxu0
    %v5278 = vadd.f32 %v5049, %v5277
    %v5279 = vpop.f32.mrb[0].mxu0
    %v5280 = vpop.f32.mrb[0].mxu0
    %v5281 = vadd.f32 %v5049, %v5280
    %v5282 = vpop.f32.mrb[0].mxu0
    %5283 = vdwg.mxu0
    %5284 = vmatprep.subr.bf16.mxu0 0
    %5285 = vmatpush1.bf16.msra.mxu0 %v5195
    %5286 = vmatprep.subr.bf16.mxu0 0
    %5287 = vmatpush1.bf16.msra.mxu0 %v5196
    %5288 = vmatprep.subr.bf16.mxu0 0
    %5289 = vmatpush1.bf16.msra.mxu0 %v5197
    %5290 = vmatprep.subr.bf16.mxu0 0
    %5291 = vmatpush1.bf16.msra.mxu0 %v5198
    %5292 = vmatprep.subr.bf16.mxu0 0
    %5293 = vmatpush1.bf16.msra.mxu0 %v5199
    %5294 = vmatprep.subr.bf16.mxu0 0
    %5295 = vmatpush1.bf16.msra.mxu0 %v5200
    %5296 = vmatprep.subr.bf16.mxu0 0
    %5297 = vmatpush1.bf16.msra.mxu0 %v5201
    %5298 = vmatprep.subr.bf16.mxu0 0
    %5299 = vmatpush1.bf16.msra.mxu0 %v5202
    %5300 = vmatprep.subr.bf16.mxu0 0
    %5301 = vmatpush1.bf16.msra.mxu0 %v5203
    %5302 = vmatprep.subr.bf16.mxu0 0
    %5303 = vmatpush1.bf16.msra.mxu0 %v5204
    %5304 = vmatprep.subr.bf16.mxu0 0
    %5305 = vmatpush1.bf16.msra.mxu0 %v5205
    %5306 = vmatprep.subr.bf16.mxu0 0
    %5307 = vmatpush1.bf16.msra.mxu0 %v5206
    %5308 = vmatprep.subr.bf16.mxu0 0
    %5309 = vmatpush1.bf16.msra.mxu0 %v5207
    %5310 = vmatprep.subr.bf16.mxu0 0
    %5311 = vmatpush1.bf16.msra.mxu0 %v5208
    %5312 = vmatprep.subr.bf16.mxu0 0
    %5313 = vmatpush1.bf16.msra.mxu0 %v5209
    %5314 = vmatprep.subr.bf16.mxu0 0
    %5315 = vmatpush1.bf16.msra.mxu0 %v5210
    %5316 = vmatprep.mubr.bf16.mxu0 %v4979
    %5317 = vmatmul.mubr.bf16.gmra.mrb[0].mxu0 %v4978
    %v5318 = vpop.f32.mrb[0].mxu0
    %v5319 = vadd.f32 %v5278, %v5318
    %v5320 = vpop.f32.mrb[0].mxu0
    %v5321 = vpop.f32.mrb[0].mxu0
    %v5322 = vadd.f32 %v5281, %v5321
    %v5323 = vpop.f32.mrb[0].mxu0
    %5324 = vdwg.mxu0
    %v5325 = vtanh.pop %v5319
    %v5326 = vtanh.pop %v5322
    %v5327 = vmul.f32 %v5325, 0.397
    %v5328 = vmul.f32 %v5326, 0.397
    %v5329 = vpack.c.bf16 %v5328, %v5327
    %v5331 = vunpack.c.l.b16 %v5329
    %v5332 = vunpack.c.h.b16 %v5329
    %v5333 = vpack.c.b16 %v5331, %v5331
    %v5334 = vpack.c.b16 %v5332, %v5332
    %5337 = vst [vmem:[%s9 + $0x8] sm:$0xf] %v5333
    %5338 = vst [vmem:[%s9 + $0xc] sm:$0xf] %v5334
    // Predicated region
    $region54: #{network_forward.1} parent=1 // pred_check
      _
    $region55: #{network_forward.1} parent=1 // pred_check_branch
      %5340 = sbr.rel (0) target = $region57
    $region56: #{network_forward.1} parent=1 // pred_region
      _
    $region57: #{network_forward.1} parent=1 // pred_fallthru
      _
    // Predicated region
    $region58: #{network_forward.1} parent=1 // pred_check
      _
    $region59: #{network_forward.1} parent=1 // pred_check_branch
      %5342 = sbr.rel (0) target = $region61
    $region60: #{network_forward.1} parent=1 // pred_region
      _
    $region61: #{network_forward.1} parent=1 // pred_fallthru
      _
    %5343 = vsyncpa [#allocation4], 1
    %5344 = vsyncpa [#allocation6], 1
    %5345 = vsyncpa [#allocation9], 1

</llo_original>
